<compile_context>
chip_gen: v5e
topology: v5e:2x2
jax: 0.10.0
libtpu: 0.0.40
codegen_flags: <defaults>
</compile_context>

<pallas_src>
import functools

import jax
import jax.numpy as jnp
from jax import lax
from jax.experimental import pallas as pl
from jax.experimental.pallas import tpu as pltpu

TEMPERATURE = 2.0
NEG_BIG = -1e9          # masking bias so padded lanes never affect log-softmax
LANE = 128
MAX_TM = 256            # M tile (fits v7x's 64 MiB VMEM with the 8704-wide head)
MAX_TK = 512            # contraction tile for large hiddim
VMEM_LIMIT = 64 * 1024 * 1024


def _round_up(n, m):
    return (n + m - 1) // m * m


# ---------------------------------------------------------------------------
# Pallas kernels
# ---------------------------------------------------------------------------
def _buttons_head_kernel(x_ref, w_ref, b_ref, o_ref, *, temperature):
    # grid = (num_m_tiles, num_k_tiles); K (reduction) is the last grid axis.
    # x: (TM, TK)  w: (TK, Npad)  b: (1, Npad) f32  o: (TM, Npad) f32 (resident)
    k = pl.program_id(1)

    @pl.when(k == 0)
    def _():
        o_ref[...] = jnp.zeros_like(o_ref)

    # Accumulate the matmul directly into the grid-resident f32 output block.
    o_ref[...] += jnp.dot(x_ref[...], w_ref[...],
                          preferred_element_type=jnp.float32)

    @pl.when(k == pl.num_programs(1) - 1)
    def _():
        logits = (o_ref[...] + b_ref[...]) / temperature
        m = jnp.max(logits, axis=-1, keepdims=True)
        z = logits - m
        lse = jnp.log(jnp.sum(jnp.exp(z), axis=-1, keepdims=True))
        o_ref[...] = z - lse


def _camera_value_kernel(x_ref, w_ref, b_ref, cam_ref, val_ref, *,
                         temperature, n_camera):
    # Fused camera pi-head + value head: value weights live in lane `n_camera`
    # of the 128-lane padded camera weight, so one MXU pass serves both heads.
    # cam: (TM, 128) f32 (resident accumulator)   val: (TM, 128) f32
    k = pl.program_id(1)

    @pl.when(k == 0)
    def _():
        cam_ref[...] = jnp.zeros_like(cam_ref)

    cam_ref[...] += jnp.dot(x_ref[...], w_ref[...],
                            preferred_element_type=jnp.float32)

    @pl.when(k == pl.num_programs(1) - 1)
    def _():
        lin = cam_ref[...] + b_ref[...]            # (TM, 128)
        val_ref[...] = lin                         # consumer reads lane n_camera
        col = lax.broadcasted_iota(jnp.int32, lin.shape, 1)
        logits = jnp.where(col < n_camera, lin / temperature, NEG_BIG)
        m = jnp.max(logits, axis=-1, keepdims=True)
        z = logits - m
        lse = jnp.log(jnp.sum(jnp.exp(z), axis=-1, keepdims=True))
        cam_ref[...] = z - lse


# ---------------------------------------------------------------------------
# pallas_call wrappers
# ---------------------------------------------------------------------------
def _run_buttons_head(x2d, w_pad, b_pad, tm, tk, temperature):
    Mpad, Hpad = x2d.shape
    Npad = w_pad.shape[1]
    nm, nk = Mpad // tm, Hpad // tk
    return pl.pallas_call(
        functools.partial(_buttons_head_kernel, temperature=temperature),
        out_shape=jax.ShapeDtypeStruct((Mpad, Npad), jnp.float32),
        grid_spec=pltpu.PrefetchScalarGridSpec(
            num_scalar_prefetch=0,
            grid=(nm, nk),
            in_specs=[
                pl.BlockSpec((tm, tk), lambda i, k: (i, k)),
                pl.BlockSpec((tk, Npad), lambda i, k: (k, 0)),
                pl.BlockSpec((1, Npad), lambda i, k: (0, 0)),
            ],
            out_specs=pl.BlockSpec((tm, Npad), lambda i, k: (i, 0)),
        ),
        compiler_params=pltpu.CompilerParams(
            dimension_semantics=("parallel", "arbitrary"),
            vmem_limit_bytes=VMEM_LIMIT,
        ),
    )(x2d, w_pad, b_pad)


def _run_camera_value_head(x2d, w_pad, b_pad, tm, tk, temperature, n_camera):
    Mpad, Hpad = x2d.shape
    Npad = w_pad.shape[1]          # 128
    nm, nk = Mpad // tm, Hpad // tk
    cam, val = pl.pallas_call(
        functools.partial(_camera_value_kernel, temperature=temperature,
                          n_camera=n_camera),
        out_shape=(jax.ShapeDtypeStruct((Mpad, Npad), jnp.float32),
                   jax.ShapeDtypeStruct((Mpad, Npad), jnp.float32)),
        grid_spec=pltpu.PrefetchScalarGridSpec(
            num_scalar_prefetch=0,
            grid=(nm, nk),
            in_specs=[
                pl.BlockSpec((tm, tk), lambda i, k: (i, k)),
                pl.BlockSpec((tk, Npad), lambda i, k: (k, 0)),
                pl.BlockSpec((1, Npad), lambda i, k: (0, 0)),
            ],
            out_specs=[
                pl.BlockSpec((tm, Npad), lambda i, k: (i, 0)),
                pl.BlockSpec((tm, Npad), lambda i, k: (i, 0)),
            ],
        ),
        compiler_params=pltpu.CompilerParams(
            dimension_semantics=("parallel", "arbitrary"),
            vmem_limit_bytes=VMEM_LIMIT,
        ),
    )(x2d, w_pad, b_pad)
    return cam, val


# ---------------------------------------------------------------------------
# Module
# ---------------------------------------------------------------------------
class MinePolicyHeadsPallas:
    """JAX/Pallas equivalent of MinePolicy's pi_head + value_head forward."""

    CAMERA_N = 121
    BUTTONS_N = 8641

    def __init__(self, hiddim, key, use_bf16=True):
        self.hiddim = hiddim
        self.compute_dtype = jnp.bfloat16 if use_bf16 else jnp.float32

        # contraction tiling chosen from hiddim (weights padded once here)
        if hiddim <= MAX_TK:
            self.tk = hiddim
            self.hpad = hiddim
        else:
            self.tk = MAX_TK
            self.hpad = _round_up(hiddim, MAX_TK)

        k_cam_w, k_cam_b, k_btn_w, k_btn_b, k_v_w = jax.random.split(key, 5)
        s = 1.0 / jnp.sqrt(jnp.float32(hiddim))
        # raw f32 params (kept for reference / checkpoint compatibility)
        self.w_cam = (jax.random.normal(k_cam_w, (hiddim, self.CAMERA_N)) * s).astype(jnp.float32)
        self.b_cam = (jax.random.normal(k_cam_b, (self.CAMERA_N,)) * 0.01).astype(jnp.float32)
        self.w_btn = (jax.random.normal(k_btn_w, (hiddim, self.BUTTONS_N)) * s).astype(jnp.float32)
        self.b_btn = (jax.random.normal(k_btn_b, (self.BUTTONS_N,)) * 0.01).astype(jnp.float32)
        self.w_val = (jax.random.normal(k_v_w, (hiddim, 1)) * s).astype(jnp.float32)
        self.b_val = jnp.zeros((1,), jnp.float32)

        # ---- pre-padded kernel parameters (built once, not per forward) ----
        nb_pad = _round_up(self.BUTTONS_N, LANE)                 # 8704
        w_btn_pad = jnp.zeros((self.hpad, nb_pad), jnp.float32)
        w_btn_pad = w_btn_pad.at[:hiddim, :self.BUTTONS_N].set(self.w_btn)
        self.w_btn_pad = w_btn_pad.astype(self.compute_dtype)
        b_btn_pad = jnp.full((1, nb_pad), NEG_BIG, jnp.float32)
        self.b_btn_pad = b_btn_pad.at[0, :self.BUTTONS_N].set(self.b_btn)

        # fused camera + value weights: value column sits in lane CAMERA_N (=121)
        w_cv = jnp.zeros((self.hpad, LANE), jnp.float32)
        w_cv = w_cv.at[:hiddim, :self.CAMERA_N].set(self.w_cam)
        w_cv = w_cv.at[:hiddim, self.CAMERA_N].set(self.w_val[:, 0])
        self.w_camval_pad = w_cv.astype(self.compute_dtype)
        b_cv = jnp.zeros((1, LANE), jnp.float32)
        b_cv = b_cv.at[0, :self.CAMERA_N].set(self.b_cam)
        b_cv = b_cv.at[0, self.CAMERA_N].set(self.b_val[0])
        self.b_camval_pad = b_cv

    def __call__(self, latent):
        """latent: (B, T, H) f32.

        Returns dict with:
          pi_logits: {'camera': (B, T, 1, 121), 'buttons': (B, T, 1, 8641)}
                     (log-softmax of linear(latent)/temperature)
          vpred:     (B, T, 1)
        """
        B, T, H = latent.shape
        assert H == self.hiddim
        M = B * T

        # per-call M tiling (weights are M-independent, so only x is padded here)
        if M <= MAX_TM:
            tm = _round_up(M, 8)
            mpad = tm
        else:
            tm = MAX_TM
            mpad = _round_up(M, tm)

        x2d = latent.reshape(M, H).astype(self.compute_dtype)
        if mpad != M or self.hpad != H:
            x2d = jnp.pad(x2d, ((0, mpad - M), (0, self.hpad - H)))

        btn = _run_buttons_head(x2d, self.w_btn_pad, self.b_btn_pad,
                                tm, self.tk, TEMPERATURE)
        cam, val = _run_camera_value_head(x2d, self.w_camval_pad,
                                          self.b_camval_pad, tm, self.tk,
                                          TEMPERATURE, self.CAMERA_N)

        # Kernel outputs are lane-dense; slice to the module's logical shapes
        # once here at the consumer.
        cam = cam[:M, :self.CAMERA_N]
        btn = btn[:M, :self.BUTTONS_N]
        vpr = val[:M, self.CAMERA_N:self.CAMERA_N + 1]

        return {
            "pi_logits": {
                "camera": cam.reshape(B, T, 1, self.CAMERA_N),
                "buttons": btn.reshape(B, T, 1, self.BUTTONS_N),
            },
            "vpred": vpr.reshape(B, T, 1),
        }


# ---------------------------------------------------------------------------
# Reference (pure JAX) and test
# ---------------------------------------------------------------------------
def _reference(policy, latent, cast_dtype):
    B, T, H = latent.shape
    x2d = latent.reshape(B * T, H).astype(cast_dtype)
    w_cam = policy.w_cam.astype(cast_dtype)
    w_btn = policy.w_btn.astype(cast_dtype)
    w_val = policy.w_val.astype(cast_dtype)
    cam = jax.nn.log_softmax(
        (jnp.dot(x2d, w_cam, preferred_element_type=jnp.float32) + policy.b_cam)
        / TEMPERATURE, axis=-1)
    btn = jax.nn.log_softmax(
        (jnp.dot(x2d, w_btn, preferred_element_type=jnp.float32) + policy.b_btn)
        / TEMPERATURE, axis=-1)
    vpr = jnp.dot(x2d, w_val, preferred_element_type=jnp.float32) + policy.b_val
    return (cam.reshape(B, T, 1, -1), btn.reshape(B, T, 1, -1),
            vpr.reshape(B, T, 1))


if __name__ == "__main__":
    key = jax.random.PRNGKey(0)
    k_params, k_x = jax.random.split(key)

    B, T, HIDDIM = 2, 8, 32
    policy = MinePolicyHeadsPallas(HIDDIM, k_params, use_bf16=True)
    latent = jax.random.normal(k_x, (B, T, HIDDIM), dtype=jnp.float32)

    out = policy(latent)
    jax.block_until_ready(out)

    # tight check against a reference using the same bf16 operand precision
    cam_r, btn_r, v_r = _reference(policy, latent, policy.compute_dtype)
    assert jnp.allclose(out["pi_logits"]["camera"], cam_r, atol=1e-3, rtol=1e-3)
    assert jnp.allclose(out["pi_logits"]["buttons"], btn_r, atol=1e-3, rtol=1e-3)
    assert jnp.allclose(out["vpred"], v_r, atol=1e-3, rtol=1e-3)

    # loose check against the full-f32 reference (bf16 operand rounding only)
    cam_f, btn_f, v_f = _reference(policy, latent, jnp.float32)
    assert jnp.allclose(out["pi_logits"]["camera"], cam_f, atol=5e-2, rtol=5e-2)
    assert jnp.allclose(out["pi_logits"]["buttons"], btn_f, atol=5e-2, rtol=5e-2)
    assert jnp.allclose(out["vpred"], v_f, atol=5e-2, rtol=5e-2)

    print("KERNEL_OK")
</pallas_src>

<mosaic_0001>
module attributes {stable_mosaic.version = 11 : i64} {
  func.func @_buttons_head_kernel(%arg0: i32, %arg1: i32, %arg2: memref<16x32xbf16, #tpu.memory_space<vmem>>, %arg3: memref<32x8704xbf16, #tpu.memory_space<vmem>>, %arg4: memref<1x8704xf32, #tpu.memory_space<vmem>>, %arg5: memref<16x8704xf32, #tpu.memory_space<vmem>>) attributes {dimension_semantics = [#tpu.dimension_semantics<parallel>, #tpu.dimension_semantics<arbitrary>], iteration_bounds = array<i64: 1, 1>, scalar_prefetch = 0 : i64, scratch_operands = 0 : i64, tpu.core_type = #tpu.core_type<tc>, window_params = [{transform_indices = @transform_0, window_bounds = array<i64: 16, 32>}, {transform_indices = @transform_1, window_bounds = array<i64: 32, 8704>}, {pipeline_mode = #tpu.pipeline_mode<synchronous>, transform_indices = @transform_2, window_bounds = array<i64: 1, 8704>}, {transform_indices = @transform_3, window_bounds = array<i64: 16, 8704>}]} {
    %c0_i32 = arith.constant 0 : i32
    %0 = arith.cmpi eq, %arg1, %c0_i32 : i32
    %1 = arith.extui %0 : i1 to i32
    %c0_i32_0 = arith.constant 0 : i32
    %2 = arith.cmpi ne, %1, %c0_i32_0 : i32
    scf.if %2 {
      %cst_10 = arith.constant 0.000000e+00 : f32
      %12 = vector.broadcast %cst_10 : f32 to vector<16x8704xf32>
      %c0_11 = arith.constant 0 : index
      %c0_12 = arith.constant 0 : index
      %13 = vector.load %arg5[%c0_11, %c0_12] : memref<16x8704xf32, #tpu.memory_space<vmem>>, vector<16x8704xf32>
      tpu.vector_store %arg5[%c0_11, %c0_12], %12 {strides = array<i32>} : memref<16x8704xf32, #tpu.memory_space<vmem>>, vector<16x8704xf32>,
    } else {
    }
    %c0 = arith.constant 0 : index
    %c0_1 = arith.constant 0 : index
    %3 = vector.load %arg5[%c0, %c0_1] : memref<16x8704xf32, #tpu.memory_space<vmem>>, vector<16x8704xf32>
    %c0_2 = arith.constant 0 : index
    %c0_3 = arith.constant 0 : index
    %4 = vector.load %arg2[%c0_2, %c0_3] : memref<16x32xbf16, #tpu.memory_space<vmem>>, vector<16x32xbf16>
    %c0_4 = arith.constant 0 : index
    %c0_5 = arith.constant 0 : index
    %5 = vector.load %arg3[%c0_4, %c0_5] : memref<32x8704xbf16, #tpu.memory_space<vmem>>, vector<32x8704xbf16>
    %cst = arith.constant dense<0.000000e+00> : vector<16x8704xf32>
    %6 = tpu.matmul %4, %5, %cst {dimension_numbers = #tpu.dot_dimension_numbers<[1], [0], [0], [1], [0, 0, 1, 1], [], []>} : vector<16x32xbf16>, vector<32x8704xbf16>, vector<16x8704xf32> -> vector<16x8704xf32>
    %7 = arith.addf %3, %6 : vector<16x8704xf32>
    %c0_6 = arith.constant 0 : index
    %c0_7 = arith.constant 0 : index
    %8 = vector.load %arg5[%c0_6, %c0_7] : memref<16x8704xf32, #tpu.memory_space<vmem>>, vector<16x8704xf32>
    tpu.vector_store %arg5[%c0_6, %c0_7], %7 {strides = array<i32>} : memref<16x8704xf32, #tpu.memory_space<vmem>>, vector<16x8704xf32>,
    %c0_i32_8 = arith.constant 0 : i32
    %9 = arith.cmpi eq, %arg1, %c0_i32_8 : i32
    %10 = arith.extui %9 : i1 to i32
    %c0_i32_9 = arith.constant 0 : i32
    %11 = arith.cmpi ne, %10, %c0_i32_9 : i32
    scf.if %11 {
      %c0_10 = arith.constant 0 : index
      %c0_11 = arith.constant 0 : index
      %12 = vector.load %arg5[%c0_10, %c0_11] : memref<16x8704xf32, #tpu.memory_space<vmem>>, vector<16x8704xf32>
      %c0_12 = arith.constant 0 : index
      %c0_13 = arith.constant 0 : index
      %13 = vector.load %arg4[%c0_12, %c0_13] : memref<1x8704xf32, #tpu.memory_space<vmem>>, vector<1x8704xf32>
      %14 = vector.broadcast %13 : vector<1x8704xf32> to vector<16x8704xf32>
      %15 = arith.addf %12, %14 : vector<16x8704xf32>
      %cst_14 = arith.constant 2.000000e+00 : f32
      %16 = vector.broadcast %cst_14 : f32 to vector<16x8704xf32>
      %17 = arith.divf %15, %16 : vector<16x8704xf32>
      %cst_15 = arith.constant dense<0xFF800000> : vector<16xf32>
      %18 = vector.multi_reduction <maximumf>, %17, %cst_15 [1] : vector<16x8704xf32> to vector<16xf32>
      %19 = vector.shape_cast %18 : vector<16xf32> to vector<16x1xf32>
      %20 = vector.broadcast %19 : vector<16x1xf32> to vector<16x8704xf32>
      %21 = arith.subf %17, %20 : vector<16x8704xf32>
      %22 = math.exp %21 : vector<16x8704xf32>
      %cst_16 = arith.constant dense<0.000000e+00> : vector<16xf32>
      %23 = vector.multi_reduction <add>, %22, %cst_16 [1] : vector<16x8704xf32> to vector<16xf32>
      %24 = vector.shape_cast %23 : vector<16xf32> to vector<16x1xf32>
      %25 = math.log %24 : vector<16x1xf32>
      %26 = vector.broadcast %25 : vector<16x1xf32> to vector<16x8704xf32>
      %27 = arith.subf %21, %26 : vector<16x8704xf32>
      %c0_17 = arith.constant 0 : index
      %c0_18 = arith.constant 0 : index
      %28 = vector.load %arg5[%c0_17, %c0_18] : memref<16x8704xf32, #tpu.memory_space<vmem>>, vector<16x8704xf32>
      tpu.vector_store %arg5[%c0_17, %c0_18], %27 {strides = array<i32>} : memref<16x8704xf32, #tpu.memory_space<vmem>>, vector<16x8704xf32>,
    } else {
    }
    return
  }
  func.func @transform_0(%arg0: i32, %arg1: i32) -> (i32, i32) {
    %c0_i32 = arith.constant 0 : i32
    return %arg0, %arg1 : i32, i32
  }
  func.func @transform_1(%arg0: i32, %arg1: i32) -> (i32, i32) {
    %c0_i32 = arith.constant 0 : i32
    %c0_i32_0 = arith.constant 0 : i32
    return %arg1, %c0_i32 : i32, i32
  }
  func.func @transform_2(%arg0: i32, %arg1: i32) -> (i32, i32) {
    %c0_i32 = arith.constant 0 : i32
    %c0_i32_0 = arith.constant 0 : i32
    %c0_i32_1 = arith.constant 0 : i32
    return %c0_i32, %c0_i32_0 : i32, i32
  }
  func.func @transform_3(%arg0: i32, %arg1: i32) -> (i32, i32) {
    %c0_i32 = arith.constant 0 : i32
    %c0_i32_0 = arith.constant 0 : i32
    return %arg0, %c0_i32 : i32, i32
  }
}

</mosaic_0001>

<llo_original>
// kernel: tpu_custom_call.1
$region0: #{tpu_custom_call.1}
  #allocation0 [shape = 'u32[]', space=smem, size = 0x4, offset = 0x4, fixed_abs, tag = 'smem constant byte address 0x4 - core index']
  #allocation1 [shape = 'u32[72,128]{1,0:T(1,128)}', space=vmem, size = 0x9000, scoped, tag = 'internal scratch']
  %s0 = inlined_call_operand.hbm [shape: bf16[16,32], index: 0, kind: input, shape index: {}]
  %s1 = inlined_call_operand.hbm [shape: bf16[32,8704], index: 1, kind: input, shape index: {}]
  %s2 = inlined_call_operand.hbm [shape: f32[1,8704], index: 2, kind: input, shape index: {}]
  %s3 = inlined_call_operand.hbm [shape: f32[16,8704], index: 3, kind: output, shape index: {}]
  %s4 = sld [smem:[#allocation0]]
  $region42: #{tpu_custom_call.1} parent=0
    _
  %s6 = ssub.s32 1, %s4
  %s7 = scalar_select 0, %s6, %s4
  $region1: #{tpu_custom_call.1} parent=0
    #allocation2 [shape = 'u8[4096]{0}', space=vmem, size = 0x1000, scoped, tag = 'input window, operand 0, single buffered']
    #allocation3 [shape = 's32[1]{0}', space=sflag, size = 0x4, scoped, tag = 'scoped memory for tpu_custom_call.1']
    #allocation4 [shape = 's32[1]{0}', space=sflag, size = 0x4, scoped, tag = 'scoped memory for tpu_custom_call.1']
    #allocation5 [shape = 'u8[557056]{0}', space=vmem, size = 0x88000, scoped, tag = 'input window, operand 1, single buffered']
    #allocation6 [shape = 's32[1]{0}', space=sflag, size = 0x4, scoped, tag = 'scoped memory for tpu_custom_call.1']
    #allocation7 [shape = 'u8[34816]{0}', space=vmem, size = 0x8800, scoped, tag = 'input window, operand 2, single buffered']
    #allocation8 [shape = 'u8[557056]{0}', space=vmem, size = 0x88000, scoped, tag = 'output window, operand 0, single buffered']
    %8 = vsyncpa [#allocation3], 0
    %9 = vsyncpa [#allocation6], 0
    %10 = vsyncpa [#allocation4], 0
    // Predicated region
    $region2: #{tpu_custom_call.1} parent=1 // pred_check
      _
    $region3: #{tpu_custom_call.1} parent=1 // pred_check_branch
      %12 = sbr.rel (0) target = $region5
    $region4: #{tpu_custom_call.1} parent=1 // pred_region
      %14 = vsyncadd [#allocation3], 0
      %s15 = sshll.u32 %s0, 4
      %s16 = int_to_ptr.hbm [resolvable:$true] %s15
      %s17 = sshll.u32 [#allocation2], 4
      %s18 = int_to_ptr.vmem [resolvable:$true] %s17
      %23 = dma.hbm_to_vmem [thread:$0]  %s16, 128, %s18, [#allocation3], 64, 64, 4
    $region5: #{tpu_custom_call.1} parent=1 // pred_fallthru
      _
    // Predicated region
    $region6: #{tpu_custom_call.1} parent=1 // pred_check
      _
    $region7: #{tpu_custom_call.1} parent=1 // pred_check_branch
      %25 = sbr.rel (0) target = $region9
    $region8: #{tpu_custom_call.1} parent=1 // pred_region
      %27 = vsyncadd [#allocation6], 0
      %s28 = sshll.u32 %s1, 4
      %s29 = int_to_ptr.hbm [resolvable:$true] %s28
      %s30 = sshll.u32 [#allocation5], 4
      %s31 = int_to_ptr.vmem [resolvable:$true] %s30
      %36 = dma.hbm_to_vmem [thread:$0]  %s29, 17408, %s31, [#allocation6], 4352, 4352, 272
    $region9: #{tpu_custom_call.1} parent=1 // pred_fallthru
      _
    // Predicated region
    $region10: #{tpu_custom_call.1} parent=1 // pred_check
      _
    $region11: #{tpu_custom_call.1} parent=1 // pred_check_branch
      %38 = sbr.rel (0) target = $region13
    $region12: #{tpu_custom_call.1} parent=1 // pred_region
      %40 = vsyncadd [#allocation6], 0
      %s42 = sshll.u32 %s2, 4
      %s43 = int_to_ptr.hbm [resolvable:$true] %s42
      %s44 = sshll.u32 [#allocation7], 4
      %s45 = int_to_ptr.vmem [resolvable:$true] %s44
      %47 = dma.hbm_to_vmem [thread:$0]  %s43, 1088, %s45, [#allocation6]
    $region13: #{tpu_custom_call.1} parent=1 // pred_fallthru
      _
    // Predicated region
    $region14: #{tpu_custom_call.1} parent=1 // pred_check
      _
    $region15: #{tpu_custom_call.1} parent=1 // pred_check_branch
      %49 = sbr.rel (0) target = $region17
    $region16: #{tpu_custom_call.1} parent=1 // pred_region
      %51 = dma.done [#allocation3], 128
    $region17: #{tpu_custom_call.1} parent=1 // pred_fallthru
      _
    // Predicated region
    $region18: #{tpu_custom_call.1} parent=1 // pred_check
      _
    $region19: #{tpu_custom_call.1} parent=1 // pred_check_branch
      %53 = sbr.rel (0) target = $region21
    $region20: #{tpu_custom_call.1} parent=1 // pred_region
      %55 = dma.done [#allocation6], 17408
    $region21: #{tpu_custom_call.1} parent=1 // pred_fallthru
      _
    // Predicated region
    $region22: #{tpu_custom_call.1} parent=1 // pred_check
      _
    $region23: #{tpu_custom_call.1} parent=1 // pred_check_branch
      %57 = sbr.rel (0) target = $region25
    $region24: #{tpu_custom_call.1} parent=1 // pred_region
      %59 = dma.done [#allocation6], 1088
    $region25: #{tpu_custom_call.1} parent=1 // pred_fallthru
      _
    %p61 = scmp.eq.s32.totalorder 0, 0
    // Predicated region
    $region26: #{tpu_custom_call.1} parent=1 // pred_check
      %p62 = pneg %p61
    $region27: #{tpu_custom_call.1} parent=1 // pred_check_branch
      %64 = sbr.rel (%p62) target = $region29
    $region28: #{tpu_custom_call.1} parent=1 // pred_region
      %65 = vst [vmem:[#allocation8] sm:$0xff] 0.0
      %66 = vst [vmem:[#allocation8 + $0x8] sm:$0xff] 0.0
      %67 = vst [vmem:[#allocation8 + $0x10] sm:$0xff] 0.0
      %68 = vst [vmem:[#allocation8 + $0x18] sm:$0xff] 0.0
      %69 = vst [vmem:[#allocation8 + $0x20] sm:$0xff] 0.0
      %70 = vst [vmem:[#allocation8 + $0x28] sm:$0xff] 0.0
      %71 = vst [vmem:[#allocation8 + $0x30] sm:$0xff] 0.0
      %72 = vst [vmem:[#allocation8 + $0x38] sm:$0xff] 0.0
      %73 = vst [vmem:[#allocation8 + $0x40] sm:$0xff] 0.0
      %74 = vst [vmem:[#allocation8 + $0x48] sm:$0xff] 0.0
      %75 = vst [vmem:[#allocation8 + $0x50] sm:$0xff] 0.0
      %76 = vst [vmem:[#allocation8 + $0x58] sm:$0xff] 0.0
      %77 = vst [vmem:[#allocation8 + $0x60] sm:$0xff] 0.0
      %78 = vst [vmem:[#allocation8 + $0x68] sm:$0xff] 0.0
      %79 = vst [vmem:[#allocation8 + $0x70] sm:$0xff] 0.0
      %80 = vst [vmem:[#allocation8 + $0x78] sm:$0xff] 0.0
      %81 = vst [vmem:[#allocation8 + $0x80] sm:$0xff] 0.0
      %82 = vst [vmem:[#allocation8 + $0x88] sm:$0xff] 0.0
      %83 = vst [vmem:[#allocation8 + $0x90] sm:$0xff] 0.0
      %84 = vst [vmem:[#allocation8 + $0x98] sm:$0xff] 0.0
      %85 = vst [vmem:[#allocation8 + $0xa0] sm:$0xff] 0.0
      %86 = vst [vmem:[#allocation8 + $0xa8] sm:$0xff] 0.0
      %87 = vst [vmem:[#allocation8 + $0xb0] sm:$0xff] 0.0
      %88 = vst [vmem:[#allocation8 + $0xb8] sm:$0xff] 0.0
      %89 = vst [vmem:[#allocation8 + $0xc0] sm:$0xff] 0.0
      %90 = vst [vmem:[#allocation8 + $0xc8] sm:$0xff] 0.0
      %91 = vst [vmem:[#allocation8 + $0xd0] sm:$0xff] 0.0
      %92 = vst [vmem:[#allocation8 + $0xd8] sm:$0xff] 0.0
      %93 = vst [vmem:[#allocation8 + $0xe0] sm:$0xff] 0.0
      %94 = vst [vmem:[#allocation8 + $0xe8] sm:$0xff] 0.0
      %95 = vst [vmem:[#allocation8 + $0xf0] sm:$0xff] 0.0
      %96 = vst [vmem:[#allocation8 + $0xf8] sm:$0xff] 0.0
      %97 = vst [vmem:[#allocation8 + $0x100] sm:$0xff] 0.0
      %98 = vst [vmem:[#allocation8 + $0x108] sm:$0xff] 0.0
      %99 = vst [vmem:[#allocation8 + $0x110] sm:$0xff] 0.0
      %100 = vst [vmem:[#allocation8 + $0x118] sm:$0xff] 0.0
      %101 = vst [vmem:[#allocation8 + $0x120] sm:$0xff] 0.0
      %102 = vst [vmem:[#allocation8 + $0x128] sm:$0xff] 0.0
      %103 = vst [vmem:[#allocation8 + $0x130] sm:$0xff] 0.0
      %104 = vst [vmem:[#allocation8 + $0x138] sm:$0xff] 0.0
      %105 = vst [vmem:[#allocation8 + $0x140] sm:$0xff] 0.0
      %106 = vst [vmem:[#allocation8 + $0x148] sm:$0xff] 0.0
      %107 = vst [vmem:[#allocation8 + $0x150] sm:$0xff] 0.0
      %108 = vst [vmem:[#allocation8 + $0x158] sm:$0xff] 0.0
      %109 = vst [vmem:[#allocation8 + $0x160] sm:$0xff] 0.0
      %110 = vst [vmem:[#allocation8 + $0x168] sm:$0xff] 0.0
      %111 = vst [vmem:[#allocation8 + $0x170] sm:$0xff] 0.0
      %112 = vst [vmem:[#allocation8 + $0x178] sm:$0xff] 0.0
      %113 = vst [vmem:[#allocation8 + $0x180] sm:$0xff] 0.0
      %114 = vst [vmem:[#allocation8 + $0x188] sm:$0xff] 0.0
      %115 = vst [vmem:[#allocation8 + $0x190] sm:$0xff] 0.0
      %116 = vst [vmem:[#allocation8 + $0x198] sm:$0xff] 0.0
      %117 = vst [vmem:[#allocation8 + $0x1a0] sm:$0xff] 0.0
      %118 = vst [vmem:[#allocation8 + $0x1a8] sm:$0xff] 0.0
      %119 = vst [vmem:[#allocation8 + $0x1b0] sm:$0xff] 0.0
      %120 = vst [vmem:[#allocation8 + $0x1b8] sm:$0xff] 0.0
      %121 = vst [vmem:[#allocation8 + $0x1c0] sm:$0xff] 0.0
      %122 = vst [vmem:[#allocation8 + $0x1c8] sm:$0xff] 0.0
      %123 = vst [vmem:[#allocation8 + $0x1d0] sm:$0xff] 0.0
      %124 = vst [vmem:[#allocation8 + $0x1d8] sm:$0xff] 0.0
      %125 = vst [vmem:[#allocation8 + $0x1e0] sm:$0xff] 0.0
      %126 = vst [vmem:[#allocation8 + $0x1e8] sm:$0xff] 0.0
      %127 = vst [vmem:[#allocation8 + $0x1f0] sm:$0xff] 0.0
      %128 = vst [vmem:[#allocation8 + $0x1f8] sm:$0xff] 0.0
      %129 = vst [vmem:[#allocation8 + $0x200] sm:$0xff] 0.0
      %130 = vst [vmem:[#allocation8 + $0x208] sm:$0xff] 0.0
      %131 = vst [vmem:[#allocation8 + $0x210] sm:$0xff] 0.0
      %132 = vst [vmem:[#allocation8 + $0x218] sm:$0xff] 0.0
      %133 = vst [vmem:[#allocation8 + $0x220] sm:$0xff] 0.0
      %134 = vst [vmem:[#allocation8 + $0x228] sm:$0xff] 0.0
      %135 = vst [vmem:[#allocation8 + $0x230] sm:$0xff] 0.0
      %136 = vst [vmem:[#allocation8 + $0x238] sm:$0xff] 0.0
      %137 = vst [vmem:[#allocation8 + $0x240] sm:$0xff] 0.0
      %138 = vst [vmem:[#allocation8 + $0x248] sm:$0xff] 0.0
      %139 = vst [vmem:[#allocation8 + $0x250] sm:$0xff] 0.0
      %140 = vst [vmem:[#allocation8 + $0x258] sm:$0xff] 0.0
      %141 = vst [vmem:[#allocation8 + $0x260] sm:$0xff] 0.0
      %142 = vst [vmem:[#allocation8 + $0x268] sm:$0xff] 0.0
      %143 = vst [vmem:[#allocation8 + $0x270] sm:$0xff] 0.0
      %144 = vst [vmem:[#allocation8 + $0x278] sm:$0xff] 0.0
      %145 = vst [vmem:[#allocation8 + $0x280] sm:$0xff] 0.0
      %146 = vst [vmem:[#allocation8 + $0x288] sm:$0xff] 0.0
      %147 = vst [vmem:[#allocation8 + $0x290] sm:$0xff] 0.0
      %148 = vst [vmem:[#allocation8 + $0x298] sm:$0xff] 0.0
      %149 = vst [vmem:[#allocation8 + $0x2a0] sm:$0xff] 0.0
      %150 = vst [vmem:[#allocation8 + $0x2a8] sm:$0xff] 0.0
      %151 = vst [vmem:[#allocation8 + $0x2b0] sm:$0xff] 0.0
      %152 = vst [vmem:[#allocation8 + $0x2b8] sm:$0xff] 0.0
      %153 = vst [vmem:[#allocation8 + $0x2c0] sm:$0xff] 0.0
      %154 = vst [vmem:[#allocation8 + $0x2c8] sm:$0xff] 0.0
      %155 = vst [vmem:[#allocation8 + $0x2d0] sm:$0xff] 0.0
      %156 = vst [vmem:[#allocation8 + $0x2d8] sm:$0xff] 0.0
      %157 = vst [vmem:[#allocation8 + $0x2e0] sm:$0xff] 0.0
      %158 = vst [vmem:[#allocation8 + $0x2e8] sm:$0xff] 0.0
      %159 = vst [vmem:[#allocation8 + $0x2f0] sm:$0xff] 0.0
      %160 = vst [vmem:[#allocation8 + $0x2f8] sm:$0xff] 0.0
      %161 = vst [vmem:[#allocation8 + $0x300] sm:$0xff] 0.0
      %162 = vst [vmem:[#allocation8 + $0x308] sm:$0xff] 0.0
      %163 = vst [vmem:[#allocation8 + $0x310] sm:$0xff] 0.0
      %164 = vst [vmem:[#allocation8 + $0x318] sm:$0xff] 0.0
      %165 = vst [vmem:[#allocation8 + $0x320] sm:$0xff] 0.0
      %166 = vst [vmem:[#allocation8 + $0x328] sm:$0xff] 0.0
      %167 = vst [vmem:[#allocation8 + $0x330] sm:$0xff] 0.0
      %168 = vst [vmem:[#allocation8 + $0x338] sm:$0xff] 0.0
      %169 = vst [vmem:[#allocation8 + $0x340] sm:$0xff] 0.0
      %170 = vst [vmem:[#allocation8 + $0x348] sm:$0xff] 0.0
      %171 = vst [vmem:[#allocation8 + $0x350] sm:$0xff] 0.0
      %172 = vst [vmem:[#allocation8 + $0x358] sm:$0xff] 0.0
      %173 = vst [vmem:[#allocation8 + $0x360] sm:$0xff] 0.0
      %174 = vst [vmem:[#allocation8 + $0x368] sm:$0xff] 0.0
      %175 = vst [vmem:[#allocation8 + $0x370] sm:$0xff] 0.0
      %176 = vst [vmem:[#allocation8 + $0x378] sm:$0xff] 0.0
      %177 = vst [vmem:[#allocation8 + $0x380] sm:$0xff] 0.0
      %178 = vst [vmem:[#allocation8 + $0x388] sm:$0xff] 0.0
      %179 = vst [vmem:[#allocation8 + $0x390] sm:$0xff] 0.0
      %180 = vst [vmem:[#allocation8 + $0x398] sm:$0xff] 0.0
      %181 = vst [vmem:[#allocation8 + $0x3a0] sm:$0xff] 0.0
      %182 = vst [vmem:[#allocation8 + $0x3a8] sm:$0xff] 0.0
      %183 = vst [vmem:[#allocation8 + $0x3b0] sm:$0xff] 0.0
      %184 = vst [vmem:[#allocation8 + $0x3b8] sm:$0xff] 0.0
      %185 = vst [vmem:[#allocation8 + $0x3c0] sm:$0xff] 0.0
      %186 = vst [vmem:[#allocation8 + $0x3c8] sm:$0xff] 0.0
      %187 = vst [vmem:[#allocation8 + $0x3d0] sm:$0xff] 0.0
      %188 = vst [vmem:[#allocation8 + $0x3d8] sm:$0xff] 0.0
      %189 = vst [vmem:[#allocation8 + $0x3e0] sm:$0xff] 0.0
      %190 = vst [vmem:[#allocation8 + $0x3e8] sm:$0xff] 0.0
      %191 = vst [vmem:[#allocation8 + $0x3f0] sm:$0xff] 0.0
      %192 = vst [vmem:[#allocation8 + $0x3f8] sm:$0xff] 0.0
      %193 = vst [vmem:[#allocation8 + $0x400] sm:$0xff] 0.0
      %194 = vst [vmem:[#allocation8 + $0x408] sm:$0xff] 0.0
      %195 = vst [vmem:[#allocation8 + $0x410] sm:$0xff] 0.0
      %196 = vst [vmem:[#allocation8 + $0x418] sm:$0xff] 0.0
      %197 = vst [vmem:[#allocation8 + $0x420] sm:$0xff] 0.0
      %198 = vst [vmem:[#allocation8 + $0x428] sm:$0xff] 0.0
      %199 = vst [vmem:[#allocation8 + $0x430] sm:$0xff] 0.0
      %200 = vst [vmem:[#allocation8 + $0x438] sm:$0xff] 0.0
    $region29: #{tpu_custom_call.1} parent=1 // pred_fallthru
      _
    %v201 = vld [vmem:[#allocation8] sm:$0xff]
    %v202 = vld [vmem:[#allocation8 + $0x8] sm:$0xff]
    %v203 = vld [vmem:[#allocation8 + $0x10] sm:$0xff]
    %v204 = vld [vmem:[#allocation8 + $0x18] sm:$0xff]
    %v205 = vld [vmem:[#allocation8 + $0x20] sm:$0xff]
    %v206 = vld [vmem:[#allocation8 + $0x28] sm:$0xff]
    %v207 = vld [vmem:[#allocation8 + $0x30] sm:$0xff]
    %v208 = vld [vmem:[#allocation8 + $0x38] sm:$0xff]
    %v209 = vld [vmem:[#allocation8 + $0x40] sm:$0xff]
    %v210 = vld [vmem:[#allocation8 + $0x48] sm:$0xff]
    %v211 = vld [vmem:[#allocation8 + $0x50] sm:$0xff]
    %v212 = vld [vmem:[#allocation8 + $0x58] sm:$0xff]
    %v213 = vld [vmem:[#allocation8 + $0x60] sm:$0xff]
    %v214 = vld [vmem:[#allocation8 + $0x68] sm:$0xff]
    %v215 = vld [vmem:[#allocation8 + $0x70] sm:$0xff]
    %v216 = vld [vmem:[#allocation8 + $0x78] sm:$0xff]
    %v217 = vld [vmem:[#allocation8 + $0x80] sm:$0xff]
    %v218 = vld [vmem:[#allocation8 + $0x88] sm:$0xff]
    %v219 = vld [vmem:[#allocation8 + $0x90] sm:$0xff]
    %v220 = vld [vmem:[#allocation8 + $0x98] sm:$0xff]
    %v221 = vld [vmem:[#allocation8 + $0xa0] sm:$0xff]
    %v222 = vld [vmem:[#allocation8 + $0xa8] sm:$0xff]
    %v223 = vld [vmem:[#allocation8 + $0xb0] sm:$0xff]
    %v224 = vld [vmem:[#allocation8 + $0xb8] sm:$0xff]
    %v225 = vld [vmem:[#allocation8 + $0xc0] sm:$0xff]
    %v226 = vld [vmem:[#allocation8 + $0xc8] sm:$0xff]
    %v227 = vld [vmem:[#allocation8 + $0xd0] sm:$0xff]
    %v228 = vld [vmem:[#allocation8 + $0xd8] sm:$0xff]
    %v229 = vld [vmem:[#allocation8 + $0xe0] sm:$0xff]
    %v230 = vld [vmem:[#allocation8 + $0xe8] sm:$0xff]
    %v231 = vld [vmem:[#allocation8 + $0xf0] sm:$0xff]
    %v232 = vld [vmem:[#allocation8 + $0xf8] sm:$0xff]
    %v233 = vld [vmem:[#allocation8 + $0x100] sm:$0xff]
    %v234 = vld [vmem:[#allocation8 + $0x108] sm:$0xff]
    %v235 = vld [vmem:[#allocation8 + $0x110] sm:$0xff]
    %v236 = vld [vmem:[#allocation8 + $0x118] sm:$0xff]
    %v237 = vld [vmem:[#allocation8 + $0x120] sm:$0xff]
    %v238 = vld [vmem:[#allocation8 + $0x128] sm:$0xff]
    %v239 = vld [vmem:[#allocation8 + $0x130] sm:$0xff]
    %v240 = vld [vmem:[#allocation8 + $0x138] sm:$0xff]
    %v241 = vld [vmem:[#allocation8 + $0x140] sm:$0xff]
    %v242 = vld [vmem:[#allocation8 + $0x148] sm:$0xff]
    %v243 = vld [vmem:[#allocation8 + $0x150] sm:$0xff]
    %v244 = vld [vmem:[#allocation8 + $0x158] sm:$0xff]
    %v245 = vld [vmem:[#allocation8 + $0x160] sm:$0xff]
    %v246 = vld [vmem:[#allocation8 + $0x168] sm:$0xff]
    %v247 = vld [vmem:[#allocation8 + $0x170] sm:$0xff]
    %v248 = vld [vmem:[#allocation8 + $0x178] sm:$0xff]
    %v249 = vld [vmem:[#allocation8 + $0x180] sm:$0xff]
    %v250 = vld [vmem:[#allocation8 + $0x188] sm:$0xff]
    %v251 = vld [vmem:[#allocation8 + $0x190] sm:$0xff]
    %v252 = vld [vmem:[#allocation8 + $0x198] sm:$0xff]
    %v253 = vld [vmem:[#allocation8 + $0x1a0] sm:$0xff]
    %v254 = vld [vmem:[#allocation8 + $0x1a8] sm:$0xff]
    %v255 = vld [vmem:[#allocation8 + $0x1b0] sm:$0xff]
    %v256 = vld [vmem:[#allocation8 + $0x1b8] sm:$0xff]
    %v257 = vld [vmem:[#allocation8 + $0x1c0] sm:$0xff]
    %v258 = vld [vmem:[#allocation8 + $0x1c8] sm:$0xff]
    %v259 = vld [vmem:[#allocation8 + $0x1d0] sm:$0xff]
    %v260 = vld [vmem:[#allocation8 + $0x1d8] sm:$0xff]
    %v261 = vld [vmem:[#allocation8 + $0x1e0] sm:$0xff]
    %v262 = vld [vmem:[#allocation8 + $0x1e8] sm:$0xff]
    %v263 = vld [vmem:[#allocation8 + $0x1f0] sm:$0xff]
    %v264 = vld [vmem:[#allocation8 + $0x1f8] sm:$0xff]
    %v265 = vld [vmem:[#allocation8 + $0x200] sm:$0xff]
    %v266 = vld [vmem:[#allocation8 + $0x208] sm:$0xff]
    %v267 = vld [vmem:[#allocation8 + $0x210] sm:$0xff]
    %v268 = vld [vmem:[#allocation8 + $0x218] sm:$0xff]
    %v269 = vld [vmem:[#allocation8 + $0x220] sm:$0xff]
    %v270 = vld [vmem:[#allocation8 + $0x228] sm:$0xff]
    %v271 = vld [vmem:[#allocation8 + $0x230] sm:$0xff]
    %v272 = vld [vmem:[#allocation8 + $0x238] sm:$0xff]
    %v273 = vld [vmem:[#allocation8 + $0x240] sm:$0xff]
    %v274 = vld [vmem:[#allocation8 + $0x248] sm:$0xff]
    %v275 = vld [vmem:[#allocation8 + $0x250] sm:$0xff]
    %v276 = vld [vmem:[#allocation8 + $0x258] sm:$0xff]
    %v277 = vld [vmem:[#allocation8 + $0x260] sm:$0xff]
    %v278 = vld [vmem:[#allocation8 + $0x268] sm:$0xff]
    %v279 = vld [vmem:[#allocation8 + $0x270] sm:$0xff]
    %v280 = vld [vmem:[#allocation8 + $0x278] sm:$0xff]
    %v281 = vld [vmem:[#allocation8 + $0x280] sm:$0xff]
    %v282 = vld [vmem:[#allocation8 + $0x288] sm:$0xff]
    %v283 = vld [vmem:[#allocation8 + $0x290] sm:$0xff]
    %v284 = vld [vmem:[#allocation8 + $0x298] sm:$0xff]
    %v285 = vld [vmem:[#allocation8 + $0x2a0] sm:$0xff]
    %v286 = vld [vmem:[#allocation8 + $0x2a8] sm:$0xff]
    %v287 = vld [vmem:[#allocation8 + $0x2b0] sm:$0xff]
    %v288 = vld [vmem:[#allocation8 + $0x2b8] sm:$0xff]
    %v289 = vld [vmem:[#allocation8 + $0x2c0] sm:$0xff]
    %v290 = vld [vmem:[#allocation8 + $0x2c8] sm:$0xff]
    %v291 = vld [vmem:[#allocation8 + $0x2d0] sm:$0xff]
    %v292 = vld [vmem:[#allocation8 + $0x2d8] sm:$0xff]
    %v293 = vld [vmem:[#allocation8 + $0x2e0] sm:$0xff]
    %v294 = vld [vmem:[#allocation8 + $0x2e8] sm:$0xff]
    %v295 = vld [vmem:[#allocation8 + $0x2f0] sm:$0xff]
    %v296 = vld [vmem:[#allocation8 + $0x2f8] sm:$0xff]
    %v297 = vld [vmem:[#allocation8 + $0x300] sm:$0xff]
    %v298 = vld [vmem:[#allocation8 + $0x308] sm:$0xff]
    %v299 = vld [vmem:[#allocation8 + $0x310] sm:$0xff]
    %v300 = vld [vmem:[#allocation8 + $0x318] sm:$0xff]
    %v301 = vld [vmem:[#allocation8 + $0x320] sm:$0xff]
    %v302 = vld [vmem:[#allocation8 + $0x328] sm:$0xff]
    %v303 = vld [vmem:[#allocation8 + $0x330] sm:$0xff]
    %v304 = vld [vmem:[#allocation8 + $0x338] sm:$0xff]
    %v305 = vld [vmem:[#allocation8 + $0x340] sm:$0xff]
    %v306 = vld [vmem:[#allocation8 + $0x348] sm:$0xff]
    %v307 = vld [vmem:[#allocation8 + $0x350] sm:$0xff]
    %v308 = vld [vmem:[#allocation8 + $0x358] sm:$0xff]
    %v309 = vld [vmem:[#allocation8 + $0x360] sm:$0xff]
    %v310 = vld [vmem:[#allocation8 + $0x368] sm:$0xff]
    %v311 = vld [vmem:[#allocation8 + $0x370] sm:$0xff]
    %v312 = vld [vmem:[#allocation8 + $0x378] sm:$0xff]
    %v313 = vld [vmem:[#allocation8 + $0x380] sm:$0xff]
    %v314 = vld [vmem:[#allocation8 + $0x388] sm:$0xff]
    %v315 = vld [vmem:[#allocation8 + $0x390] sm:$0xff]
    %v316 = vld [vmem:[#allocation8 + $0x398] sm:$0xff]
    %v317 = vld [vmem:[#allocation8 + $0x3a0] sm:$0xff]
    %v318 = vld [vmem:[#allocation8 + $0x3a8] sm:$0xff]
    %v319 = vld [vmem:[#allocation8 + $0x3b0] sm:$0xff]
    %v320 = vld [vmem:[#allocation8 + $0x3b8] sm:$0xff]
    %v321 = vld [vmem:[#allocation8 + $0x3c0] sm:$0xff]
    %v322 = vld [vmem:[#allocation8 + $0x3c8] sm:$0xff]
    %v323 = vld [vmem:[#allocation8 + $0x3d0] sm:$0xff]
    %v324 = vld [vmem:[#allocation8 + $0x3d8] sm:$0xff]
    %v325 = vld [vmem:[#allocation8 + $0x3e0] sm:$0xff]
    %v326 = vld [vmem:[#allocation8 + $0x3e8] sm:$0xff]
    %v327 = vld [vmem:[#allocation8 + $0x3f0] sm:$0xff]
    %v328 = vld [vmem:[#allocation8 + $0x3f8] sm:$0xff]
    %v329 = vld [vmem:[#allocation8 + $0x400] sm:$0xff]
    %v330 = vld [vmem:[#allocation8 + $0x408] sm:$0xff]
    %v331 = vld [vmem:[#allocation8 + $0x410] sm:$0xff]
    %v332 = vld [vmem:[#allocation8 + $0x418] sm:$0xff]
    %v333 = vld [vmem:[#allocation8 + $0x420] sm:$0xff]
    %v334 = vld [vmem:[#allocation8 + $0x428] sm:$0xff]
    %v335 = vld [vmem:[#allocation8 + $0x430] sm:$0xff]
    %v336 = vld [vmem:[#allocation8 + $0x438] sm:$0xff]
    %v337 = vld [vmem:[#allocation2] sm:$0xf]
    %v338 = vld [vmem:[#allocation2 + $0x4] sm:$0xf]
    %v339 = vld [vmem:[#allocation5] sm:$0xff]
    %v340 = vld [vmem:[#allocation5 + $0x8] sm:$0xff]
    %v341 = vld [vmem:[#allocation5 + $0x10] sm:$0xff]
    %v342 = vld [vmem:[#allocation5 + $0x18] sm:$0xff]
    %v343 = vld [vmem:[#allocation5 + $0x20] sm:$0xff]
    %v344 = vld [vmem:[#allocation5 + $0x28] sm:$0xff]
    %v345 = vld [vmem:[#allocation5 + $0x30] sm:$0xff]
    %v346 = vld [vmem:[#allocation5 + $0x38] sm:$0xff]
    %v347 = vld [vmem:[#allocation5 + $0x40] sm:$0xff]
    %v348 = vld [vmem:[#allocation5 + $0x48] sm:$0xff]
    %v349 = vld [vmem:[#allocation5 + $0x50] sm:$0xff]
    %v350 = vld [vmem:[#allocation5 + $0x58] sm:$0xff]
    %v351 = vld [vmem:[#allocation5 + $0x60] sm:$0xff]
    %v352 = vld [vmem:[#allocation5 + $0x68] sm:$0xff]
    %v353 = vld [vmem:[#allocation5 + $0x70] sm:$0xff]
    %v354 = vld [vmem:[#allocation5 + $0x78] sm:$0xff]
    %v355 = vld [vmem:[#allocation5 + $0x80] sm:$0xff]
    %v356 = vld [vmem:[#allocation5 + $0x88] sm:$0xff]
    %v357 = vld [vmem:[#allocation5 + $0x90] sm:$0xff]
    %v358 = vld [vmem:[#allocation5 + $0x98] sm:$0xff]
    %v359 = vld [vmem:[#allocation5 + $0xa0] sm:$0xff]
    %v360 = vld [vmem:[#allocation5 + $0xa8] sm:$0xff]
    %v361 = vld [vmem:[#allocation5 + $0xb0] sm:$0xff]
    %v362 = vld [vmem:[#allocation5 + $0xb8] sm:$0xff]
    %v363 = vld [vmem:[#allocation5 + $0xc0] sm:$0xff]
    %v364 = vld [vmem:[#allocation5 + $0xc8] sm:$0xff]
    %v365 = vld [vmem:[#allocation5 + $0xd0] sm:$0xff]
    %v366 = vld [vmem:[#allocation5 + $0xd8] sm:$0xff]
    %v367 = vld [vmem:[#allocation5 + $0xe0] sm:$0xff]
    %v368 = vld [vmem:[#allocation5 + $0xe8] sm:$0xff]
    %v369 = vld [vmem:[#allocation5 + $0xf0] sm:$0xff]
    %v370 = vld [vmem:[#allocation5 + $0xf8] sm:$0xff]
    %v371 = vld [vmem:[#allocation5 + $0x100] sm:$0xff]
    %v372 = vld [vmem:[#allocation5 + $0x108] sm:$0xff]
    %v373 = vld [vmem:[#allocation5 + $0x110] sm:$0xff]
    %v374 = vld [vmem:[#allocation5 + $0x118] sm:$0xff]
    %v375 = vld [vmem:[#allocation5 + $0x120] sm:$0xff]
    %v376 = vld [vmem:[#allocation5 + $0x128] sm:$0xff]
    %v377 = vld [vmem:[#allocation5 + $0x130] sm:$0xff]
    %v378 = vld [vmem:[#allocation5 + $0x138] sm:$0xff]
    %v379 = vld [vmem:[#allocation5 + $0x140] sm:$0xff]
    %v380 = vld [vmem:[#allocation5 + $0x148] sm:$0xff]
    %v381 = vld [vmem:[#allocation5 + $0x150] sm:$0xff]
    %v382 = vld [vmem:[#allocation5 + $0x158] sm:$0xff]
    %v383 = vld [vmem:[#allocation5 + $0x160] sm:$0xff]
    %v384 = vld [vmem:[#allocation5 + $0x168] sm:$0xff]
    %v385 = vld [vmem:[#allocation5 + $0x170] sm:$0xff]
    %v386 = vld [vmem:[#allocation5 + $0x178] sm:$0xff]
    %v387 = vld [vmem:[#allocation5 + $0x180] sm:$0xff]
    %v388 = vld [vmem:[#allocation5 + $0x188] sm:$0xff]
    %v389 = vld [vmem:[#allocation5 + $0x190] sm:$0xff]
    %v390 = vld [vmem:[#allocation5 + $0x198] sm:$0xff]
    %v391 = vld [vmem:[#allocation5 + $0x1a0] sm:$0xff]
    %v392 = vld [vmem:[#allocation5 + $0x1a8] sm:$0xff]
    %v393 = vld [vmem:[#allocation5 + $0x1b0] sm:$0xff]
    %v394 = vld [vmem:[#allocation5 + $0x1b8] sm:$0xff]
    %v395 = vld [vmem:[#allocation5 + $0x1c0] sm:$0xff]
    %v396 = vld [vmem:[#allocation5 + $0x1c8] sm:$0xff]
    %v397 = vld [vmem:[#allocation5 + $0x1d0] sm:$0xff]
    %v398 = vld [vmem:[#allocation5 + $0x1d8] sm:$0xff]
    %v399 = vld [vmem:[#allocation5 + $0x1e0] sm:$0xff]
    %v400 = vld [vmem:[#allocation5 + $0x1e8] sm:$0xff]
    %v401 = vld [vmem:[#allocation5 + $0x1f0] sm:$0xff]
    %v402 = vld [vmem:[#allocation5 + $0x1f8] sm:$0xff]
    %v403 = vld [vmem:[#allocation5 + $0x200] sm:$0xff]
    %v404 = vld [vmem:[#allocation5 + $0x208] sm:$0xff]
    %v405 = vld [vmem:[#allocation5 + $0x210] sm:$0xff]
    %v406 = vld [vmem:[#allocation5 + $0x218] sm:$0xff]
    %v407 = vld [vmem:[#allocation5 + $0x220] sm:$0xff]
    %v408 = vld [vmem:[#allocation5 + $0x228] sm:$0xff]
    %v409 = vld [vmem:[#allocation5 + $0x230] sm:$0xff]
    %v410 = vld [vmem:[#allocation5 + $0x238] sm:$0xff]
    %v411 = vld [vmem:[#allocation5 + $0x240] sm:$0xff]
    %v412 = vld [vmem:[#allocation5 + $0x248] sm:$0xff]
    %v413 = vld [vmem:[#allocation5 + $0x250] sm:$0xff]
    %v414 = vld [vmem:[#allocation5 + $0x258] sm:$0xff]
    %v415 = vld [vmem:[#allocation5 + $0x260] sm:$0xff]
    %v416 = vld [vmem:[#allocation5 + $0x268] sm:$0xff]
    %v417 = vld [vmem:[#allocation5 + $0x270] sm:$0xff]
    %v418 = vld [vmem:[#allocation5 + $0x278] sm:$0xff]
    %v419 = vld [vmem:[#allocation5 + $0x280] sm:$0xff]
    %v420 = vld [vmem:[#allocation5 + $0x288] sm:$0xff]
    %v421 = vld [vmem:[#allocation5 + $0x290] sm:$0xff]
    %v422 = vld [vmem:[#allocation5 + $0x298] sm:$0xff]
    %v423 = vld [vmem:[#allocation5 + $0x2a0] sm:$0xff]
    %v424 = vld [vmem:[#allocation5 + $0x2a8] sm:$0xff]
    %v425 = vld [vmem:[#allocation5 + $0x2b0] sm:$0xff]
    %v426 = vld [vmem:[#allocation5 + $0x2b8] sm:$0xff]
    %v427 = vld [vmem:[#allocation5 + $0x2c0] sm:$0xff]
    %v428 = vld [vmem:[#allocation5 + $0x2c8] sm:$0xff]
    %v429 = vld [vmem:[#allocation5 + $0x2d0] sm:$0xff]
    %v430 = vld [vmem:[#allocation5 + $0x2d8] sm:$0xff]
    %v431 = vld [vmem:[#allocation5 + $0x2e0] sm:$0xff]
    %v432 = vld [vmem:[#allocation5 + $0x2e8] sm:$0xff]
    %v433 = vld [vmem:[#allocation5 + $0x2f0] sm:$0xff]
    %v434 = vld [vmem:[#allocation5 + $0x2f8] sm:$0xff]
    %v435 = vld [vmem:[#allocation5 + $0x300] sm:$0xff]
    %v436 = vld [vmem:[#allocation5 + $0x308] sm:$0xff]
    %v437 = vld [vmem:[#allocation5 + $0x310] sm:$0xff]
    %v438 = vld [vmem:[#allocation5 + $0x318] sm:$0xff]
    %v439 = vld [vmem:[#allocation5 + $0x320] sm:$0xff]
    %v440 = vld [vmem:[#allocation5 + $0x328] sm:$0xff]
    %v441 = vld [vmem:[#allocation5 + $0x330] sm:$0xff]
    %v442 = vld [vmem:[#allocation5 + $0x338] sm:$0xff]
    %v443 = vld [vmem:[#allocation5 + $0x340] sm:$0xff]
    %v444 = vld [vmem:[#allocation5 + $0x348] sm:$0xff]
    %v445 = vld [vmem:[#allocation5 + $0x350] sm:$0xff]
    %v446 = vld [vmem:[#allocation5 + $0x358] sm:$0xff]
    %v447 = vld [vmem:[#allocation5 + $0x360] sm:$0xff]
    %v448 = vld [vmem:[#allocation5 + $0x368] sm:$0xff]
    %v449 = vld [vmem:[#allocation5 + $0x370] sm:$0xff]
    %v450 = vld [vmem:[#allocation5 + $0x378] sm:$0xff]
    %v451 = vld [vmem:[#allocation5 + $0x380] sm:$0xff]
    %v452 = vld [vmem:[#allocation5 + $0x388] sm:$0xff]
    %v453 = vld [vmem:[#allocation5 + $0x390] sm:$0xff]
    %v454 = vld [vmem:[#allocation5 + $0x398] sm:$0xff]
    %v455 = vld [vmem:[#allocation5 + $0x3a0] sm:$0xff]
    %v456 = vld [vmem:[#allocation5 + $0x3a8] sm:$0xff]
    %v457 = vld [vmem:[#allocation5 + $0x3b0] sm:$0xff]
    %v458 = vld [vmem:[#allocation5 + $0x3b8] sm:$0xff]
    %v459 = vld [vmem:[#allocation5 + $0x3c0] sm:$0xff]
    %v460 = vld [vmem:[#allocation5 + $0x3c8] sm:$0xff]
    %v461 = vld [vmem:[#allocation5 + $0x3d0] sm:$0xff]
    %v462 = vld [vmem:[#allocation5 + $0x3d8] sm:$0xff]
    %v463 = vld [vmem:[#allocation5 + $0x3e0] sm:$0xff]
    %v464 = vld [vmem:[#allocation5 + $0x3e8] sm:$0xff]
    %v465 = vld [vmem:[#allocation5 + $0x3f0] sm:$0xff]
    %v466 = vld [vmem:[#allocation5 + $0x3f8] sm:$0xff]
    %v467 = vld [vmem:[#allocation5 + $0x400] sm:$0xff]
    %v468 = vld [vmem:[#allocation5 + $0x408] sm:$0xff]
    %v469 = vld [vmem:[#allocation5 + $0x410] sm:$0xff]
    %v470 = vld [vmem:[#allocation5 + $0x418] sm:$0xff]
    %v471 = vld [vmem:[#allocation5 + $0x420] sm:$0xff]
    %v472 = vld [vmem:[#allocation5 + $0x428] sm:$0xff]
    %v473 = vld [vmem:[#allocation5 + $0x430] sm:$0xff]
    %v474 = vld [vmem:[#allocation5 + $0x438] sm:$0xff]
    %v477 = vunpack.c.l.b16 %v337
    %v478 = vunpack.c.l.b16 %v338
    %v479 = vpack.c.b16 %v478, %v477
    %v616 = vunpack.c.l.b16 %v339
    %v617 = vunpack.c.h.b16 %v339
    %v618 = vunpack.c.l.b16 %v340
    %v619 = vunpack.c.h.b16 %v340
    %v620 = vunpack.c.l.b16 %v341
    %v621 = vunpack.c.h.b16 %v341
    %v622 = vunpack.c.l.b16 %v342
    %v623 = vunpack.c.h.b16 %v342
    %v624 = vunpack.c.l.b16 %v343
    %v625 = vunpack.c.h.b16 %v343
    %v626 = vunpack.c.l.b16 %v344
    %v627 = vunpack.c.h.b16 %v344
    %v628 = vunpack.c.l.b16 %v345
    %v629 = vunpack.c.h.b16 %v345
    %v630 = vunpack.c.l.b16 %v346
    %v631 = vunpack.c.h.b16 %v346
    %v632 = vunpack.c.l.b16 %v347
    %v633 = vunpack.c.h.b16 %v347
    %v634 = vunpack.c.l.b16 %v348
    %v635 = vunpack.c.h.b16 %v348
    %v636 = vunpack.c.l.b16 %v349
    %v637 = vunpack.c.h.b16 %v349
    %v638 = vunpack.c.l.b16 %v350
    %v639 = vunpack.c.h.b16 %v350
    %v640 = vunpack.c.l.b16 %v351
    %v641 = vunpack.c.h.b16 %v351
    %v642 = vunpack.c.l.b16 %v352
    %v643 = vunpack.c.h.b16 %v352
    %v644 = vunpack.c.l.b16 %v353
    %v645 = vunpack.c.h.b16 %v353
    %v646 = vunpack.c.l.b16 %v354
    %v647 = vunpack.c.h.b16 %v354
    %v648 = vunpack.c.l.b16 %v355
    %v649 = vunpack.c.h.b16 %v355
    %v650 = vunpack.c.l.b16 %v356
    %v651 = vunpack.c.h.b16 %v356
    %v652 = vunpack.c.l.b16 %v357
    %v653 = vunpack.c.h.b16 %v357
    %v654 = vunpack.c.l.b16 %v358
    %v655 = vunpack.c.h.b16 %v358
    %v656 = vunpack.c.l.b16 %v359
    %v657 = vunpack.c.h.b16 %v359
    %v658 = vunpack.c.l.b16 %v360
    %v659 = vunpack.c.h.b16 %v360
    %v660 = vunpack.c.l.b16 %v361
    %v661 = vunpack.c.h.b16 %v361
    %v662 = vunpack.c.l.b16 %v362
    %v663 = vunpack.c.h.b16 %v362
    %v664 = vunpack.c.l.b16 %v363
    %v665 = vunpack.c.h.b16 %v363
    %v666 = vunpack.c.l.b16 %v364
    %v667 = vunpack.c.h.b16 %v364
    %v668 = vunpack.c.l.b16 %v365
    %v669 = vunpack.c.h.b16 %v365
    %v670 = vunpack.c.l.b16 %v366
    %v671 = vunpack.c.h.b16 %v366
    %v672 = vunpack.c.l.b16 %v367
    %v673 = vunpack.c.h.b16 %v367
    %v674 = vunpack.c.l.b16 %v368
    %v675 = vunpack.c.h.b16 %v368
    %v676 = vunpack.c.l.b16 %v369
    %v677 = vunpack.c.h.b16 %v369
    %v678 = vunpack.c.l.b16 %v370
    %v679 = vunpack.c.h.b16 %v370
    %v680 = vunpack.c.l.b16 %v371
    %v681 = vunpack.c.h.b16 %v371
    %v682 = vunpack.c.l.b16 %v372
    %v683 = vunpack.c.h.b16 %v372
    %v684 = vunpack.c.l.b16 %v373
    %v685 = vunpack.c.h.b16 %v373
    %v686 = vunpack.c.l.b16 %v374
    %v687 = vunpack.c.h.b16 %v374
    %v688 = vunpack.c.l.b16 %v375
    %v689 = vunpack.c.h.b16 %v375
    %v690 = vunpack.c.l.b16 %v376
    %v691 = vunpack.c.h.b16 %v376
    %v692 = vunpack.c.l.b16 %v377
    %v693 = vunpack.c.h.b16 %v377
    %v694 = vunpack.c.l.b16 %v378
    %v695 = vunpack.c.h.b16 %v378
    %v696 = vunpack.c.l.b16 %v379
    %v697 = vunpack.c.h.b16 %v379
    %v698 = vunpack.c.l.b16 %v380
    %v699 = vunpack.c.h.b16 %v380
    %v700 = vunpack.c.l.b16 %v381
    %v701 = vunpack.c.h.b16 %v381
    %v702 = vunpack.c.l.b16 %v382
    %v703 = vunpack.c.h.b16 %v382
    %v704 = vunpack.c.l.b16 %v383
    %v705 = vunpack.c.h.b16 %v383
    %v706 = vunpack.c.l.b16 %v384
    %v707 = vunpack.c.h.b16 %v384
    %v708 = vunpack.c.l.b16 %v385
    %v709 = vunpack.c.h.b16 %v385
    %v710 = vunpack.c.l.b16 %v386
    %v711 = vunpack.c.h.b16 %v386
    %v712 = vunpack.c.l.b16 %v387
    %v713 = vunpack.c.h.b16 %v387
    %v714 = vunpack.c.l.b16 %v388
    %v715 = vunpack.c.h.b16 %v388
    %v716 = vunpack.c.l.b16 %v389
    %v717 = vunpack.c.h.b16 %v389
    %v718 = vunpack.c.l.b16 %v390
    %v719 = vunpack.c.h.b16 %v390
    %v720 = vunpack.c.l.b16 %v391
    %v721 = vunpack.c.h.b16 %v391
    %v722 = vunpack.c.l.b16 %v392
    %v723 = vunpack.c.h.b16 %v392
    %v724 = vunpack.c.l.b16 %v393
    %v725 = vunpack.c.h.b16 %v393
    %v726 = vunpack.c.l.b16 %v394
    %v727 = vunpack.c.h.b16 %v394
    %v728 = vunpack.c.l.b16 %v395
    %v729 = vunpack.c.h.b16 %v395
    %v730 = vunpack.c.l.b16 %v396
    %v731 = vunpack.c.h.b16 %v396
    %v732 = vunpack.c.l.b16 %v397
    %v733 = vunpack.c.h.b16 %v397
    %v734 = vunpack.c.l.b16 %v398
    %v735 = vunpack.c.h.b16 %v398
    %v736 = vunpack.c.l.b16 %v399
    %v737 = vunpack.c.h.b16 %v399
    %v738 = vunpack.c.l.b16 %v400
    %v739 = vunpack.c.h.b16 %v400
    %v740 = vunpack.c.l.b16 %v401
    %v741 = vunpack.c.h.b16 %v401
    %v742 = vunpack.c.l.b16 %v402
    %v743 = vunpack.c.h.b16 %v402
    %v744 = vunpack.c.l.b16 %v403
    %v745 = vunpack.c.h.b16 %v403
    %v746 = vunpack.c.l.b16 %v404
    %v747 = vunpack.c.h.b16 %v404
    %v748 = vunpack.c.l.b16 %v405
    %v749 = vunpack.c.h.b16 %v405
    %v750 = vunpack.c.l.b16 %v406
    %v751 = vunpack.c.h.b16 %v406
    %v752 = vunpack.c.l.b16 %v407
    %v753 = vunpack.c.h.b16 %v407
    %v754 = vunpack.c.l.b16 %v408
    %v755 = vunpack.c.h.b16 %v408
    %v756 = vunpack.c.l.b16 %v409
    %v757 = vunpack.c.h.b16 %v409
    %v758 = vunpack.c.l.b16 %v410
    %v759 = vunpack.c.h.b16 %v410
    %v760 = vunpack.c.l.b16 %v411
    %v761 = vunpack.c.h.b16 %v411
    %v762 = vunpack.c.l.b16 %v412
    %v763 = vunpack.c.h.b16 %v412
    %v764 = vunpack.c.l.b16 %v413
    %v765 = vunpack.c.h.b16 %v413
    %v766 = vunpack.c.l.b16 %v414
    %v767 = vunpack.c.h.b16 %v414
    %v768 = vunpack.c.l.b16 %v415
    %v769 = vunpack.c.h.b16 %v415
    %v770 = vunpack.c.l.b16 %v416
    %v771 = vunpack.c.h.b16 %v416
    %v772 = vunpack.c.l.b16 %v417
    %v773 = vunpack.c.h.b16 %v417
    %v774 = vunpack.c.l.b16 %v418
    %v775 = vunpack.c.h.b16 %v418
    %v776 = vunpack.c.l.b16 %v419
    %v777 = vunpack.c.h.b16 %v419
    %v778 = vunpack.c.l.b16 %v420
    %v779 = vunpack.c.h.b16 %v420
    %v780 = vunpack.c.l.b16 %v421
    %v781 = vunpack.c.h.b16 %v421
    %v782 = vunpack.c.l.b16 %v422
    %v783 = vunpack.c.h.b16 %v422
    %v784 = vunpack.c.l.b16 %v423
    %v785 = vunpack.c.h.b16 %v423
    %v786 = vunpack.c.l.b16 %v424
    %v787 = vunpack.c.h.b16 %v424
    %v788 = vunpack.c.l.b16 %v425
    %v789 = vunpack.c.h.b16 %v425
    %v790 = vunpack.c.l.b16 %v426
    %v791 = vunpack.c.h.b16 %v426
    %v792 = vunpack.c.l.b16 %v427
    %v793 = vunpack.c.h.b16 %v427
    %v794 = vunpack.c.l.b16 %v428
    %v795 = vunpack.c.h.b16 %v428
    %v796 = vunpack.c.l.b16 %v429
    %v797 = vunpack.c.h.b16 %v429
    %v798 = vunpack.c.l.b16 %v430
    %v799 = vunpack.c.h.b16 %v430
    %v800 = vunpack.c.l.b16 %v431
    %v801 = vunpack.c.h.b16 %v431
    %v802 = vunpack.c.l.b16 %v432
    %v803 = vunpack.c.h.b16 %v432
    %v804 = vunpack.c.l.b16 %v433
    %v805 = vunpack.c.h.b16 %v433
    %v806 = vunpack.c.l.b16 %v434
    %v807 = vunpack.c.h.b16 %v434
    %v808 = vunpack.c.l.b16 %v435
    %v809 = vunpack.c.h.b16 %v435
    %v810 = vunpack.c.l.b16 %v436
    %v811 = vunpack.c.h.b16 %v436
    %v812 = vunpack.c.l.b16 %v437
    %v813 = vunpack.c.h.b16 %v437
    %v814 = vunpack.c.l.b16 %v438
    %v815 = vunpack.c.h.b16 %v438
    %v816 = vunpack.c.l.b16 %v439
    %v817 = vunpack.c.h.b16 %v439
    %v818 = vunpack.c.l.b16 %v440
    %v819 = vunpack.c.h.b16 %v440
    %v820 = vunpack.c.l.b16 %v441
    %v821 = vunpack.c.h.b16 %v441
    %v822 = vunpack.c.l.b16 %v442
    %v823 = vunpack.c.h.b16 %v442
    %v824 = vunpack.c.l.b16 %v443
    %v825 = vunpack.c.h.b16 %v443
    %v826 = vunpack.c.l.b16 %v444
    %v827 = vunpack.c.h.b16 %v444
    %v828 = vunpack.c.l.b16 %v445
    %v829 = vunpack.c.h.b16 %v445
    %v830 = vunpack.c.l.b16 %v446
    %v831 = vunpack.c.h.b16 %v446
    %v832 = vunpack.c.l.b16 %v447
    %v833 = vunpack.c.h.b16 %v447
    %v834 = vunpack.c.l.b16 %v448
    %v835 = vunpack.c.h.b16 %v448
    %v836 = vunpack.c.l.b16 %v449
    %v837 = vunpack.c.h.b16 %v449
    %v838 = vunpack.c.l.b16 %v450
    %v839 = vunpack.c.h.b16 %v450
    %v840 = vunpack.c.l.b16 %v451
    %v841 = vunpack.c.h.b16 %v451
    %v842 = vunpack.c.l.b16 %v452
    %v843 = vunpack.c.h.b16 %v452
    %v844 = vunpack.c.l.b16 %v453
    %v845 = vunpack.c.h.b16 %v453
    %v846 = vunpack.c.l.b16 %v454
    %v847 = vunpack.c.h.b16 %v454
    %v848 = vunpack.c.l.b16 %v455
    %v849 = vunpack.c.h.b16 %v455
    %v850 = vunpack.c.l.b16 %v456
    %v851 = vunpack.c.h.b16 %v456
    %v852 = vunpack.c.l.b16 %v457
    %v853 = vunpack.c.h.b16 %v457
    %v854 = vunpack.c.l.b16 %v458
    %v855 = vunpack.c.h.b16 %v458
    %v856 = vunpack.c.l.b16 %v459
    %v857 = vunpack.c.h.b16 %v459
    %v858 = vunpack.c.l.b16 %v460
    %v859 = vunpack.c.h.b16 %v460
    %v860 = vunpack.c.l.b16 %v461
    %v861 = vunpack.c.h.b16 %v461
    %v862 = vunpack.c.l.b16 %v462
    %v863 = vunpack.c.h.b16 %v462
    %v864 = vunpack.c.l.b16 %v463
    %v865 = vunpack.c.h.b16 %v463
    %v866 = vunpack.c.l.b16 %v464
    %v867 = vunpack.c.h.b16 %v464
    %v868 = vunpack.c.l.b16 %v465
    %v869 = vunpack.c.h.b16 %v465
    %v870 = vunpack.c.l.b16 %v466
    %v871 = vunpack.c.h.b16 %v466
    %v872 = vunpack.c.l.b16 %v467
    %v873 = vunpack.c.h.b16 %v467
    %v874 = vunpack.c.l.b16 %v468
    %v875 = vunpack.c.h.b16 %v468
    %v876 = vunpack.c.l.b16 %v469
    %v877 = vunpack.c.h.b16 %v469
    %v878 = vunpack.c.l.b16 %v470
    %v879 = vunpack.c.h.b16 %v470
    %v880 = vunpack.c.l.b16 %v471
    %v881 = vunpack.c.h.b16 %v471
    %v882 = vunpack.c.l.b16 %v472
    %v883 = vunpack.c.h.b16 %v472
    %v884 = vunpack.c.l.b16 %v473
    %v885 = vunpack.c.h.b16 %v473
    %v886 = vunpack.c.l.b16 %v474
    %v887 = vunpack.c.h.b16 %v474
    %v888 = vpack.c.b16 %v684, %v616
    %v889 = vpack.c.b16 %v685, %v617
    %v890 = vpack.c.b16 %v686, %v618
    %v891 = vpack.c.b16 %v687, %v619
    %v892 = vpack.c.b16 %v688, %v620
    %v893 = vpack.c.b16 %v689, %v621
    %v894 = vpack.c.b16 %v690, %v622
    %v895 = vpack.c.b16 %v691, %v623
    %v896 = vpack.c.b16 %v692, %v624
    %v897 = vpack.c.b16 %v693, %v625
    %v898 = vpack.c.b16 %v694, %v626
    %v899 = vpack.c.b16 %v695, %v627
    %v900 = vpack.c.b16 %v696, %v628
    %v901 = vpack.c.b16 %v697, %v629
    %v902 = vpack.c.b16 %v698, %v630
    %v903 = vpack.c.b16 %v699, %v631
    %v904 = vpack.c.b16 %v700, %v632
    %v905 = vpack.c.b16 %v701, %v633
    %v906 = vpack.c.b16 %v702, %v634
    %v907 = vpack.c.b16 %v703, %v635
    %v908 = vpack.c.b16 %v704, %v636
    %v909 = vpack.c.b16 %v705, %v637
    %v910 = vpack.c.b16 %v706, %v638
    %v911 = vpack.c.b16 %v707, %v639
    %v912 = vpack.c.b16 %v708, %v640
    %v913 = vpack.c.b16 %v709, %v641
    %v914 = vpack.c.b16 %v710, %v642
    %v915 = vpack.c.b16 %v711, %v643
    %v916 = vpack.c.b16 %v712, %v644
    %v917 = vpack.c.b16 %v713, %v645
    %v918 = vpack.c.b16 %v714, %v646
    %v919 = vpack.c.b16 %v715, %v647
    %v920 = vpack.c.b16 %v716, %v648
    %v921 = vpack.c.b16 %v717, %v649
    %v922 = vpack.c.b16 %v718, %v650
    %v923 = vpack.c.b16 %v719, %v651
    %v924 = vpack.c.b16 %v720, %v652
    %v925 = vpack.c.b16 %v721, %v653
    %v926 = vpack.c.b16 %v722, %v654
    %v927 = vpack.c.b16 %v723, %v655
    %v928 = vpack.c.b16 %v724, %v656
    %v929 = vpack.c.b16 %v725, %v657
    %v930 = vpack.c.b16 %v726, %v658
    %v931 = vpack.c.b16 %v727, %v659
    %v932 = vpack.c.b16 %v728, %v660
    %v933 = vpack.c.b16 %v729, %v661
    %v934 = vpack.c.b16 %v730, %v662
    %v935 = vpack.c.b16 %v731, %v663
    %v936 = vpack.c.b16 %v732, %v664
    %v937 = vpack.c.b16 %v733, %v665
    %v938 = vpack.c.b16 %v734, %v666
    %v939 = vpack.c.b16 %v735, %v667
    %v940 = vpack.c.b16 %v736, %v668
    %v941 = vpack.c.b16 %v737, %v669
    %v942 = vpack.c.b16 %v738, %v670
    %v943 = vpack.c.b16 %v739, %v671
    %v944 = vpack.c.b16 %v740, %v672
    %v945 = vpack.c.b16 %v741, %v673
    %v946 = vpack.c.b16 %v742, %v674
    %v947 = vpack.c.b16 %v743, %v675
    %v948 = vpack.c.b16 %v744, %v676
    %v949 = vpack.c.b16 %v745, %v677
    %v950 = vpack.c.b16 %v746, %v678
    %v951 = vpack.c.b16 %v747, %v679
    %v952 = vpack.c.b16 %v748, %v680
    %v953 = vpack.c.b16 %v749, %v681
    %v954 = vpack.c.b16 %v750, %v682
    %v955 = vpack.c.b16 %v751, %v683
    %v956 = vpack.c.b16 %v820, %v752
    %v957 = vpack.c.b16 %v821, %v753
    %v958 = vpack.c.b16 %v822, %v754
    %v959 = vpack.c.b16 %v823, %v755
    %v960 = vpack.c.b16 %v824, %v756
    %v961 = vpack.c.b16 %v825, %v757
    %v962 = vpack.c.b16 %v826, %v758
    %v963 = vpack.c.b16 %v827, %v759
    %v964 = vpack.c.b16 %v828, %v760
    %v965 = vpack.c.b16 %v829, %v761
    %v966 = vpack.c.b16 %v830, %v762
    %v967 = vpack.c.b16 %v831, %v763
    %v968 = vpack.c.b16 %v832, %v764
    %v969 = vpack.c.b16 %v833, %v765
    %v970 = vpack.c.b16 %v834, %v766
    %v971 = vpack.c.b16 %v835, %v767
    %v972 = vpack.c.b16 %v836, %v768
    %v973 = vpack.c.b16 %v837, %v769
    %v974 = vpack.c.b16 %v838, %v770
    %v975 = vpack.c.b16 %v839, %v771
    %v976 = vpack.c.b16 %v840, %v772
    %v977 = vpack.c.b16 %v841, %v773
    %v978 = vpack.c.b16 %v842, %v774
    %v979 = vpack.c.b16 %v843, %v775
    %v980 = vpack.c.b16 %v844, %v776
    %v981 = vpack.c.b16 %v845, %v777
    %v982 = vpack.c.b16 %v846, %v778
    %v983 = vpack.c.b16 %v847, %v779
    %v984 = vpack.c.b16 %v848, %v780
    %v985 = vpack.c.b16 %v849, %v781
    %v986 = vpack.c.b16 %v850, %v782
    %v987 = vpack.c.b16 %v851, %v783
    %v988 = vpack.c.b16 %v852, %v784
    %v989 = vpack.c.b16 %v853, %v785
    %v990 = vpack.c.b16 %v854, %v786
    %v991 = vpack.c.b16 %v855, %v787
    %v992 = vpack.c.b16 %v856, %v788
    %v993 = vpack.c.b16 %v857, %v789
    %v994 = vpack.c.b16 %v858, %v790
    %v995 = vpack.c.b16 %v859, %v791
    %v996 = vpack.c.b16 %v860, %v792
    %v997 = vpack.c.b16 %v861, %v793
    %v998 = vpack.c.b16 %v862, %v794
    %v999 = vpack.c.b16 %v863, %v795
    %v1000 = vpack.c.b16 %v864, %v796
    %v1001 = vpack.c.b16 %v865, %v797
    %v1002 = vpack.c.b16 %v866, %v798
    %v1003 = vpack.c.b16 %v867, %v799
    %v1004 = vpack.c.b16 %v868, %v800
    %v1005 = vpack.c.b16 %v869, %v801
    %v1006 = vpack.c.b16 %v870, %v802
    %v1007 = vpack.c.b16 %v871, %v803
    %v1008 = vpack.c.b16 %v872, %v804
    %v1009 = vpack.c.b16 %v873, %v805
    %v1010 = vpack.c.b16 %v874, %v806
    %v1011 = vpack.c.b16 %v875, %v807
    %v1012 = vpack.c.b16 %v876, %v808
    %v1013 = vpack.c.b16 %v877, %v809
    %v1014 = vpack.c.b16 %v878, %v810
    %v1015 = vpack.c.b16 %v879, %v811
    %v1016 = vpack.c.b16 %v880, %v812
    %v1017 = vpack.c.b16 %v881, %v813
    %v1018 = vpack.c.b16 %v882, %v814
    %v1019 = vpack.c.b16 %v883, %v815
    %v1020 = vpack.c.b16 %v884, %v816
    %v1021 = vpack.c.b16 %v885, %v817
    %v1022 = vpack.c.b16 %v886, %v818
    %v1023 = vpack.c.b16 %v887, %v819
    %vm1160 = vcmask 261120
    %v1162 = vsel %vm1160, %v479, 0
    %1164 = vmatpush.bf16.msra.mxu0 0
    %1165 = vmatpush.bf16.msra.mxu0 0
    %1166 = vmatpush.bf16.msra.mxu0 0
    %1167 = vmatpush.bf16.msra.mxu0 0
    %1168 = vmatpush.bf16.msra.mxu0 0
    %1169 = vmatpush.bf16.msra.mxu0 0
    %1170 = vmatpush.bf16.msra.mxu0 %v956
    %1171 = vmatpush.bf16.msra.mxu0 %v888
    %1172 = vmatmul.bf16.gmra.mxu0 %v1162
    %v1173 = vpop.f32.mrf.mxu0
    %v1174 = vadd.f32 0.0, %v1173
    %v1175 = vpop.f32.mrf.mxu0
    %v1176 = vadd.f32 0.0, %v1175
    %1177 = vdwg.mxu0
    %1178 = vmatpush.bf16.msra.mxu0 0
    %1179 = vmatpush.bf16.msra.mxu0 0
    %1180 = vmatpush.bf16.msra.mxu0 0
    %1181 = vmatpush.bf16.msra.mxu0 0
    %1182 = vmatpush.bf16.msra.mxu0 0
    %1183 = vmatpush.bf16.msra.mxu0 0
    %1184 = vmatpush.bf16.msra.mxu0 %v957
    %1185 = vmatpush.bf16.msra.mxu0 %v889
    %1186 = vmatmul.bf16.gmra.mxu0 %v1162
    %v1187 = vpop.f32.mrf.mxu0
    %v1188 = vadd.f32 0.0, %v1187
    %v1189 = vpop.f32.mrf.mxu0
    %v1190 = vadd.f32 0.0, %v1189
    %1191 = vdwg.mxu0
    %1192 = vmatpush.bf16.msra.mxu0 0
    %1193 = vmatpush.bf16.msra.mxu0 0
    %1194 = vmatpush.bf16.msra.mxu0 0
    %1195 = vmatpush.bf16.msra.mxu0 0
    %1196 = vmatpush.bf16.msra.mxu0 0
    %1197 = vmatpush.bf16.msra.mxu0 0
    %1198 = vmatpush.bf16.msra.mxu0 %v958
    %1199 = vmatpush.bf16.msra.mxu0 %v890
    %1200 = vmatmul.bf16.gmra.mxu0 %v1162
    %v1201 = vpop.f32.mrf.mxu0
    %v1202 = vadd.f32 0.0, %v1201
    %v1203 = vpop.f32.mrf.mxu0
    %v1204 = vadd.f32 0.0, %v1203
    %1205 = vdwg.mxu0
    %1206 = vmatpush.bf16.msra.mxu0 0
    %1207 = vmatpush.bf16.msra.mxu0 0
    %1208 = vmatpush.bf16.msra.mxu0 0
    %1209 = vmatpush.bf16.msra.mxu0 0
    %1210 = vmatpush.bf16.msra.mxu0 0
    %1211 = vmatpush.bf16.msra.mxu0 0
    %1212 = vmatpush.bf16.msra.mxu0 %v959
    %1213 = vmatpush.bf16.msra.mxu0 %v891
    %1214 = vmatmul.bf16.gmra.mxu0 %v1162
    %v1215 = vpop.f32.mrf.mxu0
    %v1216 = vadd.f32 0.0, %v1215
    %v1217 = vpop.f32.mrf.mxu0
    %v1218 = vadd.f32 0.0, %v1217
    %1219 = vdwg.mxu0
    %1220 = vmatpush.bf16.msra.mxu0 0
    %1221 = vmatpush.bf16.msra.mxu0 0
    %1222 = vmatpush.bf16.msra.mxu0 0
    %1223 = vmatpush.bf16.msra.mxu0 0
    %1224 = vmatpush.bf16.msra.mxu0 0
    %1225 = vmatpush.bf16.msra.mxu0 0
    %1226 = vmatpush.bf16.msra.mxu0 %v960
    %1227 = vmatpush.bf16.msra.mxu0 %v892
    %1228 = vmatmul.bf16.gmra.mxu0 %v1162
    %v1229 = vpop.f32.mrf.mxu0
    %v1230 = vadd.f32 0.0, %v1229
    %v1231 = vpop.f32.mrf.mxu0
    %v1232 = vadd.f32 0.0, %v1231
    %1233 = vdwg.mxu0
    %1234 = vmatpush.bf16.msra.mxu0 0
    %1235 = vmatpush.bf16.msra.mxu0 0
    %1236 = vmatpush.bf16.msra.mxu0 0
    %1237 = vmatpush.bf16.msra.mxu0 0
    %1238 = vmatpush.bf16.msra.mxu0 0
    %1239 = vmatpush.bf16.msra.mxu0 0
    %1240 = vmatpush.bf16.msra.mxu0 %v961
    %1241 = vmatpush.bf16.msra.mxu0 %v893
    %1242 = vmatmul.bf16.gmra.mxu0 %v1162
    %v1243 = vpop.f32.mrf.mxu0
    %v1244 = vadd.f32 0.0, %v1243
    %v1245 = vpop.f32.mrf.mxu0
    %v1246 = vadd.f32 0.0, %v1245
    %1247 = vdwg.mxu0
    %1248 = vmatpush.bf16.msra.mxu0 0
    %1249 = vmatpush.bf16.msra.mxu0 0
    %1250 = vmatpush.bf16.msra.mxu0 0
    %1251 = vmatpush.bf16.msra.mxu0 0
    %1252 = vmatpush.bf16.msra.mxu0 0
    %1253 = vmatpush.bf16.msra.mxu0 0
    %1254 = vmatpush.bf16.msra.mxu0 %v962
    %1255 = vmatpush.bf16.msra.mxu0 %v894
    %1256 = vmatmul.bf16.gmra.mxu0 %v1162
    %v1257 = vpop.f32.mrf.mxu0
    %v1258 = vadd.f32 0.0, %v1257
    %v1259 = vpop.f32.mrf.mxu0
    %v1260 = vadd.f32 0.0, %v1259
    %1261 = vdwg.mxu0
    %1262 = vmatpush.bf16.msra.mxu0 0
    %1263 = vmatpush.bf16.msra.mxu0 0
    %1264 = vmatpush.bf16.msra.mxu0 0
    %1265 = vmatpush.bf16.msra.mxu0 0
    %1266 = vmatpush.bf16.msra.mxu0 0
    %1267 = vmatpush.bf16.msra.mxu0 0
    %1268 = vmatpush.bf16.msra.mxu0 %v963
    %1269 = vmatpush.bf16.msra.mxu0 %v895
    %1270 = vmatmul.bf16.gmra.mxu0 %v1162
    %v1271 = vpop.f32.mrf.mxu0
    %v1272 = vadd.f32 0.0, %v1271
    %v1273 = vpop.f32.mrf.mxu0
    %v1274 = vadd.f32 0.0, %v1273
    %1275 = vdwg.mxu0
    %1276 = vmatpush.bf16.msra.mxu0 0
    %1277 = vmatpush.bf16.msra.mxu0 0
    %1278 = vmatpush.bf16.msra.mxu0 0
    %1279 = vmatpush.bf16.msra.mxu0 0
    %1280 = vmatpush.bf16.msra.mxu0 0
    %1281 = vmatpush.bf16.msra.mxu0 0
    %1282 = vmatpush.bf16.msra.mxu0 %v964
    %1283 = vmatpush.bf16.msra.mxu0 %v896
    %1284 = vmatmul.bf16.gmra.mxu0 %v1162
    %v1285 = vpop.f32.mrf.mxu0
    %v1286 = vadd.f32 0.0, %v1285
    %v1287 = vpop.f32.mrf.mxu0
    %v1288 = vadd.f32 0.0, %v1287
    %1289 = vdwg.mxu0
    %1290 = vmatpush.bf16.msra.mxu0 0
    %1291 = vmatpush.bf16.msra.mxu0 0
    %1292 = vmatpush.bf16.msra.mxu0 0
    %1293 = vmatpush.bf16.msra.mxu0 0
    %1294 = vmatpush.bf16.msra.mxu0 0
    %1295 = vmatpush.bf16.msra.mxu0 0
    %1296 = vmatpush.bf16.msra.mxu0 %v965
    %1297 = vmatpush.bf16.msra.mxu0 %v897
    %1298 = vmatmul.bf16.gmra.mxu0 %v1162
    %v1299 = vpop.f32.mrf.mxu0
    %v1300 = vadd.f32 0.0, %v1299
    %v1301 = vpop.f32.mrf.mxu0
    %v1302 = vadd.f32 0.0, %v1301
    %1303 = vdwg.mxu0
    %1304 = vmatpush.bf16.msra.mxu0 0
    %1305 = vmatpush.bf16.msra.mxu0 0
    %1306 = vmatpush.bf16.msra.mxu0 0
    %1307 = vmatpush.bf16.msra.mxu0 0
    %1308 = vmatpush.bf16.msra.mxu0 0
    %1309 = vmatpush.bf16.msra.mxu0 0
    %1310 = vmatpush.bf16.msra.mxu0 %v966
    %1311 = vmatpush.bf16.msra.mxu0 %v898
    %1312 = vmatmul.bf16.gmra.mxu0 %v1162
    %v1313 = vpop.f32.mrf.mxu0
    %v1314 = vadd.f32 0.0, %v1313
    %v1315 = vpop.f32.mrf.mxu0
    %v1316 = vadd.f32 0.0, %v1315
    %1317 = vdwg.mxu0
    %1318 = vmatpush.bf16.msra.mxu0 0
    %1319 = vmatpush.bf16.msra.mxu0 0
    %1320 = vmatpush.bf16.msra.mxu0 0
    %1321 = vmatpush.bf16.msra.mxu0 0
    %1322 = vmatpush.bf16.msra.mxu0 0
    %1323 = vmatpush.bf16.msra.mxu0 0
    %1324 = vmatpush.bf16.msra.mxu0 %v967
    %1325 = vmatpush.bf16.msra.mxu0 %v899
    %1326 = vmatmul.bf16.gmra.mxu0 %v1162
    %v1327 = vpop.f32.mrf.mxu0
    %v1328 = vadd.f32 0.0, %v1327
    %v1329 = vpop.f32.mrf.mxu0
    %v1330 = vadd.f32 0.0, %v1329
    %1331 = vdwg.mxu0
    %1332 = vmatpush.bf16.msra.mxu0 0
    %1333 = vmatpush.bf16.msra.mxu0 0
    %1334 = vmatpush.bf16.msra.mxu0 0
    %1335 = vmatpush.bf16.msra.mxu0 0
    %1336 = vmatpush.bf16.msra.mxu0 0
    %1337 = vmatpush.bf16.msra.mxu0 0
    %1338 = vmatpush.bf16.msra.mxu0 %v968
    %1339 = vmatpush.bf16.msra.mxu0 %v900
    %1340 = vmatmul.bf16.gmra.mxu0 %v1162
    %v1341 = vpop.f32.mrf.mxu0
    %v1342 = vadd.f32 0.0, %v1341
    %v1343 = vpop.f32.mrf.mxu0
    %v1344 = vadd.f32 0.0, %v1343
    %1345 = vdwg.mxu0
    %1346 = vmatpush.bf16.msra.mxu0 0
    %1347 = vmatpush.bf16.msra.mxu0 0
    %1348 = vmatpush.bf16.msra.mxu0 0
    %1349 = vmatpush.bf16.msra.mxu0 0
    %1350 = vmatpush.bf16.msra.mxu0 0
    %1351 = vmatpush.bf16.msra.mxu0 0
    %1352 = vmatpush.bf16.msra.mxu0 %v969
    %1353 = vmatpush.bf16.msra.mxu0 %v901
    %1354 = vmatmul.bf16.gmra.mxu0 %v1162
    %v1355 = vpop.f32.mrf.mxu0
    %v1356 = vadd.f32 0.0, %v1355
    %v1357 = vpop.f32.mrf.mxu0
    %v1358 = vadd.f32 0.0, %v1357
    %1359 = vdwg.mxu0
    %1360 = vmatpush.bf16.msra.mxu0 0
    %1361 = vmatpush.bf16.msra.mxu0 0
    %1362 = vmatpush.bf16.msra.mxu0 0
    %1363 = vmatpush.bf16.msra.mxu0 0
    %1364 = vmatpush.bf16.msra.mxu0 0
    %1365 = vmatpush.bf16.msra.mxu0 0
    %1366 = vmatpush.bf16.msra.mxu0 %v970
    %1367 = vmatpush.bf16.msra.mxu0 %v902
    %1368 = vmatmul.bf16.gmra.mxu0 %v1162
    %v1369 = vpop.f32.mrf.mxu0
    %v1370 = vadd.f32 0.0, %v1369
    %v1371 = vpop.f32.mrf.mxu0
    %v1372 = vadd.f32 0.0, %v1371
    %1373 = vdwg.mxu0
    %1374 = vmatpush.bf16.msra.mxu0 0
    %1375 = vmatpush.bf16.msra.mxu0 0
    %1376 = vmatpush.bf16.msra.mxu0 0
    %1377 = vmatpush.bf16.msra.mxu0 0
    %1378 = vmatpush.bf16.msra.mxu0 0
    %1379 = vmatpush.bf16.msra.mxu0 0
    %1380 = vmatpush.bf16.msra.mxu0 %v971
    %1381 = vmatpush.bf16.msra.mxu0 %v903
    %1382 = vmatmul.bf16.gmra.mxu0 %v1162
    %v1383 = vpop.f32.mrf.mxu0
    %v1384 = vadd.f32 0.0, %v1383
    %v1385 = vpop.f32.mrf.mxu0
    %v1386 = vadd.f32 0.0, %v1385
    %1387 = vdwg.mxu0
    %1388 = vmatpush.bf16.msra.mxu0 0
    %1389 = vmatpush.bf16.msra.mxu0 0
    %1390 = vmatpush.bf16.msra.mxu0 0
    %1391 = vmatpush.bf16.msra.mxu0 0
    %1392 = vmatpush.bf16.msra.mxu0 0
    %1393 = vmatpush.bf16.msra.mxu0 0
    %1394 = vmatpush.bf16.msra.mxu0 %v972
    %1395 = vmatpush.bf16.msra.mxu0 %v904
    %1396 = vmatmul.bf16.gmra.mxu0 %v1162
    %v1397 = vpop.f32.mrf.mxu0
    %v1398 = vadd.f32 0.0, %v1397
    %v1399 = vpop.f32.mrf.mxu0
    %v1400 = vadd.f32 0.0, %v1399
    %1401 = vdwg.mxu0
    %1402 = vmatpush.bf16.msra.mxu0 0
    %1403 = vmatpush.bf16.msra.mxu0 0
    %1404 = vmatpush.bf16.msra.mxu0 0
    %1405 = vmatpush.bf16.msra.mxu0 0
    %1406 = vmatpush.bf16.msra.mxu0 0
    %1407 = vmatpush.bf16.msra.mxu0 0
    %1408 = vmatpush.bf16.msra.mxu0 %v973
    %1409 = vmatpush.bf16.msra.mxu0 %v905
    %1410 = vmatmul.bf16.gmra.mxu0 %v1162
    %v1411 = vpop.f32.mrf.mxu0
    %v1412 = vadd.f32 0.0, %v1411
    %v1413 = vpop.f32.mrf.mxu0
    %v1414 = vadd.f32 0.0, %v1413
    %1415 = vdwg.mxu0
    %1416 = vmatpush.bf16.msra.mxu0 0
    %1417 = vmatpush.bf16.msra.mxu0 0
    %1418 = vmatpush.bf16.msra.mxu0 0
    %1419 = vmatpush.bf16.msra.mxu0 0
    %1420 = vmatpush.bf16.msra.mxu0 0
    %1421 = vmatpush.bf16.msra.mxu0 0
    %1422 = vmatpush.bf16.msra.mxu0 %v974
    %1423 = vmatpush.bf16.msra.mxu0 %v906
    %1424 = vmatmul.bf16.gmra.mxu0 %v1162
    %v1425 = vpop.f32.mrf.mxu0
    %v1426 = vadd.f32 0.0, %v1425
    %v1427 = vpop.f32.mrf.mxu0
    %v1428 = vadd.f32 0.0, %v1427
    %1429 = vdwg.mxu0
    %1430 = vmatpush.bf16.msra.mxu0 0
    %1431 = vmatpush.bf16.msra.mxu0 0
    %1432 = vmatpush.bf16.msra.mxu0 0
    %1433 = vmatpush.bf16.msra.mxu0 0
    %1434 = vmatpush.bf16.msra.mxu0 0
    %1435 = vmatpush.bf16.msra.mxu0 0
    %1436 = vmatpush.bf16.msra.mxu0 %v975
    %1437 = vmatpush.bf16.msra.mxu0 %v907
    %1438 = vmatmul.bf16.gmra.mxu0 %v1162
    %v1439 = vpop.f32.mrf.mxu0
    %v1440 = vadd.f32 0.0, %v1439
    %v1441 = vpop.f32.mrf.mxu0
    %v1442 = vadd.f32 0.0, %v1441
    %1443 = vdwg.mxu0
    %1444 = vmatpush.bf16.msra.mxu0 0
    %1445 = vmatpush.bf16.msra.mxu0 0
    %1446 = vmatpush.bf16.msra.mxu0 0
    %1447 = vmatpush.bf16.msra.mxu0 0
    %1448 = vmatpush.bf16.msra.mxu0 0
    %1449 = vmatpush.bf16.msra.mxu0 0
    %1450 = vmatpush.bf16.msra.mxu0 %v976
    %1451 = vmatpush.bf16.msra.mxu0 %v908
    %1452 = vmatmul.bf16.gmra.mxu0 %v1162
    %v1453 = vpop.f32.mrf.mxu0
    %v1454 = vadd.f32 0.0, %v1453
    %v1455 = vpop.f32.mrf.mxu0
    %v1456 = vadd.f32 0.0, %v1455
    %1457 = vdwg.mxu0
    %1458 = vmatpush.bf16.msra.mxu0 0
    %1459 = vmatpush.bf16.msra.mxu0 0
    %1460 = vmatpush.bf16.msra.mxu0 0
    %1461 = vmatpush.bf16.msra.mxu0 0
    %1462 = vmatpush.bf16.msra.mxu0 0
    %1463 = vmatpush.bf16.msra.mxu0 0
    %1464 = vmatpush.bf16.msra.mxu0 %v977
    %1465 = vmatpush.bf16.msra.mxu0 %v909
    %1466 = vmatmul.bf16.gmra.mxu0 %v1162
    %v1467 = vpop.f32.mrf.mxu0
    %v1468 = vadd.f32 0.0, %v1467
    %v1469 = vpop.f32.mrf.mxu0
    %v1470 = vadd.f32 0.0, %v1469
    %1471 = vdwg.mxu0
    %1472 = vmatpush.bf16.msra.mxu0 0
    %1473 = vmatpush.bf16.msra.mxu0 0
    %1474 = vmatpush.bf16.msra.mxu0 0
    %1475 = vmatpush.bf16.msra.mxu0 0
    %1476 = vmatpush.bf16.msra.mxu0 0
    %1477 = vmatpush.bf16.msra.mxu0 0
    %1478 = vmatpush.bf16.msra.mxu0 %v978
    %1479 = vmatpush.bf16.msra.mxu0 %v910
    %1480 = vmatmul.bf16.gmra.mxu0 %v1162
    %v1481 = vpop.f32.mrf.mxu0
    %v1482 = vadd.f32 0.0, %v1481
    %v1483 = vpop.f32.mrf.mxu0
    %v1484 = vadd.f32 0.0, %v1483
    %1485 = vdwg.mxu0
    %1486 = vmatpush.bf16.msra.mxu0 0
    %1487 = vmatpush.bf16.msra.mxu0 0
    %1488 = vmatpush.bf16.msra.mxu0 0
    %1489 = vmatpush.bf16.msra.mxu0 0
    %1490 = vmatpush.bf16.msra.mxu0 0
    %1491 = vmatpush.bf16.msra.mxu0 0
    %1492 = vmatpush.bf16.msra.mxu0 %v979
    %1493 = vmatpush.bf16.msra.mxu0 %v911
    %1494 = vmatmul.bf16.gmra.mxu0 %v1162
    %v1495 = vpop.f32.mrf.mxu0
    %v1496 = vadd.f32 0.0, %v1495
    %v1497 = vpop.f32.mrf.mxu0
    %v1498 = vadd.f32 0.0, %v1497
    %1499 = vdwg.mxu0
    %1500 = vmatpush.bf16.msra.mxu0 0
    %1501 = vmatpush.bf16.msra.mxu0 0
    %1502 = vmatpush.bf16.msra.mxu0 0
    %1503 = vmatpush.bf16.msra.mxu0 0
    %1504 = vmatpush.bf16.msra.mxu0 0
    %1505 = vmatpush.bf16.msra.mxu0 0
    %1506 = vmatpush.bf16.msra.mxu0 %v980
    %1507 = vmatpush.bf16.msra.mxu0 %v912
    %1508 = vmatmul.bf16.gmra.mxu0 %v1162
    %v1509 = vpop.f32.mrf.mxu0
    %v1510 = vadd.f32 0.0, %v1509
    %v1511 = vpop.f32.mrf.mxu0
    %v1512 = vadd.f32 0.0, %v1511
    %1513 = vdwg.mxu0
    %1514 = vmatpush.bf16.msra.mxu0 0
    %1515 = vmatpush.bf16.msra.mxu0 0
    %1516 = vmatpush.bf16.msra.mxu0 0
    %1517 = vmatpush.bf16.msra.mxu0 0
    %1518 = vmatpush.bf16.msra.mxu0 0
    %1519 = vmatpush.bf16.msra.mxu0 0
    %1520 = vmatpush.bf16.msra.mxu0 %v981
    %1521 = vmatpush.bf16.msra.mxu0 %v913
    %1522 = vmatmul.bf16.gmra.mxu0 %v1162
    %v1523 = vpop.f32.mrf.mxu0
    %v1524 = vadd.f32 0.0, %v1523
    %v1525 = vpop.f32.mrf.mxu0
    %v1526 = vadd.f32 0.0, %v1525
    %1527 = vdwg.mxu0
    %1528 = vmatpush.bf16.msra.mxu0 0
    %1529 = vmatpush.bf16.msra.mxu0 0
    %1530 = vmatpush.bf16.msra.mxu0 0
    %1531 = vmatpush.bf16.msra.mxu0 0
    %1532 = vmatpush.bf16.msra.mxu0 0
    %1533 = vmatpush.bf16.msra.mxu0 0
    %1534 = vmatpush.bf16.msra.mxu0 %v982
    %1535 = vmatpush.bf16.msra.mxu0 %v914
    %1536 = vmatmul.bf16.gmra.mxu0 %v1162
    %v1537 = vpop.f32.mrf.mxu0
    %v1538 = vadd.f32 0.0, %v1537
    %v1539 = vpop.f32.mrf.mxu0
    %v1540 = vadd.f32 0.0, %v1539
    %1541 = vdwg.mxu0
    %1542 = vmatpush.bf16.msra.mxu0 0
    %1543 = vmatpush.bf16.msra.mxu0 0
    %1544 = vmatpush.bf16.msra.mxu0 0
    %1545 = vmatpush.bf16.msra.mxu0 0
    %1546 = vmatpush.bf16.msra.mxu0 0
    %1547 = vmatpush.bf16.msra.mxu0 0
    %1548 = vmatpush.bf16.msra.mxu0 %v983
    %1549 = vmatpush.bf16.msra.mxu0 %v915
    %1550 = vmatmul.bf16.gmra.mxu0 %v1162
    %v1551 = vpop.f32.mrf.mxu0
    %v1552 = vadd.f32 0.0, %v1551
    %v1553 = vpop.f32.mrf.mxu0
    %v1554 = vadd.f32 0.0, %v1553
    %1555 = vdwg.mxu0
    %1556 = vmatpush.bf16.msra.mxu0 0
    %1557 = vmatpush.bf16.msra.mxu0 0
    %1558 = vmatpush.bf16.msra.mxu0 0
    %1559 = vmatpush.bf16.msra.mxu0 0
    %1560 = vmatpush.bf16.msra.mxu0 0
    %1561 = vmatpush.bf16.msra.mxu0 0
    %1562 = vmatpush.bf16.msra.mxu0 %v984
    %1563 = vmatpush.bf16.msra.mxu0 %v916
    %1564 = vmatmul.bf16.gmra.mxu0 %v1162
    %v1565 = vpop.f32.mrf.mxu0
    %v1566 = vadd.f32 0.0, %v1565
    %v1567 = vpop.f32.mrf.mxu0
    %v1568 = vadd.f32 0.0, %v1567
    %1569 = vdwg.mxu0
    %1570 = vmatpush.bf16.msra.mxu0 0
    %1571 = vmatpush.bf16.msra.mxu0 0
    %1572 = vmatpush.bf16.msra.mxu0 0
    %1573 = vmatpush.bf16.msra.mxu0 0
    %1574 = vmatpush.bf16.msra.mxu0 0
    %1575 = vmatpush.bf16.msra.mxu0 0
    %1576 = vmatpush.bf16.msra.mxu0 %v985
    %1577 = vmatpush.bf16.msra.mxu0 %v917
    %1578 = vmatmul.bf16.gmra.mxu0 %v1162
    %v1579 = vpop.f32.mrf.mxu0
    %v1580 = vadd.f32 0.0, %v1579
    %v1581 = vpop.f32.mrf.mxu0
    %v1582 = vadd.f32 0.0, %v1581
    %1583 = vdwg.mxu0
    %1584 = vmatpush.bf16.msra.mxu0 0
    %1585 = vmatpush.bf16.msra.mxu0 0
    %1586 = vmatpush.bf16.msra.mxu0 0
    %1587 = vmatpush.bf16.msra.mxu0 0
    %1588 = vmatpush.bf16.msra.mxu0 0
    %1589 = vmatpush.bf16.msra.mxu0 0
    %1590 = vmatpush.bf16.msra.mxu0 %v986
    %1591 = vmatpush.bf16.msra.mxu0 %v918
    %1592 = vmatmul.bf16.gmra.mxu0 %v1162
    %v1593 = vpop.f32.mrf.mxu0
    %v1594 = vadd.f32 0.0, %v1593
    %v1595 = vpop.f32.mrf.mxu0
    %v1596 = vadd.f32 0.0, %v1595
    %1597 = vdwg.mxu0
    %1598 = vmatpush.bf16.msra.mxu0 0
    %1599 = vmatpush.bf16.msra.mxu0 0
    %1600 = vmatpush.bf16.msra.mxu0 0
    %1601 = vmatpush.bf16.msra.mxu0 0
    %1602 = vmatpush.bf16.msra.mxu0 0
    %1603 = vmatpush.bf16.msra.mxu0 0
    %1604 = vmatpush.bf16.msra.mxu0 %v987
    %1605 = vmatpush.bf16.msra.mxu0 %v919
    %1606 = vmatmul.bf16.gmra.mxu0 %v1162
    %v1607 = vpop.f32.mrf.mxu0
    %v1608 = vadd.f32 0.0, %v1607
    %v1609 = vpop.f32.mrf.mxu0
    %v1610 = vadd.f32 0.0, %v1609
    %1611 = vdwg.mxu0
    %1612 = vmatpush.bf16.msra.mxu0 0
    %1613 = vmatpush.bf16.msra.mxu0 0
    %1614 = vmatpush.bf16.msra.mxu0 0
    %1615 = vmatpush.bf16.msra.mxu0 0
    %1616 = vmatpush.bf16.msra.mxu0 0
    %1617 = vmatpush.bf16.msra.mxu0 0
    %1618 = vmatpush.bf16.msra.mxu0 %v988
    %1619 = vmatpush.bf16.msra.mxu0 %v920
    %1620 = vmatmul.bf16.gmra.mxu0 %v1162
    %v1621 = vpop.f32.mrf.mxu0
    %v1622 = vadd.f32 0.0, %v1621
    %v1623 = vpop.f32.mrf.mxu0
    %v1624 = vadd.f32 0.0, %v1623
    %1625 = vdwg.mxu0
    %1626 = vmatpush.bf16.msra.mxu0 0
    %1627 = vmatpush.bf16.msra.mxu0 0
    %1628 = vmatpush.bf16.msra.mxu0 0
    %1629 = vmatpush.bf16.msra.mxu0 0
    %1630 = vmatpush.bf16.msra.mxu0 0
    %1631 = vmatpush.bf16.msra.mxu0 0
    %1632 = vmatpush.bf16.msra.mxu0 %v989
    %1633 = vmatpush.bf16.msra.mxu0 %v921
    %1634 = vmatmul.bf16.gmra.mxu0 %v1162
    %v1635 = vpop.f32.mrf.mxu0
    %v1636 = vadd.f32 0.0, %v1635
    %v1637 = vpop.f32.mrf.mxu0
    %v1638 = vadd.f32 0.0, %v1637
    %1639 = vdwg.mxu0
    %1640 = vmatpush.bf16.msra.mxu0 0
    %1641 = vmatpush.bf16.msra.mxu0 0
    %1642 = vmatpush.bf16.msra.mxu0 0
    %1643 = vmatpush.bf16.msra.mxu0 0
    %1644 = vmatpush.bf16.msra.mxu0 0
    %1645 = vmatpush.bf16.msra.mxu0 0
    %1646 = vmatpush.bf16.msra.mxu0 %v990
    %1647 = vmatpush.bf16.msra.mxu0 %v922
    %1648 = vmatmul.bf16.gmra.mxu0 %v1162
    %v1649 = vpop.f32.mrf.mxu0
    %v1650 = vadd.f32 0.0, %v1649
    %v1651 = vpop.f32.mrf.mxu0
    %v1652 = vadd.f32 0.0, %v1651
    %1653 = vdwg.mxu0
    %1654 = vmatpush.bf16.msra.mxu0 0
    %1655 = vmatpush.bf16.msra.mxu0 0
    %1656 = vmatpush.bf16.msra.mxu0 0
    %1657 = vmatpush.bf16.msra.mxu0 0
    %1658 = vmatpush.bf16.msra.mxu0 0
    %1659 = vmatpush.bf16.msra.mxu0 0
    %1660 = vmatpush.bf16.msra.mxu0 %v991
    %1661 = vmatpush.bf16.msra.mxu0 %v923
    %1662 = vmatmul.bf16.gmra.mxu0 %v1162
    %v1663 = vpop.f32.mrf.mxu0
    %v1664 = vadd.f32 0.0, %v1663
    %v1665 = vpop.f32.mrf.mxu0
    %v1666 = vadd.f32 0.0, %v1665
    %1667 = vdwg.mxu0
    %1668 = vmatpush.bf16.msra.mxu0 0
    %1669 = vmatpush.bf16.msra.mxu0 0
    %1670 = vmatpush.bf16.msra.mxu0 0
    %1671 = vmatpush.bf16.msra.mxu0 0
    %1672 = vmatpush.bf16.msra.mxu0 0
    %1673 = vmatpush.bf16.msra.mxu0 0
    %1674 = vmatpush.bf16.msra.mxu0 %v992
    %1675 = vmatpush.bf16.msra.mxu0 %v924
    %1676 = vmatmul.bf16.gmra.mxu0 %v1162
    %v1677 = vpop.f32.mrf.mxu0
    %v1678 = vadd.f32 0.0, %v1677
    %v1679 = vpop.f32.mrf.mxu0
    %v1680 = vadd.f32 0.0, %v1679
    %1681 = vdwg.mxu0
    %1682 = vmatpush.bf16.msra.mxu0 0
    %1683 = vmatpush.bf16.msra.mxu0 0
    %1684 = vmatpush.bf16.msra.mxu0 0
    %1685 = vmatpush.bf16.msra.mxu0 0
    %1686 = vmatpush.bf16.msra.mxu0 0
    %1687 = vmatpush.bf16.msra.mxu0 0
    %1688 = vmatpush.bf16.msra.mxu0 %v993
    %1689 = vmatpush.bf16.msra.mxu0 %v925
    %1690 = vmatmul.bf16.gmra.mxu0 %v1162
    %v1691 = vpop.f32.mrf.mxu0
    %v1692 = vadd.f32 0.0, %v1691
    %v1693 = vpop.f32.mrf.mxu0
    %v1694 = vadd.f32 0.0, %v1693
    %1695 = vdwg.mxu0
    %1696 = vmatpush.bf16.msra.mxu0 0
    %1697 = vmatpush.bf16.msra.mxu0 0
    %1698 = vmatpush.bf16.msra.mxu0 0
    %1699 = vmatpush.bf16.msra.mxu0 0
    %1700 = vmatpush.bf16.msra.mxu0 0
    %1701 = vmatpush.bf16.msra.mxu0 0
    %1702 = vmatpush.bf16.msra.mxu0 %v994
    %1703 = vmatpush.bf16.msra.mxu0 %v926
    %1704 = vmatmul.bf16.gmra.mxu0 %v1162
    %v1705 = vpop.f32.mrf.mxu0
    %v1706 = vadd.f32 0.0, %v1705
    %v1707 = vpop.f32.mrf.mxu0
    %v1708 = vadd.f32 0.0, %v1707
    %1709 = vdwg.mxu0
    %1710 = vmatpush.bf16.msra.mxu0 0
    %1711 = vmatpush.bf16.msra.mxu0 0
    %1712 = vmatpush.bf16.msra.mxu0 0
    %1713 = vmatpush.bf16.msra.mxu0 0
    %1714 = vmatpush.bf16.msra.mxu0 0
    %1715 = vmatpush.bf16.msra.mxu0 0
    %1716 = vmatpush.bf16.msra.mxu0 %v995
    %1717 = vmatpush.bf16.msra.mxu0 %v927
    %1718 = vmatmul.bf16.gmra.mxu0 %v1162
    %v1719 = vpop.f32.mrf.mxu0
    %v1720 = vadd.f32 0.0, %v1719
    %v1721 = vpop.f32.mrf.mxu0
    %v1722 = vadd.f32 0.0, %v1721
    %1723 = vdwg.mxu0
    %1724 = vmatpush.bf16.msra.mxu0 0
    %1725 = vmatpush.bf16.msra.mxu0 0
    %1726 = vmatpush.bf16.msra.mxu0 0
    %1727 = vmatpush.bf16.msra.mxu0 0
    %1728 = vmatpush.bf16.msra.mxu0 0
    %1729 = vmatpush.bf16.msra.mxu0 0
    %1730 = vmatpush.bf16.msra.mxu0 %v996
    %1731 = vmatpush.bf16.msra.mxu0 %v928
    %1732 = vmatmul.bf16.gmra.mxu0 %v1162
    %v1733 = vpop.f32.mrf.mxu0
    %v1734 = vadd.f32 0.0, %v1733
    %v1735 = vpop.f32.mrf.mxu0
    %v1736 = vadd.f32 0.0, %v1735
    %1737 = vdwg.mxu0
    %1738 = vmatpush.bf16.msra.mxu0 0
    %1739 = vmatpush.bf16.msra.mxu0 0
    %1740 = vmatpush.bf16.msra.mxu0 0
    %1741 = vmatpush.bf16.msra.mxu0 0
    %1742 = vmatpush.bf16.msra.mxu0 0
    %1743 = vmatpush.bf16.msra.mxu0 0
    %1744 = vmatpush.bf16.msra.mxu0 %v997
    %1745 = vmatpush.bf16.msra.mxu0 %v929
    %1746 = vmatmul.bf16.gmra.mxu0 %v1162
    %v1747 = vpop.f32.mrf.mxu0
    %v1748 = vadd.f32 0.0, %v1747
    %v1749 = vpop.f32.mrf.mxu0
    %v1750 = vadd.f32 0.0, %v1749
    %1751 = vdwg.mxu0
    %1752 = vmatpush.bf16.msra.mxu0 0
    %1753 = vmatpush.bf16.msra.mxu0 0
    %1754 = vmatpush.bf16.msra.mxu0 0
    %1755 = vmatpush.bf16.msra.mxu0 0
    %1756 = vmatpush.bf16.msra.mxu0 0
    %1757 = vmatpush.bf16.msra.mxu0 0
    %1758 = vmatpush.bf16.msra.mxu0 %v998
    %1759 = vmatpush.bf16.msra.mxu0 %v930
    %1760 = vmatmul.bf16.gmra.mxu0 %v1162
    %v1761 = vpop.f32.mrf.mxu0
    %v1762 = vadd.f32 0.0, %v1761
    %v1763 = vpop.f32.mrf.mxu0
    %v1764 = vadd.f32 0.0, %v1763
    %1765 = vdwg.mxu0
    %1766 = vmatpush.bf16.msra.mxu0 0
    %1767 = vmatpush.bf16.msra.mxu0 0
    %1768 = vmatpush.bf16.msra.mxu0 0
    %1769 = vmatpush.bf16.msra.mxu0 0
    %1770 = vmatpush.bf16.msra.mxu0 0
    %1771 = vmatpush.bf16.msra.mxu0 0
    %1772 = vmatpush.bf16.msra.mxu0 %v999
    %1773 = vmatpush.bf16.msra.mxu0 %v931
    %1774 = vmatmul.bf16.gmra.mxu0 %v1162
    %v1775 = vpop.f32.mrf.mxu0
    %v1776 = vadd.f32 0.0, %v1775
    %v1777 = vpop.f32.mrf.mxu0
    %v1778 = vadd.f32 0.0, %v1777
    %1779 = vdwg.mxu0
    %1780 = vmatpush.bf16.msra.mxu0 0
    %1781 = vmatpush.bf16.msra.mxu0 0
    %1782 = vmatpush.bf16.msra.mxu0 0
    %1783 = vmatpush.bf16.msra.mxu0 0
    %1784 = vmatpush.bf16.msra.mxu0 0
    %1785 = vmatpush.bf16.msra.mxu0 0
    %1786 = vmatpush.bf16.msra.mxu0 %v1000
    %1787 = vmatpush.bf16.msra.mxu0 %v932
    %1788 = vmatmul.bf16.gmra.mxu0 %v1162
    %v1789 = vpop.f32.mrf.mxu0
    %v1790 = vadd.f32 0.0, %v1789
    %v1791 = vpop.f32.mrf.mxu0
    %v1792 = vadd.f32 0.0, %v1791
    %1793 = vdwg.mxu0
    %1794 = vmatpush.bf16.msra.mxu0 0
    %1795 = vmatpush.bf16.msra.mxu0 0
    %1796 = vmatpush.bf16.msra.mxu0 0
    %1797 = vmatpush.bf16.msra.mxu0 0
    %1798 = vmatpush.bf16.msra.mxu0 0
    %1799 = vmatpush.bf16.msra.mxu0 0
    %1800 = vmatpush.bf16.msra.mxu0 %v1001
    %1801 = vmatpush.bf16.msra.mxu0 %v933
    %1802 = vmatmul.bf16.gmra.mxu0 %v1162
    %v1803 = vpop.f32.mrf.mxu0
    %v1804 = vadd.f32 0.0, %v1803
    %v1805 = vpop.f32.mrf.mxu0
    %v1806 = vadd.f32 0.0, %v1805
    %1807 = vdwg.mxu0
    %1808 = vmatpush.bf16.msra.mxu0 0
    %1809 = vmatpush.bf16.msra.mxu0 0
    %1810 = vmatpush.bf16.msra.mxu0 0
    %1811 = vmatpush.bf16.msra.mxu0 0
    %1812 = vmatpush.bf16.msra.mxu0 0
    %1813 = vmatpush.bf16.msra.mxu0 0
    %1814 = vmatpush.bf16.msra.mxu0 %v1002
    %1815 = vmatpush.bf16.msra.mxu0 %v934
    %1816 = vmatmul.bf16.gmra.mxu0 %v1162
    %v1817 = vpop.f32.mrf.mxu0
    %v1818 = vadd.f32 0.0, %v1817
    %v1819 = vpop.f32.mrf.mxu0
    %v1820 = vadd.f32 0.0, %v1819
    %1821 = vdwg.mxu0
    %1822 = vmatpush.bf16.msra.mxu0 0
    %1823 = vmatpush.bf16.msra.mxu0 0
    %1824 = vmatpush.bf16.msra.mxu0 0
    %1825 = vmatpush.bf16.msra.mxu0 0
    %1826 = vmatpush.bf16.msra.mxu0 0
    %1827 = vmatpush.bf16.msra.mxu0 0
    %1828 = vmatpush.bf16.msra.mxu0 %v1003
    %1829 = vmatpush.bf16.msra.mxu0 %v935
    %1830 = vmatmul.bf16.gmra.mxu0 %v1162
    %v1831 = vpop.f32.mrf.mxu0
    %v1832 = vadd.f32 0.0, %v1831
    %v1833 = vpop.f32.mrf.mxu0
    %v1834 = vadd.f32 0.0, %v1833
    %1835 = vdwg.mxu0
    %1836 = vmatpush.bf16.msra.mxu0 0
    %1837 = vmatpush.bf16.msra.mxu0 0
    %1838 = vmatpush.bf16.msra.mxu0 0
    %1839 = vmatpush.bf16.msra.mxu0 0
    %1840 = vmatpush.bf16.msra.mxu0 0
    %1841 = vmatpush.bf16.msra.mxu0 0
    %1842 = vmatpush.bf16.msra.mxu0 %v1004
    %1843 = vmatpush.bf16.msra.mxu0 %v936
    %1844 = vmatmul.bf16.gmra.mxu0 %v1162
    %v1845 = vpop.f32.mrf.mxu0
    %v1846 = vadd.f32 0.0, %v1845
    %v1847 = vpop.f32.mrf.mxu0
    %v1848 = vadd.f32 0.0, %v1847
    %1849 = vdwg.mxu0
    %1850 = vmatpush.bf16.msra.mxu0 0
    %1851 = vmatpush.bf16.msra.mxu0 0
    %1852 = vmatpush.bf16.msra.mxu0 0
    %1853 = vmatpush.bf16.msra.mxu0 0
    %1854 = vmatpush.bf16.msra.mxu0 0
    %1855 = vmatpush.bf16.msra.mxu0 0
    %1856 = vmatpush.bf16.msra.mxu0 %v1005
    %1857 = vmatpush.bf16.msra.mxu0 %v937
    %1858 = vmatmul.bf16.gmra.mxu0 %v1162
    %v1859 = vpop.f32.mrf.mxu0
    %v1860 = vadd.f32 0.0, %v1859
    %v1861 = vpop.f32.mrf.mxu0
    %v1862 = vadd.f32 0.0, %v1861
    %1863 = vdwg.mxu0
    %1864 = vmatpush.bf16.msra.mxu0 0
    %1865 = vmatpush.bf16.msra.mxu0 0
    %1866 = vmatpush.bf16.msra.mxu0 0
    %1867 = vmatpush.bf16.msra.mxu0 0
    %1868 = vmatpush.bf16.msra.mxu0 0
    %1869 = vmatpush.bf16.msra.mxu0 0
    %1870 = vmatpush.bf16.msra.mxu0 %v1006
    %1871 = vmatpush.bf16.msra.mxu0 %v938
    %1872 = vmatmul.bf16.gmra.mxu0 %v1162
    %v1873 = vpop.f32.mrf.mxu0
    %v1874 = vadd.f32 0.0, %v1873
    %v1875 = vpop.f32.mrf.mxu0
    %v1876 = vadd.f32 0.0, %v1875
    %1877 = vdwg.mxu0
    %1878 = vmatpush.bf16.msra.mxu0 0
    %1879 = vmatpush.bf16.msra.mxu0 0
    %1880 = vmatpush.bf16.msra.mxu0 0
    %1881 = vmatpush.bf16.msra.mxu0 0
    %1882 = vmatpush.bf16.msra.mxu0 0
    %1883 = vmatpush.bf16.msra.mxu0 0
    %1884 = vmatpush.bf16.msra.mxu0 %v1007
    %1885 = vmatpush.bf16.msra.mxu0 %v939
    %1886 = vmatmul.bf16.gmra.mxu0 %v1162
    %v1887 = vpop.f32.mrf.mxu0
    %v1888 = vadd.f32 0.0, %v1887
    %v1889 = vpop.f32.mrf.mxu0
    %v1890 = vadd.f32 0.0, %v1889
    %1891 = vdwg.mxu0
    %1892 = vmatpush.bf16.msra.mxu0 0
    %1893 = vmatpush.bf16.msra.mxu0 0
    %1894 = vmatpush.bf16.msra.mxu0 0
    %1895 = vmatpush.bf16.msra.mxu0 0
    %1896 = vmatpush.bf16.msra.mxu0 0
    %1897 = vmatpush.bf16.msra.mxu0 0
    %1898 = vmatpush.bf16.msra.mxu0 %v1008
    %1899 = vmatpush.bf16.msra.mxu0 %v940
    %1900 = vmatmul.bf16.gmra.mxu0 %v1162
    %v1901 = vpop.f32.mrf.mxu0
    %v1902 = vadd.f32 0.0, %v1901
    %v1903 = vpop.f32.mrf.mxu0
    %v1904 = vadd.f32 0.0, %v1903
    %1905 = vdwg.mxu0
    %1906 = vmatpush.bf16.msra.mxu0 0
    %1907 = vmatpush.bf16.msra.mxu0 0
    %1908 = vmatpush.bf16.msra.mxu0 0
    %1909 = vmatpush.bf16.msra.mxu0 0
    %1910 = vmatpush.bf16.msra.mxu0 0
    %1911 = vmatpush.bf16.msra.mxu0 0
    %1912 = vmatpush.bf16.msra.mxu0 %v1009
    %1913 = vmatpush.bf16.msra.mxu0 %v941
    %1914 = vmatmul.bf16.gmra.mxu0 %v1162
    %v1915 = vpop.f32.mrf.mxu0
    %v1916 = vadd.f32 0.0, %v1915
    %v1917 = vpop.f32.mrf.mxu0
    %v1918 = vadd.f32 0.0, %v1917
    %1919 = vdwg.mxu0
    %1920 = vmatpush.bf16.msra.mxu0 0
    %1921 = vmatpush.bf16.msra.mxu0 0
    %1922 = vmatpush.bf16.msra.mxu0 0
    %1923 = vmatpush.bf16.msra.mxu0 0
    %1924 = vmatpush.bf16.msra.mxu0 0
    %1925 = vmatpush.bf16.msra.mxu0 0
    %1926 = vmatpush.bf16.msra.mxu0 %v1010
    %1927 = vmatpush.bf16.msra.mxu0 %v942
    %1928 = vmatmul.bf16.gmra.mxu0 %v1162
    %v1929 = vpop.f32.mrf.mxu0
    %v1930 = vadd.f32 0.0, %v1929
    %v1931 = vpop.f32.mrf.mxu0
    %v1932 = vadd.f32 0.0, %v1931
    %1933 = vdwg.mxu0
    %1934 = vmatpush.bf16.msra.mxu0 0
    %1935 = vmatpush.bf16.msra.mxu0 0
    %1936 = vmatpush.bf16.msra.mxu0 0
    %1937 = vmatpush.bf16.msra.mxu0 0
    %1938 = vmatpush.bf16.msra.mxu0 0
    %1939 = vmatpush.bf16.msra.mxu0 0
    %1940 = vmatpush.bf16.msra.mxu0 %v1011
    %1941 = vmatpush.bf16.msra.mxu0 %v943
    %1942 = vmatmul.bf16.gmra.mxu0 %v1162
    %v1943 = vpop.f32.mrf.mxu0
    %v1944 = vadd.f32 0.0, %v1943
    %v1945 = vpop.f32.mrf.mxu0
    %v1946 = vadd.f32 0.0, %v1945
    %1947 = vdwg.mxu0
    %1948 = vmatpush.bf16.msra.mxu0 0
    %1949 = vmatpush.bf16.msra.mxu0 0
    %1950 = vmatpush.bf16.msra.mxu0 0
    %1951 = vmatpush.bf16.msra.mxu0 0
    %1952 = vmatpush.bf16.msra.mxu0 0
    %1953 = vmatpush.bf16.msra.mxu0 0
    %1954 = vmatpush.bf16.msra.mxu0 %v1012
    %1955 = vmatpush.bf16.msra.mxu0 %v944
    %1956 = vmatmul.bf16.gmra.mxu0 %v1162
    %v1957 = vpop.f32.mrf.mxu0
    %v1958 = vadd.f32 0.0, %v1957
    %v1959 = vpop.f32.mrf.mxu0
    %v1960 = vadd.f32 0.0, %v1959
    %1961 = vdwg.mxu0
    %1962 = vmatpush.bf16.msra.mxu0 0
    %1963 = vmatpush.bf16.msra.mxu0 0
    %1964 = vmatpush.bf16.msra.mxu0 0
    %1965 = vmatpush.bf16.msra.mxu0 0
    %1966 = vmatpush.bf16.msra.mxu0 0
    %1967 = vmatpush.bf16.msra.mxu0 0
    %1968 = vmatpush.bf16.msra.mxu0 %v1013
    %1969 = vmatpush.bf16.msra.mxu0 %v945
    %1970 = vmatmul.bf16.gmra.mxu0 %v1162
    %v1971 = vpop.f32.mrf.mxu0
    %v1972 = vadd.f32 0.0, %v1971
    %v1973 = vpop.f32.mrf.mxu0
    %v1974 = vadd.f32 0.0, %v1973
    %1975 = vdwg.mxu0
    %1976 = vmatpush.bf16.msra.mxu0 0
    %1977 = vmatpush.bf16.msra.mxu0 0
    %1978 = vmatpush.bf16.msra.mxu0 0
    %1979 = vmatpush.bf16.msra.mxu0 0
    %1980 = vmatpush.bf16.msra.mxu0 0
    %1981 = vmatpush.bf16.msra.mxu0 0
    %1982 = vmatpush.bf16.msra.mxu0 %v1014
    %1983 = vmatpush.bf16.msra.mxu0 %v946
    %1984 = vmatmul.bf16.gmra.mxu0 %v1162
    %v1985 = vpop.f32.mrf.mxu0
    %v1986 = vadd.f32 0.0, %v1985
    %v1987 = vpop.f32.mrf.mxu0
    %v1988 = vadd.f32 0.0, %v1987
    %1989 = vdwg.mxu0
    %1990 = vmatpush.bf16.msra.mxu0 0
    %1991 = vmatpush.bf16.msra.mxu0 0
    %1992 = vmatpush.bf16.msra.mxu0 0
    %1993 = vmatpush.bf16.msra.mxu0 0
    %1994 = vmatpush.bf16.msra.mxu0 0
    %1995 = vmatpush.bf16.msra.mxu0 0
    %1996 = vmatpush.bf16.msra.mxu0 %v1015
    %1997 = vmatpush.bf16.msra.mxu0 %v947
    %1998 = vmatmul.bf16.gmra.mxu0 %v1162
    %v1999 = vpop.f32.mrf.mxu0
    %v2000 = vadd.f32 0.0, %v1999
    %v2001 = vpop.f32.mrf.mxu0
    %v2002 = vadd.f32 0.0, %v2001
    %2003 = vdwg.mxu0
    %2004 = vmatpush.bf16.msra.mxu0 0
    %2005 = vmatpush.bf16.msra.mxu0 0
    %2006 = vmatpush.bf16.msra.mxu0 0
    %2007 = vmatpush.bf16.msra.mxu0 0
    %2008 = vmatpush.bf16.msra.mxu0 0
    %2009 = vmatpush.bf16.msra.mxu0 0
    %2010 = vmatpush.bf16.msra.mxu0 %v1016
    %2011 = vmatpush.bf16.msra.mxu0 %v948
    %2012 = vmatmul.bf16.gmra.mxu0 %v1162
    %v2013 = vpop.f32.mrf.mxu0
    %v2014 = vadd.f32 0.0, %v2013
    %v2015 = vpop.f32.mrf.mxu0
    %v2016 = vadd.f32 0.0, %v2015
    %2017 = vdwg.mxu0
    %2018 = vmatpush.bf16.msra.mxu0 0
    %2019 = vmatpush.bf16.msra.mxu0 0
    %2020 = vmatpush.bf16.msra.mxu0 0
    %2021 = vmatpush.bf16.msra.mxu0 0
    %2022 = vmatpush.bf16.msra.mxu0 0
    %2023 = vmatpush.bf16.msra.mxu0 0
    %2024 = vmatpush.bf16.msra.mxu0 %v1017
    %2025 = vmatpush.bf16.msra.mxu0 %v949
    %2026 = vmatmul.bf16.gmra.mxu0 %v1162
    %v2027 = vpop.f32.mrf.mxu0
    %v2028 = vadd.f32 0.0, %v2027
    %v2029 = vpop.f32.mrf.mxu0
    %v2030 = vadd.f32 0.0, %v2029
    %2031 = vdwg.mxu0
    %2032 = vmatpush.bf16.msra.mxu0 0
    %2033 = vmatpush.bf16.msra.mxu0 0
    %2034 = vmatpush.bf16.msra.mxu0 0
    %2035 = vmatpush.bf16.msra.mxu0 0
    %2036 = vmatpush.bf16.msra.mxu0 0
    %2037 = vmatpush.bf16.msra.mxu0 0
    %2038 = vmatpush.bf16.msra.mxu0 %v1018
    %2039 = vmatpush.bf16.msra.mxu0 %v950
    %2040 = vmatmul.bf16.gmra.mxu0 %v1162
    %v2041 = vpop.f32.mrf.mxu0
    %v2042 = vadd.f32 0.0, %v2041
    %v2043 = vpop.f32.mrf.mxu0
    %v2044 = vadd.f32 0.0, %v2043
    %2045 = vdwg.mxu0
    %2046 = vmatpush.bf16.msra.mxu0 0
    %2047 = vmatpush.bf16.msra.mxu0 0
    %2048 = vmatpush.bf16.msra.mxu0 0
    %2049 = vmatpush.bf16.msra.mxu0 0
    %2050 = vmatpush.bf16.msra.mxu0 0
    %2051 = vmatpush.bf16.msra.mxu0 0
    %2052 = vmatpush.bf16.msra.mxu0 %v1019
    %2053 = vmatpush.bf16.msra.mxu0 %v951
    %2054 = vmatmul.bf16.gmra.mxu0 %v1162
    %v2055 = vpop.f32.mrf.mxu0
    %v2056 = vadd.f32 0.0, %v2055
    %v2057 = vpop.f32.mrf.mxu0
    %v2058 = vadd.f32 0.0, %v2057
    %2059 = vdwg.mxu0
    %2060 = vmatpush.bf16.msra.mxu0 0
    %2061 = vmatpush.bf16.msra.mxu0 0
    %2062 = vmatpush.bf16.msra.mxu0 0
    %2063 = vmatpush.bf16.msra.mxu0 0
    %2064 = vmatpush.bf16.msra.mxu0 0
    %2065 = vmatpush.bf16.msra.mxu0 0
    %2066 = vmatpush.bf16.msra.mxu0 %v1020
    %2067 = vmatpush.bf16.msra.mxu0 %v952
    %2068 = vmatmul.bf16.gmra.mxu0 %v1162
    %v2069 = vpop.f32.mrf.mxu0
    %v2070 = vadd.f32 0.0, %v2069
    %v2071 = vpop.f32.mrf.mxu0
    %v2072 = vadd.f32 0.0, %v2071
    %2073 = vdwg.mxu0
    %2074 = vmatpush.bf16.msra.mxu0 0
    %2075 = vmatpush.bf16.msra.mxu0 0
    %2076 = vmatpush.bf16.msra.mxu0 0
    %2077 = vmatpush.bf16.msra.mxu0 0
    %2078 = vmatpush.bf16.msra.mxu0 0
    %2079 = vmatpush.bf16.msra.mxu0 0
    %2080 = vmatpush.bf16.msra.mxu0 %v1021
    %2081 = vmatpush.bf16.msra.mxu0 %v953
    %2082 = vmatmul.bf16.gmra.mxu0 %v1162
    %v2083 = vpop.f32.mrf.mxu0
    %v2084 = vadd.f32 0.0, %v2083
    %v2085 = vpop.f32.mrf.mxu0
    %v2086 = vadd.f32 0.0, %v2085
    %2087 = vdwg.mxu0
    %2088 = vmatpush.bf16.msra.mxu0 0
    %2089 = vmatpush.bf16.msra.mxu0 0
    %2090 = vmatpush.bf16.msra.mxu0 0
    %2091 = vmatpush.bf16.msra.mxu0 0
    %2092 = vmatpush.bf16.msra.mxu0 0
    %2093 = vmatpush.bf16.msra.mxu0 0
    %2094 = vmatpush.bf16.msra.mxu0 %v1022
    %2095 = vmatpush.bf16.msra.mxu0 %v954
    %2096 = vmatmul.bf16.gmra.mxu0 %v1162
    %v2097 = vpop.f32.mrf.mxu0
    %v2098 = vadd.f32 0.0, %v2097
    %v2099 = vpop.f32.mrf.mxu0
    %v2100 = vadd.f32 0.0, %v2099
    %2101 = vdwg.mxu0
    %2102 = vmatpush.bf16.msra.mxu0 0
    %2103 = vmatpush.bf16.msra.mxu0 0
    %2104 = vmatpush.bf16.msra.mxu0 0
    %2105 = vmatpush.bf16.msra.mxu0 0
    %2106 = vmatpush.bf16.msra.mxu0 0
    %2107 = vmatpush.bf16.msra.mxu0 0
    %2108 = vmatpush.bf16.msra.mxu0 %v1023
    %2109 = vmatpush.bf16.msra.mxu0 %v955
    %2110 = vmatmul.bf16.gmra.mxu0 %v1162
    %v2111 = vpop.f32.mrf.mxu0
    %v2112 = vadd.f32 0.0, %v2111
    %v2113 = vpop.f32.mrf.mxu0
    %v2114 = vadd.f32 0.0, %v2113
    %2115 = vdwg.mxu0
    %v2116 = vadd.f32 %v201, %v1174
    %v2117 = vadd.f32 %v202, %v1188
    %v2118 = vadd.f32 %v203, %v1202
    %v2119 = vadd.f32 %v204, %v1216
    %v2120 = vadd.f32 %v205, %v1230
    %v2121 = vadd.f32 %v206, %v1244
    %v2122 = vadd.f32 %v207, %v1258
    %v2123 = vadd.f32 %v208, %v1272
    %v2124 = vadd.f32 %v209, %v1286
    %v2125 = vadd.f32 %v210, %v1300
    %v2126 = vadd.f32 %v211, %v1314
    %v2127 = vadd.f32 %v212, %v1328
    %v2128 = vadd.f32 %v213, %v1342
    %v2129 = vadd.f32 %v214, %v1356
    %v2130 = vadd.f32 %v215, %v1370
    %v2131 = vadd.f32 %v216, %v1384
    %v2132 = vadd.f32 %v217, %v1398
    %v2133 = vadd.f32 %v218, %v1412
    %v2134 = vadd.f32 %v219, %v1426
    %v2135 = vadd.f32 %v220, %v1440
    %v2136 = vadd.f32 %v221, %v1454
    %v2137 = vadd.f32 %v222, %v1468
    %v2138 = vadd.f32 %v223, %v1482
    %v2139 = vadd.f32 %v224, %v1496
    %v2140 = vadd.f32 %v225, %v1510
    %v2141 = vadd.f32 %v226, %v1524
    %v2142 = vadd.f32 %v227, %v1538
    %v2143 = vadd.f32 %v228, %v1552
    %v2144 = vadd.f32 %v229, %v1566
    %v2145 = vadd.f32 %v230, %v1580
    %v2146 = vadd.f32 %v231, %v1594
    %v2147 = vadd.f32 %v232, %v1608
    %v2148 = vadd.f32 %v233, %v1622
    %v2149 = vadd.f32 %v234, %v1636
    %v2150 = vadd.f32 %v235, %v1650
    %v2151 = vadd.f32 %v236, %v1664
    %v2152 = vadd.f32 %v237, %v1678
    %v2153 = vadd.f32 %v238, %v1692
    %v2154 = vadd.f32 %v239, %v1706
    %v2155 = vadd.f32 %v240, %v1720
    %v2156 = vadd.f32 %v241, %v1734
    %v2157 = vadd.f32 %v242, %v1748
    %v2158 = vadd.f32 %v243, %v1762
    %v2159 = vadd.f32 %v244, %v1776
    %v2160 = vadd.f32 %v245, %v1790
    %v2161 = vadd.f32 %v246, %v1804
    %v2162 = vadd.f32 %v247, %v1818
    %v2163 = vadd.f32 %v248, %v1832
    %v2164 = vadd.f32 %v249, %v1846
    %v2165 = vadd.f32 %v250, %v1860
    %v2166 = vadd.f32 %v251, %v1874
    %v2167 = vadd.f32 %v252, %v1888
    %v2168 = vadd.f32 %v253, %v1902
    %v2169 = vadd.f32 %v254, %v1916
    %v2170 = vadd.f32 %v255, %v1930
    %v2171 = vadd.f32 %v256, %v1944
    %v2172 = vadd.f32 %v257, %v1958
    %v2173 = vadd.f32 %v258, %v1972
    %v2174 = vadd.f32 %v259, %v1986
    %v2175 = vadd.f32 %v260, %v2000
    %v2176 = vadd.f32 %v261, %v2014
    %v2177 = vadd.f32 %v262, %v2028
    %v2178 = vadd.f32 %v263, %v2042
    %v2179 = vadd.f32 %v264, %v2056
    %v2180 = vadd.f32 %v265, %v2070
    %v2181 = vadd.f32 %v266, %v2084
    %v2182 = vadd.f32 %v267, %v2098
    %v2183 = vadd.f32 %v268, %v2112
    %v2184 = vadd.f32 %v269, %v1176
    %v2185 = vadd.f32 %v270, %v1190
    %v2186 = vadd.f32 %v271, %v1204
    %v2187 = vadd.f32 %v272, %v1218
    %v2188 = vadd.f32 %v273, %v1232
    %v2189 = vadd.f32 %v274, %v1246
    %v2190 = vadd.f32 %v275, %v1260
    %v2191 = vadd.f32 %v276, %v1274
    %v2192 = vadd.f32 %v277, %v1288
    %v2193 = vadd.f32 %v278, %v1302
    %v2194 = vadd.f32 %v279, %v1316
    %v2195 = vadd.f32 %v280, %v1330
    %v2196 = vadd.f32 %v281, %v1344
    %v2197 = vadd.f32 %v282, %v1358
    %v2198 = vadd.f32 %v283, %v1372
    %v2199 = vadd.f32 %v284, %v1386
    %v2200 = vadd.f32 %v285, %v1400
    %v2201 = vadd.f32 %v286, %v1414
    %v2202 = vadd.f32 %v287, %v1428
    %v2203 = vadd.f32 %v288, %v1442
    %v2204 = vadd.f32 %v289, %v1456
    %v2205 = vadd.f32 %v290, %v1470
    %v2206 = vadd.f32 %v291, %v1484
    %v2207 = vadd.f32 %v292, %v1498
    %v2208 = vadd.f32 %v293, %v1512
    %v2209 = vadd.f32 %v294, %v1526
    %v2210 = vadd.f32 %v295, %v1540
    %v2211 = vadd.f32 %v296, %v1554
    %v2212 = vadd.f32 %v297, %v1568
    %v2213 = vadd.f32 %v298, %v1582
    %v2214 = vadd.f32 %v299, %v1596
    %v2215 = vadd.f32 %v300, %v1610
    %v2216 = vadd.f32 %v301, %v1624
    %v2217 = vadd.f32 %v302, %v1638
    %v2218 = vadd.f32 %v303, %v1652
    %v2219 = vadd.f32 %v304, %v1666
    %v2220 = vadd.f32 %v305, %v1680
    %v2221 = vadd.f32 %v306, %v1694
    %v2222 = vadd.f32 %v307, %v1708
    %v2223 = vadd.f32 %v308, %v1722
    %v2224 = vadd.f32 %v309, %v1736
    %v2225 = vadd.f32 %v310, %v1750
    %v2226 = vadd.f32 %v311, %v1764
    %v2227 = vadd.f32 %v312, %v1778
    %v2228 = vadd.f32 %v313, %v1792
    %v2229 = vadd.f32 %v314, %v1806
    %v2230 = vadd.f32 %v315, %v1820
    %v2231 = vadd.f32 %v316, %v1834
    %v2232 = vadd.f32 %v317, %v1848
    %v2233 = vadd.f32 %v318, %v1862
    %v2234 = vadd.f32 %v319, %v1876
    %v2235 = vadd.f32 %v320, %v1890
    %v2236 = vadd.f32 %v321, %v1904
    %v2237 = vadd.f32 %v322, %v1918
    %v2238 = vadd.f32 %v323, %v1932
    %v2239 = vadd.f32 %v324, %v1946
    %v2240 = vadd.f32 %v325, %v1960
    %v2241 = vadd.f32 %v326, %v1974
    %v2242 = vadd.f32 %v327, %v1988
    %v2243 = vadd.f32 %v328, %v2002
    %v2244 = vadd.f32 %v329, %v2016
    %v2245 = vadd.f32 %v330, %v2030
    %v2246 = vadd.f32 %v331, %v2044
    %v2247 = vadd.f32 %v332, %v2058
    %v2248 = vadd.f32 %v333, %v2072
    %v2249 = vadd.f32 %v334, %v2086
    %v2250 = vadd.f32 %v335, %v2100
    %v2251 = vadd.f32 %v336, %v2114
    %2252 = vst [vmem:[#allocation8] sm:$0xff] %v2116
    %2253 = vst [vmem:[#allocation8 + $0x8] sm:$0xff] %v2117
    %2254 = vst [vmem:[#allocation8 + $0x10] sm:$0xff] %v2118
    %2255 = vst [vmem:[#allocation8 + $0x18] sm:$0xff] %v2119
    %2256 = vst [vmem:[#allocation8 + $0x20] sm:$0xff] %v2120
    %2257 = vst [vmem:[#allocation8 + $0x28] sm:$0xff] %v2121
    %2258 = vst [vmem:[#allocation8 + $0x30] sm:$0xff] %v2122
    %2259 = vst [vmem:[#allocation8 + $0x38] sm:$0xff] %v2123
    %2260 = vst [vmem:[#allocation8 + $0x40] sm:$0xff] %v2124
    %2261 = vst [vmem:[#allocation8 + $0x48] sm:$0xff] %v2125
    %2262 = vst [vmem:[#allocation8 + $0x50] sm:$0xff] %v2126
    %2263 = vst [vmem:[#allocation8 + $0x58] sm:$0xff] %v2127
    %2264 = vst [vmem:[#allocation8 + $0x60] sm:$0xff] %v2128
    %2265 = vst [vmem:[#allocation8 + $0x68] sm:$0xff] %v2129
    %2266 = vst [vmem:[#allocation8 + $0x70] sm:$0xff] %v2130
    %2267 = vst [vmem:[#allocation8 + $0x78] sm:$0xff] %v2131
    %2268 = vst [vmem:[#allocation8 + $0x80] sm:$0xff] %v2132
    %2269 = vst [vmem:[#allocation8 + $0x88] sm:$0xff] %v2133
    %2270 = vst [vmem:[#allocation8 + $0x90] sm:$0xff] %v2134
    %2271 = vst [vmem:[#allocation8 + $0x98] sm:$0xff] %v2135
    %2272 = vst [vmem:[#allocation8 + $0xa0] sm:$0xff] %v2136
    %2273 = vst [vmem:[#allocation8 + $0xa8] sm:$0xff] %v2137
    %2274 = vst [vmem:[#allocation8 + $0xb0] sm:$0xff] %v2138
    %2275 = vst [vmem:[#allocation8 + $0xb8] sm:$0xff] %v2139
    %2276 = vst [vmem:[#allocation8 + $0xc0] sm:$0xff] %v2140
    %2277 = vst [vmem:[#allocation8 + $0xc8] sm:$0xff] %v2141
    %2278 = vst [vmem:[#allocation8 + $0xd0] sm:$0xff] %v2142
    %2279 = vst [vmem:[#allocation8 + $0xd8] sm:$0xff] %v2143
    %2280 = vst [vmem:[#allocation8 + $0xe0] sm:$0xff] %v2144
    %2281 = vst [vmem:[#allocation8 + $0xe8] sm:$0xff] %v2145
    %2282 = vst [vmem:[#allocation8 + $0xf0] sm:$0xff] %v2146
    %2283 = vst [vmem:[#allocation8 + $0xf8] sm:$0xff] %v2147
    %2284 = vst [vmem:[#allocation8 + $0x100] sm:$0xff] %v2148
    %2285 = vst [vmem:[#allocation8 + $0x108] sm:$0xff] %v2149
    %2286 = vst [vmem:[#allocation8 + $0x110] sm:$0xff] %v2150
    %2287 = vst [vmem:[#allocation8 + $0x118] sm:$0xff] %v2151
    %2288 = vst [vmem:[#allocation8 + $0x120] sm:$0xff] %v2152
    %2289 = vst [vmem:[#allocation8 + $0x128] sm:$0xff] %v2153
    %2290 = vst [vmem:[#allocation8 + $0x130] sm:$0xff] %v2154
    %2291 = vst [vmem:[#allocation8 + $0x138] sm:$0xff] %v2155
    %2292 = vst [vmem:[#allocation8 + $0x140] sm:$0xff] %v2156
    %2293 = vst [vmem:[#allocation8 + $0x148] sm:$0xff] %v2157
    %2294 = vst [vmem:[#allocation8 + $0x150] sm:$0xff] %v2158
    %2295 = vst [vmem:[#allocation8 + $0x158] sm:$0xff] %v2159
    %2296 = vst [vmem:[#allocation8 + $0x160] sm:$0xff] %v2160
    %2297 = vst [vmem:[#allocation8 + $0x168] sm:$0xff] %v2161
    %2298 = vst [vmem:[#allocation8 + $0x170] sm:$0xff] %v2162
    %2299 = vst [vmem:[#allocation8 + $0x178] sm:$0xff] %v2163
    %2300 = vst [vmem:[#allocation8 + $0x180] sm:$0xff] %v2164
    %2301 = vst [vmem:[#allocation8 + $0x188] sm:$0xff] %v2165
    %2302 = vst [vmem:[#allocation8 + $0x190] sm:$0xff] %v2166
    %2303 = vst [vmem:[#allocation8 + $0x198] sm:$0xff] %v2167
    %2304 = vst [vmem:[#allocation8 + $0x1a0] sm:$0xff] %v2168
    %2305 = vst [vmem:[#allocation8 + $0x1a8] sm:$0xff] %v2169
    %2306 = vst [vmem:[#allocation8 + $0x1b0] sm:$0xff] %v2170
    %2307 = vst [vmem:[#allocation8 + $0x1b8] sm:$0xff] %v2171
    %2308 = vst [vmem:[#allocation8 + $0x1c0] sm:$0xff] %v2172
    %2309 = vst [vmem:[#allocation8 + $0x1c8] sm:$0xff] %v2173
    %2310 = vst [vmem:[#allocation8 + $0x1d0] sm:$0xff] %v2174
    %2311 = vst [vmem:[#allocation8 + $0x1d8] sm:$0xff] %v2175
    %2312 = vst [vmem:[#allocation8 + $0x1e0] sm:$0xff] %v2176
    %2313 = vst [vmem:[#allocation8 + $0x1e8] sm:$0xff] %v2177
    %2314 = vst [vmem:[#allocation8 + $0x1f0] sm:$0xff] %v2178
    %2315 = vst [vmem:[#allocation8 + $0x1f8] sm:$0xff] %v2179
    %2316 = vst [vmem:[#allocation8 + $0x200] sm:$0xff] %v2180
    %2317 = vst [vmem:[#allocation8 + $0x208] sm:$0xff] %v2181
    %2318 = vst [vmem:[#allocation8 + $0x210] sm:$0xff] %v2182
    %2319 = vst [vmem:[#allocation8 + $0x218] sm:$0xff] %v2183
    %2320 = vst [vmem:[#allocation8 + $0x220] sm:$0xff] %v2184
    %2321 = vst [vmem:[#allocation8 + $0x228] sm:$0xff] %v2185
    %2322 = vst [vmem:[#allocation8 + $0x230] sm:$0xff] %v2186
    %2323 = vst [vmem:[#allocation8 + $0x238] sm:$0xff] %v2187
    %2324 = vst [vmem:[#allocation8 + $0x240] sm:$0xff] %v2188
    %2325 = vst [vmem:[#allocation8 + $0x248] sm:$0xff] %v2189
    %2326 = vst [vmem:[#allocation8 + $0x250] sm:$0xff] %v2190
    %2327 = vst [vmem:[#allocation8 + $0x258] sm:$0xff] %v2191
    %2328 = vst [vmem:[#allocation8 + $0x260] sm:$0xff] %v2192
    %2329 = vst [vmem:[#allocation8 + $0x268] sm:$0xff] %v2193
    %2330 = vst [vmem:[#allocation8 + $0x270] sm:$0xff] %v2194
    %2331 = vst [vmem:[#allocation8 + $0x278] sm:$0xff] %v2195
    %2332 = vst [vmem:[#allocation8 + $0x280] sm:$0xff] %v2196
    %2333 = vst [vmem:[#allocation8 + $0x288] sm:$0xff] %v2197
    %2334 = vst [vmem:[#allocation8 + $0x290] sm:$0xff] %v2198
    %2335 = vst [vmem:[#allocation8 + $0x298] sm:$0xff] %v2199
    %2336 = vst [vmem:[#allocation8 + $0x2a0] sm:$0xff] %v2200
    %2337 = vst [vmem:[#allocation8 + $0x2a8] sm:$0xff] %v2201
    %2338 = vst [vmem:[#allocation8 + $0x2b0] sm:$0xff] %v2202
    %2339 = vst [vmem:[#allocation8 + $0x2b8] sm:$0xff] %v2203
    %2340 = vst [vmem:[#allocation8 + $0x2c0] sm:$0xff] %v2204
    %2341 = vst [vmem:[#allocation8 + $0x2c8] sm:$0xff] %v2205
    %2342 = vst [vmem:[#allocation8 + $0x2d0] sm:$0xff] %v2206
    %2343 = vst [vmem:[#allocation8 + $0x2d8] sm:$0xff] %v2207
    %2344 = vst [vmem:[#allocation8 + $0x2e0] sm:$0xff] %v2208
    %2345 = vst [vmem:[#allocation8 + $0x2e8] sm:$0xff] %v2209
    %2346 = vst [vmem:[#allocation8 + $0x2f0] sm:$0xff] %v2210
    %2347 = vst [vmem:[#allocation8 + $0x2f8] sm:$0xff] %v2211
    %2348 = vst [vmem:[#allocation8 + $0x300] sm:$0xff] %v2212
    %2349 = vst [vmem:[#allocation8 + $0x308] sm:$0xff] %v2213
    %2350 = vst [vmem:[#allocation8 + $0x310] sm:$0xff] %v2214
    %2351 = vst [vmem:[#allocation8 + $0x318] sm:$0xff] %v2215
    %2352 = vst [vmem:[#allocation8 + $0x320] sm:$0xff] %v2216
    %2353 = vst [vmem:[#allocation8 + $0x328] sm:$0xff] %v2217
    %2354 = vst [vmem:[#allocation8 + $0x330] sm:$0xff] %v2218
    %2355 = vst [vmem:[#allocation8 + $0x338] sm:$0xff] %v2219
    %2356 = vst [vmem:[#allocation8 + $0x340] sm:$0xff] %v2220
    %2357 = vst [vmem:[#allocation8 + $0x348] sm:$0xff] %v2221
    %2358 = vst [vmem:[#allocation8 + $0x350] sm:$0xff] %v2222
    %2359 = vst [vmem:[#allocation8 + $0x358] sm:$0xff] %v2223
    %2360 = vst [vmem:[#allocation8 + $0x360] sm:$0xff] %v2224
    %2361 = vst [vmem:[#allocation8 + $0x368] sm:$0xff] %v2225
    %2362 = vst [vmem:[#allocation8 + $0x370] sm:$0xff] %v2226
    %2363 = vst [vmem:[#allocation8 + $0x378] sm:$0xff] %v2227
    %2364 = vst [vmem:[#allocation8 + $0x380] sm:$0xff] %v2228
    %2365 = vst [vmem:[#allocation8 + $0x388] sm:$0xff] %v2229
    %2366 = vst [vmem:[#allocation8 + $0x390] sm:$0xff] %v2230
    %2367 = vst [vmem:[#allocation8 + $0x398] sm:$0xff] %v2231
    %2368 = vst [vmem:[#allocation8 + $0x3a0] sm:$0xff] %v2232
    %2369 = vst [vmem:[#allocation8 + $0x3a8] sm:$0xff] %v2233
    %2370 = vst [vmem:[#allocation8 + $0x3b0] sm:$0xff] %v2234
    %2371 = vst [vmem:[#allocation8 + $0x3b8] sm:$0xff] %v2235
    %2372 = vst [vmem:[#allocation8 + $0x3c0] sm:$0xff] %v2236
    %2373 = vst [vmem:[#allocation8 + $0x3c8] sm:$0xff] %v2237
    %2374 = vst [vmem:[#allocation8 + $0x3d0] sm:$0xff] %v2238
    %2375 = vst [vmem:[#allocation8 + $0x3d8] sm:$0xff] %v2239
    %2376 = vst [vmem:[#allocation8 + $0x3e0] sm:$0xff] %v2240
    %2377 = vst [vmem:[#allocation8 + $0x3e8] sm:$0xff] %v2241
    %2378 = vst [vmem:[#allocation8 + $0x3f0] sm:$0xff] %v2242
    %2379 = vst [vmem:[#allocation8 + $0x3f8] sm:$0xff] %v2243
    %2380 = vst [vmem:[#allocation8 + $0x400] sm:$0xff] %v2244
    %2381 = vst [vmem:[#allocation8 + $0x408] sm:$0xff] %v2245
    %2382 = vst [vmem:[#allocation8 + $0x410] sm:$0xff] %v2246
    %2383 = vst [vmem:[#allocation8 + $0x418] sm:$0xff] %v2247
    %2384 = vst [vmem:[#allocation8 + $0x420] sm:$0xff] %v2248
    %2385 = vst [vmem:[#allocation8 + $0x428] sm:$0xff] %v2249
    %2386 = vst [vmem:[#allocation8 + $0x430] sm:$0xff] %v2250
    %2387 = vst [vmem:[#allocation8 + $0x438] sm:$0xff] %v2251
    // Predicated region
    $region30: #{tpu_custom_call.1} parent=1 // pred_check
      %p2388 = pneg %p61
    $region31: #{tpu_custom_call.1} parent=1 // pred_check_branch
      %2390 = sbr.rel (%p2388) target = $region33
    $region32: #{tpu_custom_call.1} parent=1 // pred_region
      %v2391 = vld [vmem:[#allocation8] sm:$0xff]
      %v2392 = vld [vmem:[#allocation8 + $0x8] sm:$0xff]
      %v2393 = vld [vmem:[#allocation8 + $0x10] sm:$0xff]
      %v2394 = vld [vmem:[#allocation8 + $0x18] sm:$0xff]
      %v2395 = vld [vmem:[#allocation8 + $0x20] sm:$0xff]
      %v2396 = vld [vmem:[#allocation8 + $0x28] sm:$0xff]
      %v2397 = vld [vmem:[#allocation8 + $0x30] sm:$0xff]
      %v2398 = vld [vmem:[#allocation8 + $0x38] sm:$0xff]
      %v2399 = vld [vmem:[#allocation8 + $0x40] sm:$0xff]
      %v2400 = vld [vmem:[#allocation8 + $0x48] sm:$0xff]
      %v2401 = vld [vmem:[#allocation8 + $0x50] sm:$0xff]
      %v2402 = vld [vmem:[#allocation8 + $0x58] sm:$0xff]
      %v2403 = vld [vmem:[#allocation8 + $0x60] sm:$0xff]
      %v2404 = vld [vmem:[#allocation8 + $0x68] sm:$0xff]
      %v2405 = vld [vmem:[#allocation8 + $0x70] sm:$0xff]
      %v2406 = vld [vmem:[#allocation8 + $0x78] sm:$0xff]
      %v2407 = vld [vmem:[#allocation8 + $0x80] sm:$0xff]
      %v2408 = vld [vmem:[#allocation8 + $0x88] sm:$0xff]
      %v2409 = vld [vmem:[#allocation8 + $0x90] sm:$0xff]
      %v2410 = vld [vmem:[#allocation8 + $0x98] sm:$0xff]
      %v2411 = vld [vmem:[#allocation8 + $0xa0] sm:$0xff]
      %v2412 = vld [vmem:[#allocation8 + $0xa8] sm:$0xff]
      %v2413 = vld [vmem:[#allocation8 + $0xb0] sm:$0xff]
      %v2414 = vld [vmem:[#allocation8 + $0xb8] sm:$0xff]
      %v2415 = vld [vmem:[#allocation8 + $0xc0] sm:$0xff]
      %v2416 = vld [vmem:[#allocation8 + $0xc8] sm:$0xff]
      %v2417 = vld [vmem:[#allocation8 + $0xd0] sm:$0xff]
      %v2418 = vld [vmem:[#allocation8 + $0xd8] sm:$0xff]
      %v2419 = vld [vmem:[#allocation8 + $0xe0] sm:$0xff]
      %v2420 = vld [vmem:[#allocation8 + $0xe8] sm:$0xff]
      %v2421 = vld [vmem:[#allocation8 + $0xf0] sm:$0xff]
      %v2422 = vld [vmem:[#allocation8 + $0xf8] sm:$0xff]
      %v2423 = vld [vmem:[#allocation8 + $0x100] sm:$0xff]
      %v2424 = vld [vmem:[#allocation8 + $0x108] sm:$0xff]
      %v2425 = vld [vmem:[#allocation8 + $0x110] sm:$0xff]
      %v2426 = vld [vmem:[#allocation8 + $0x118] sm:$0xff]
      %v2427 = vld [vmem:[#allocation8 + $0x120] sm:$0xff]
      %v2428 = vld [vmem:[#allocation8 + $0x128] sm:$0xff]
      %v2429 = vld [vmem:[#allocation8 + $0x130] sm:$0xff]
      %v2430 = vld [vmem:[#allocation8 + $0x138] sm:$0xff]
      %v2431 = vld [vmem:[#allocation8 + $0x140] sm:$0xff]
      %v2432 = vld [vmem:[#allocation8 + $0x148] sm:$0xff]
      %v2433 = vld [vmem:[#allocation8 + $0x150] sm:$0xff]
      %v2434 = vld [vmem:[#allocation8 + $0x158] sm:$0xff]
      %v2435 = vld [vmem:[#allocation8 + $0x160] sm:$0xff]
      %v2436 = vld [vmem:[#allocation8 + $0x168] sm:$0xff]
      %v2437 = vld [vmem:[#allocation8 + $0x170] sm:$0xff]
      %v2438 = vld [vmem:[#allocation8 + $0x178] sm:$0xff]
      %v2439 = vld [vmem:[#allocation8 + $0x180] sm:$0xff]
      %v2440 = vld [vmem:[#allocation8 + $0x188] sm:$0xff]
      %v2441 = vld [vmem:[#allocation8 + $0x190] sm:$0xff]
      %v2442 = vld [vmem:[#allocation8 + $0x198] sm:$0xff]
      %v2443 = vld [vmem:[#allocation8 + $0x1a0] sm:$0xff]
      %v2444 = vld [vmem:[#allocation8 + $0x1a8] sm:$0xff]
      %v2445 = vld [vmem:[#allocation8 + $0x1b0] sm:$0xff]
      %v2446 = vld [vmem:[#allocation8 + $0x1b8] sm:$0xff]
      %v2447 = vld [vmem:[#allocation8 + $0x1c0] sm:$0xff]
      %v2448 = vld [vmem:[#allocation8 + $0x1c8] sm:$0xff]
      %v2449 = vld [vmem:[#allocation8 + $0x1d0] sm:$0xff]
      %v2450 = vld [vmem:[#allocation8 + $0x1d8] sm:$0xff]
      %v2451 = vld [vmem:[#allocation8 + $0x1e0] sm:$0xff]
      %v2452 = vld [vmem:[#allocation8 + $0x1e8] sm:$0xff]
      %v2453 = vld [vmem:[#allocation8 + $0x1f0] sm:$0xff]
      %v2454 = vld [vmem:[#allocation8 + $0x1f8] sm:$0xff]
      %v2455 = vld [vmem:[#allocation8 + $0x200] sm:$0xff]
      %v2456 = vld [vmem:[#allocation8 + $0x208] sm:$0xff]
      %v2457 = vld [vmem:[#allocation8 + $0x210] sm:$0xff]
      %v2458 = vld [vmem:[#allocation8 + $0x218] sm:$0xff]
      %v2459 = vld [vmem:[#allocation8 + $0x220] sm:$0xff]
      %v2460 = vld [vmem:[#allocation8 + $0x228] sm:$0xff]
      %v2461 = vld [vmem:[#allocation8 + $0x230] sm:$0xff]
      %v2462 = vld [vmem:[#allocation8 + $0x238] sm:$0xff]
      %v2463 = vld [vmem:[#allocation8 + $0x240] sm:$0xff]
      %v2464 = vld [vmem:[#allocation8 + $0x248] sm:$0xff]
      %v2465 = vld [vmem:[#allocation8 + $0x250] sm:$0xff]
      %v2466 = vld [vmem:[#allocation8 + $0x258] sm:$0xff]
      %v2467 = vld [vmem:[#allocation8 + $0x260] sm:$0xff]
      %v2468 = vld [vmem:[#allocation8 + $0x268] sm:$0xff]
      %v2469 = vld [vmem:[#allocation8 + $0x270] sm:$0xff]
      %v2470 = vld [vmem:[#allocation8 + $0x278] sm:$0xff]
      %v2471 = vld [vmem:[#allocation8 + $0x280] sm:$0xff]
      %v2472 = vld [vmem:[#allocation8 + $0x288] sm:$0xff]
      %v2473 = vld [vmem:[#allocation8 + $0x290] sm:$0xff]
      %v2474 = vld [vmem:[#allocation8 + $0x298] sm:$0xff]
      %v2475 = vld [vmem:[#allocation8 + $0x2a0] sm:$0xff]
      %v2476 = vld [vmem:[#allocation8 + $0x2a8] sm:$0xff]
      %v2477 = vld [vmem:[#allocation8 + $0x2b0] sm:$0xff]
      %v2478 = vld [vmem:[#allocation8 + $0x2b8] sm:$0xff]
      %v2479 = vld [vmem:[#allocation8 + $0x2c0] sm:$0xff]
      %v2480 = vld [vmem:[#allocation8 + $0x2c8] sm:$0xff]
      %v2481 = vld [vmem:[#allocation8 + $0x2d0] sm:$0xff]
      %v2482 = vld [vmem:[#allocation8 + $0x2d8] sm:$0xff]
      %v2483 = vld [vmem:[#allocation8 + $0x2e0] sm:$0xff]
      %v2484 = vld [vmem:[#allocation8 + $0x2e8] sm:$0xff]
      %v2485 = vld [vmem:[#allocation8 + $0x2f0] sm:$0xff]
      %v2486 = vld [vmem:[#allocation8 + $0x2f8] sm:$0xff]
      %v2487 = vld [vmem:[#allocation8 + $0x300] sm:$0xff]
      %v2488 = vld [vmem:[#allocation8 + $0x308] sm:$0xff]
      %v2489 = vld [vmem:[#allocation8 + $0x310] sm:$0xff]
      %v2490 = vld [vmem:[#allocation8 + $0x318] sm:$0xff]
      %v2491 = vld [vmem:[#allocation8 + $0x320] sm:$0xff]
      %v2492 = vld [vmem:[#allocation8 + $0x328] sm:$0xff]
      %v2493 = vld [vmem:[#allocation8 + $0x330] sm:$0xff]
      %v2494 = vld [vmem:[#allocation8 + $0x338] sm:$0xff]
      %v2495 = vld [vmem:[#allocation8 + $0x340] sm:$0xff]
      %v2496 = vld [vmem:[#allocation8 + $0x348] sm:$0xff]
      %v2497 = vld [vmem:[#allocation8 + $0x350] sm:$0xff]
      %v2498 = vld [vmem:[#allocation8 + $0x358] sm:$0xff]
      %v2499 = vld [vmem:[#allocation8 + $0x360] sm:$0xff]
      %v2500 = vld [vmem:[#allocation8 + $0x368] sm:$0xff]
      %v2501 = vld [vmem:[#allocation8 + $0x370] sm:$0xff]
      %v2502 = vld [vmem:[#allocation8 + $0x378] sm:$0xff]
      %v2503 = vld [vmem:[#allocation8 + $0x380] sm:$0xff]
      %v2504 = vld [vmem:[#allocation8 + $0x388] sm:$0xff]
      %v2505 = vld [vmem:[#allocation8 + $0x390] sm:$0xff]
      %v2506 = vld [vmem:[#allocation8 + $0x398] sm:$0xff]
      %v2507 = vld [vmem:[#allocation8 + $0x3a0] sm:$0xff]
      %v2508 = vld [vmem:[#allocation8 + $0x3a8] sm:$0xff]
      %v2509 = vld [vmem:[#allocation8 + $0x3b0] sm:$0xff]
      %v2510 = vld [vmem:[#allocation8 + $0x3b8] sm:$0xff]
      %v2511 = vld [vmem:[#allocation8 + $0x3c0] sm:$0xff]
      %v2512 = vld [vmem:[#allocation8 + $0x3c8] sm:$0xff]
      %v2513 = vld [vmem:[#allocation8 + $0x3d0] sm:$0xff]
      %v2514 = vld [vmem:[#allocation8 + $0x3d8] sm:$0xff]
      %v2515 = vld [vmem:[#allocation8 + $0x3e0] sm:$0xff]
      %v2516 = vld [vmem:[#allocation8 + $0x3e8] sm:$0xff]
      %v2517 = vld [vmem:[#allocation8 + $0x3f0] sm:$0xff]
      %v2518 = vld [vmem:[#allocation8 + $0x3f8] sm:$0xff]
      %v2519 = vld [vmem:[#allocation8 + $0x400] sm:$0xff]
      %v2520 = vld [vmem:[#allocation8 + $0x408] sm:$0xff]
      %v2521 = vld [vmem:[#allocation8 + $0x410] sm:$0xff]
      %v2522 = vld [vmem:[#allocation8 + $0x418] sm:$0xff]
      %v2523 = vld [vmem:[#allocation8 + $0x420] sm:$0xff]
      %v2524 = vld [vmem:[#allocation8 + $0x428] sm:$0xff]
      %v2525 = vld [vmem:[#allocation8 + $0x430] sm:$0xff]
      %v2526 = vld [vmem:[#allocation8 + $0x438] sm:$0xff]
      %v2527 = vld [vmem:[#allocation7] sm:$0xff]
      %v2528 = vld [vmem:[#allocation7 + $0x8] sm:$0xff]
      %v2529 = vld [vmem:[#allocation7 + $0x10] sm:$0xff]
      %v2530 = vld [vmem:[#allocation7 + $0x18] sm:$0xff]
      %v2531 = vld [vmem:[#allocation7 + $0x20] sm:$0xff]
      %v2532 = vld [vmem:[#allocation7 + $0x28] sm:$0xff]
      %v2533 = vld [vmem:[#allocation7 + $0x30] sm:$0xff]
      %v2534 = vld [vmem:[#allocation7 + $0x38] sm:$0xff]
      %v2535 = vld [vmem:[#allocation7 + $0x40] sm:$0xf]
      %v2545 = vperm.slane %v2527, 0
      %v2546 = vperm.slane %v2527, 1
      %v2547 = vperm.slane %v2527, 2
      %v2548 = vperm.slane %v2527, 3
      %v2549 = vperm.slane %v2527, 4
      %v2550 = vperm.slane %v2527, 5
      %v2551 = vperm.slane %v2527, 6
      %v2552 = vperm.slane %v2527, 7
      %v2553 = vperm.slane %v2528, 0
      %v2554 = vperm.slane %v2528, 1
      %v2555 = vperm.slane %v2528, 2
      %v2556 = vperm.slane %v2528, 3
      %v2557 = vperm.slane %v2528, 4
      %v2558 = vperm.slane %v2528, 5
      %v2559 = vperm.slane %v2528, 6
      %v2560 = vperm.slane %v2528, 7
      %v2561 = vperm.slane %v2529, 0
      %v2562 = vperm.slane %v2529, 1
      %v2563 = vperm.slane %v2529, 2
      %v2564 = vperm.slane %v2529, 3
      %v2565 = vperm.slane %v2529, 4
      %v2566 = vperm.slane %v2529, 5
      %v2567 = vperm.slane %v2529, 6
      %v2568 = vperm.slane %v2529, 7
      %v2569 = vperm.slane %v2530, 0
      %v2570 = vperm.slane %v2530, 1
      %v2571 = vperm.slane %v2530, 2
      %v2572 = vperm.slane %v2530, 3
      %v2573 = vperm.slane %v2530, 4
      %v2574 = vperm.slane %v2530, 5
      %v2575 = vperm.slane %v2530, 6
      %v2576 = vperm.slane %v2530, 7
      %v2577 = vperm.slane %v2531, 0
      %v2578 = vperm.slane %v2531, 1
      %v2579 = vperm.slane %v2531, 2
      %v2580 = vperm.slane %v2531, 3
      %v2581 = vperm.slane %v2531, 4
      %v2582 = vperm.slane %v2531, 5
      %v2583 = vperm.slane %v2531, 6
      %v2584 = vperm.slane %v2531, 7
      %v2585 = vperm.slane %v2532, 0
      %v2586 = vperm.slane %v2532, 1
      %v2587 = vperm.slane %v2532, 2
      %v2588 = vperm.slane %v2532, 3
      %v2589 = vperm.slane %v2532, 4
      %v2590 = vperm.slane %v2532, 5
      %v2591 = vperm.slane %v2532, 6
      %v2592 = vperm.slane %v2532, 7
      %v2593 = vperm.slane %v2533, 0
      %v2594 = vperm.slane %v2533, 1
      %v2595 = vperm.slane %v2533, 2
      %v2596 = vperm.slane %v2533, 3
      %v2597 = vperm.slane %v2533, 4
      %v2598 = vperm.slane %v2533, 5
      %v2599 = vperm.slane %v2533, 6
      %v2600 = vperm.slane %v2533, 7
      %v2601 = vperm.slane %v2534, 0
      %v2602 = vperm.slane %v2534, 1
      %v2603 = vperm.slane %v2534, 2
      %v2604 = vperm.slane %v2534, 3
      %v2605 = vperm.slane %v2534, 4
      %v2606 = vperm.slane %v2534, 5
      %v2607 = vperm.slane %v2534, 6
      %v2608 = vperm.slane %v2534, 7
      %v2609 = vperm.slane %v2535, 0
      %v2610 = vperm.slane %v2535, 1
      %v2611 = vperm.slane %v2535, 2
      %v2612 = vperm.slane %v2535, 3
      %v2681 = vadd.f32 %v2391, %v2545
      %v2682 = vadd.f32 %v2392, %v2546
      %v2683 = vadd.f32 %v2393, %v2547
      %v2684 = vadd.f32 %v2394, %v2548
      %v2685 = vadd.f32 %v2395, %v2549
      %v2686 = vadd.f32 %v2396, %v2550
      %v2687 = vadd.f32 %v2397, %v2551
      %v2688 = vadd.f32 %v2398, %v2552
      %v2689 = vadd.f32 %v2399, %v2553
      %v2690 = vadd.f32 %v2400, %v2554
      %v2691 = vadd.f32 %v2401, %v2555
      %v2692 = vadd.f32 %v2402, %v2556
      %v2693 = vadd.f32 %v2403, %v2557
      %v2694 = vadd.f32 %v2404, %v2558
      %v2695 = vadd.f32 %v2405, %v2559
      %v2696 = vadd.f32 %v2406, %v2560
      %v2697 = vadd.f32 %v2407, %v2561
      %v2698 = vadd.f32 %v2408, %v2562
      %v2699 = vadd.f32 %v2409, %v2563
      %v2700 = vadd.f32 %v2410, %v2564
      %v2701 = vadd.f32 %v2411, %v2565
      %v2702 = vadd.f32 %v2412, %v2566
      %v2703 = vadd.f32 %v2413, %v2567
      %v2704 = vadd.f32 %v2414, %v2568
      %v2705 = vadd.f32 %v2415, %v2569
      %v2706 = vadd.f32 %v2416, %v2570
      %v2707 = vadd.f32 %v2417, %v2571
      %v2708 = vadd.f32 %v2418, %v2572
      %v2709 = vadd.f32 %v2419, %v2573
      %v2710 = vadd.f32 %v2420, %v2574
      %v2711 = vadd.f32 %v2421, %v2575
      %v2712 = vadd.f32 %v2422, %v2576
      %v2713 = vadd.f32 %v2423, %v2577
      %v2714 = vadd.f32 %v2424, %v2578
      %v2715 = vadd.f32 %v2425, %v2579
      %v2716 = vadd.f32 %v2426, %v2580
      %v2717 = vadd.f32 %v2427, %v2581
      %v2718 = vadd.f32 %v2428, %v2582
      %v2719 = vadd.f32 %v2429, %v2583
      %v2720 = vadd.f32 %v2430, %v2584
      %v2721 = vadd.f32 %v2431, %v2585
      %v2722 = vadd.f32 %v2432, %v2586
      %v2723 = vadd.f32 %v2433, %v2587
      %v2724 = vadd.f32 %v2434, %v2588
      %v2725 = vadd.f32 %v2435, %v2589
      %v2726 = vadd.f32 %v2436, %v2590
      %v2727 = vadd.f32 %v2437, %v2591
      %v2728 = vadd.f32 %v2438, %v2592
      %v2729 = vadd.f32 %v2439, %v2593
      %v2730 = vadd.f32 %v2440, %v2594
      %v2731 = vadd.f32 %v2441, %v2595
      %v2732 = vadd.f32 %v2442, %v2596
      %v2733 = vadd.f32 %v2443, %v2597
      %v2734 = vadd.f32 %v2444, %v2598
      %v2735 = vadd.f32 %v2445, %v2599
      %v2736 = vadd.f32 %v2446, %v2600
      %v2737 = vadd.f32 %v2447, %v2601
      %v2738 = vadd.f32 %v2448, %v2602
      %v2739 = vadd.f32 %v2449, %v2603
      %v2740 = vadd.f32 %v2450, %v2604
      %v2741 = vadd.f32 %v2451, %v2605
      %v2742 = vadd.f32 %v2452, %v2606
      %v2743 = vadd.f32 %v2453, %v2607
      %v2744 = vadd.f32 %v2454, %v2608
      %v2745 = vadd.f32 %v2455, %v2609
      %v2746 = vadd.f32 %v2456, %v2610
      %v2747 = vadd.f32 %v2457, %v2611
      %v2748 = vadd.f32 %v2458, %v2612
      %v2749 = vadd.f32 %v2459, %v2545
      %v2750 = vadd.f32 %v2460, %v2546
      %v2751 = vadd.f32 %v2461, %v2547
      %v2752 = vadd.f32 %v2462, %v2548
      %v2753 = vadd.f32 %v2463, %v2549
      %v2754 = vadd.f32 %v2464, %v2550
      %v2755 = vadd.f32 %v2465, %v2551
      %v2756 = vadd.f32 %v2466, %v2552
      %v2757 = vadd.f32 %v2467, %v2553
      %v2758 = vadd.f32 %v2468, %v2554
      %v2759 = vadd.f32 %v2469, %v2555
      %v2760 = vadd.f32 %v2470, %v2556
      %v2761 = vadd.f32 %v2471, %v2557
      %v2762 = vadd.f32 %v2472, %v2558
      %v2763 = vadd.f32 %v2473, %v2559
      %v2764 = vadd.f32 %v2474, %v2560
      %v2765 = vadd.f32 %v2475, %v2561
      %v2766 = vadd.f32 %v2476, %v2562
      %v2767 = vadd.f32 %v2477, %v2563
      %v2768 = vadd.f32 %v2478, %v2564
      %v2769 = vadd.f32 %v2479, %v2565
      %v2770 = vadd.f32 %v2480, %v2566
      %v2771 = vadd.f32 %v2481, %v2567
      %v2772 = vadd.f32 %v2482, %v2568
      %v2773 = vadd.f32 %v2483, %v2569
      %v2774 = vadd.f32 %v2484, %v2570
      %v2775 = vadd.f32 %v2485, %v2571
      %v2776 = vadd.f32 %v2486, %v2572
      %v2777 = vadd.f32 %v2487, %v2573
      %v2778 = vadd.f32 %v2488, %v2574
      %v2779 = vadd.f32 %v2489, %v2575
      %v2780 = vadd.f32 %v2490, %v2576
      %v2781 = vadd.f32 %v2491, %v2577
      %v2782 = vadd.f32 %v2492, %v2578
      %v2783 = vadd.f32 %v2493, %v2579
      %v2784 = vadd.f32 %v2494, %v2580
      %v2785 = vadd.f32 %v2495, %v2581
      %v2786 = vadd.f32 %v2496, %v2582
      %v2787 = vadd.f32 %v2497, %v2583
      %v2788 = vadd.f32 %v2498, %v2584
      %v2789 = vadd.f32 %v2499, %v2585
      %v2790 = vadd.f32 %v2500, %v2586
      %v2791 = vadd.f32 %v2501, %v2587
      %v2792 = vadd.f32 %v2502, %v2588
      %v2793 = vadd.f32 %v2503, %v2589
      %v2794 = vadd.f32 %v2504, %v2590
      %v2795 = vadd.f32 %v2505, %v2591
      %v2796 = vadd.f32 %v2506, %v2592
      %v2797 = vadd.f32 %v2507, %v2593
      %v2798 = vadd.f32 %v2508, %v2594
      %v2799 = vadd.f32 %v2509, %v2595
      %v2800 = vadd.f32 %v2510, %v2596
      %v2801 = vadd.f32 %v2511, %v2597
      %v2802 = vadd.f32 %v2512, %v2598
      %v2803 = vadd.f32 %v2513, %v2599
      %v2804 = vadd.f32 %v2514, %v2600
      %v2805 = vadd.f32 %v2515, %v2601
      %v2806 = vadd.f32 %v2516, %v2602
      %v2807 = vadd.f32 %v2517, %v2603
      %v2808 = vadd.f32 %v2518, %v2604
      %v2809 = vadd.f32 %v2519, %v2605
      %v2810 = vadd.f32 %v2520, %v2606
      %v2811 = vadd.f32 %v2521, %v2607
      %v2812 = vadd.f32 %v2522, %v2608
      %v2813 = vadd.f32 %v2523, %v2609
      %v2814 = vadd.f32 %v2524, %v2610
      %v2815 = vadd.f32 %v2525, %v2611
      %v2816 = vadd.f32 %v2526, %v2612
      %v2817 = vrcp.pop 2.0
      %v2818 = vmul.f32 2.0, %v2817
      %v2819 = vsub.f32 1.0, %v2818
      %v2820 = vmul.f32 %v2817, %v2819
      %v2821 = vadd.f32 %v2817, %v2820
      %vm2822 = vweird.f32 %v2817
      %v2823 = vsel %vm2822, %v2817, %v2821
      %v2824 = vmul.f32 %v2681, %v2823
      %v2825 = vmul.f32 %v2682, %v2823
      %v2826 = vmul.f32 %v2683, %v2823
      %v2827 = vmul.f32 %v2684, %v2823
      %v2828 = vmul.f32 %v2685, %v2823
      %v2829 = vmul.f32 %v2686, %v2823
      %v2830 = vmul.f32 %v2687, %v2823
      %v2831 = vmul.f32 %v2688, %v2823
      %v2832 = vmul.f32 %v2689, %v2823
      %v2833 = vmul.f32 %v2690, %v2823
      %v2834 = vmul.f32 %v2691, %v2823
      %v2835 = vmul.f32 %v2692, %v2823
      %v2836 = vmul.f32 %v2693, %v2823
      %v2837 = vmul.f32 %v2694, %v2823
      %v2838 = vmul.f32 %v2695, %v2823
      %v2839 = vmul.f32 %v2696, %v2823
      %v2840 = vmul.f32 %v2697, %v2823
      %v2841 = vmul.f32 %v2698, %v2823
      %v2842 = vmul.f32 %v2699, %v2823
      %v2843 = vmul.f32 %v2700, %v2823
      %v2844 = vmul.f32 %v2701, %v2823
      %v2845 = vmul.f32 %v2702, %v2823
      %v2846 = vmul.f32 %v2703, %v2823
      %v2847 = vmul.f32 %v2704, %v2823
      %v2848 = vmul.f32 %v2705, %v2823
      %v2849 = vmul.f32 %v2706, %v2823
      %v2850 = vmul.f32 %v2707, %v2823
      %v2851 = vmul.f32 %v2708, %v2823
      %v2852 = vmul.f32 %v2709, %v2823
      %v2853 = vmul.f32 %v2710, %v2823
      %v2854 = vmul.f32 %v2711, %v2823
      %v2855 = vmul.f32 %v2712, %v2823
      %v2856 = vmul.f32 %v2713, %v2823
      %v2857 = vmul.f32 %v2714, %v2823
      %v2858 = vmul.f32 %v2715, %v2823
      %v2859 = vmul.f32 %v2716, %v2823
      %v2860 = vmul.f32 %v2717, %v2823
      %v2861 = vmul.f32 %v2718, %v2823
      %v2862 = vmul.f32 %v2719, %v2823
      %v2863 = vmul.f32 %v2720, %v2823
      %v2864 = vmul.f32 %v2721, %v2823
      %v2865 = vmul.f32 %v2722, %v2823
      %v2866 = vmul.f32 %v2723, %v2823
      %v2867 = vmul.f32 %v2724, %v2823
      %v2868 = vmul.f32 %v2725, %v2823
      %v2869 = vmul.f32 %v2726, %v2823
      %v2870 = vmul.f32 %v2727, %v2823
      %v2871 = vmul.f32 %v2728, %v2823
      %v2872 = vmul.f32 %v2729, %v2823
      %v2873 = vmul.f32 %v2730, %v2823
      %v2874 = vmul.f32 %v2731, %v2823
      %v2875 = vmul.f32 %v2732, %v2823
      %v2876 = vmul.f32 %v2733, %v2823
      %v2877 = vmul.f32 %v2734, %v2823
      %v2878 = vmul.f32 %v2735, %v2823
      %v2879 = vmul.f32 %v2736, %v2823
      %v2880 = vmul.f32 %v2737, %v2823
      %v2881 = vmul.f32 %v2738, %v2823
      %v2882 = vmul.f32 %v2739, %v2823
      %v2883 = vmul.f32 %v2740, %v2823
      %v2884 = vmul.f32 %v2741, %v2823
      %v2885 = vmul.f32 %v2742, %v2823
      %v2886 = vmul.f32 %v2743, %v2823
      %v2887 = vmul.f32 %v2744, %v2823
      %v2888 = vmul.f32 %v2745, %v2823
      %v2889 = vmul.f32 %v2746, %v2823
      %v2890 = vmul.f32 %v2747, %v2823
      %v2891 = vmul.f32 %v2748, %v2823
      %v2892 = vmul.f32 %v2749, %v2823
      %v2893 = vmul.f32 %v2750, %v2823
      %v2894 = vmul.f32 %v2751, %v2823
      %v2895 = vmul.f32 %v2752, %v2823
      %v2896 = vmul.f32 %v2753, %v2823
      %v2897 = vmul.f32 %v2754, %v2823
      %v2898 = vmul.f32 %v2755, %v2823
      %v2899 = vmul.f32 %v2756, %v2823
      %v2900 = vmul.f32 %v2757, %v2823
      %v2901 = vmul.f32 %v2758, %v2823
      %v2902 = vmul.f32 %v2759, %v2823
      %v2903 = vmul.f32 %v2760, %v2823
      %v2904 = vmul.f32 %v2761, %v2823
      %v2905 = vmul.f32 %v2762, %v2823
      %v2906 = vmul.f32 %v2763, %v2823
      %v2907 = vmul.f32 %v2764, %v2823
      %v2908 = vmul.f32 %v2765, %v2823
      %v2909 = vmul.f32 %v2766, %v2823
      %v2910 = vmul.f32 %v2767, %v2823
      %v2911 = vmul.f32 %v2768, %v2823
      %v2912 = vmul.f32 %v2769, %v2823
      %v2913 = vmul.f32 %v2770, %v2823
      %v2914 = vmul.f32 %v2771, %v2823
      %v2915 = vmul.f32 %v2772, %v2823
      %v2916 = vmul.f32 %v2773, %v2823
      %v2917 = vmul.f32 %v2774, %v2823
      %v2918 = vmul.f32 %v2775, %v2823
      %v2919 = vmul.f32 %v2776, %v2823
      %v2920 = vmul.f32 %v2777, %v2823
      %v2921 = vmul.f32 %v2778, %v2823
      %v2922 = vmul.f32 %v2779, %v2823
      %v2923 = vmul.f32 %v2780, %v2823
      %v2924 = vmul.f32 %v2781, %v2823
      %v2925 = vmul.f32 %v2782, %v2823
      %v2926 = vmul.f32 %v2783, %v2823
      %v2927 = vmul.f32 %v2784, %v2823
      %v2928 = vmul.f32 %v2785, %v2823
      %v2929 = vmul.f32 %v2786, %v2823
      %v2930 = vmul.f32 %v2787, %v2823
      %v2931 = vmul.f32 %v2788, %v2823
      %v2932 = vmul.f32 %v2789, %v2823
      %v2933 = vmul.f32 %v2790, %v2823
      %v2934 = vmul.f32 %v2791, %v2823
      %v2935 = vmul.f32 %v2792, %v2823
      %v2936 = vmul.f32 %v2793, %v2823
      %v2937 = vmul.f32 %v2794, %v2823
      %v2938 = vmul.f32 %v2795, %v2823
      %v2939 = vmul.f32 %v2796, %v2823
      %v2940 = vmul.f32 %v2797, %v2823
      %v2941 = vmul.f32 %v2798, %v2823
      %v2942 = vmul.f32 %v2799, %v2823
      %v2943 = vmul.f32 %v2800, %v2823
      %v2944 = vmul.f32 %v2801, %v2823
      %v2945 = vmul.f32 %v2802, %v2823
      %v2946 = vmul.f32 %v2803, %v2823
      %v2947 = vmul.f32 %v2804, %v2823
      %v2948 = vmul.f32 %v2805, %v2823
      %v2949 = vmul.f32 %v2806, %v2823
      %v2950 = vmul.f32 %v2807, %v2823
      %v2951 = vmul.f32 %v2808, %v2823
      %v2952 = vmul.f32 %v2809, %v2823
      %v2953 = vmul.f32 %v2810, %v2823
      %v2954 = vmul.f32 %v2811, %v2823
      %v2955 = vmul.f32 %v2812, %v2823
      %v2956 = vmul.f32 %v2813, %v2823
      %v2957 = vmul.f32 %v2814, %v2823
      %v2958 = vmul.f32 %v2815, %v2823
      %v2959 = vmul.f32 %v2816, %v2823
      %v2960 = vmax.f32 %v2824, %v2826
      %v2961 = vmax.f32 %v2825, %v2827
      %v2962 = vmax.f32 %v2960, %v2828
      %v2963 = vmax.f32 %v2961, %v2829
      %v2964 = vmax.f32 %v2962, %v2830
      %v2965 = vmax.f32 %v2963, %v2831
      %v2966 = vmax.f32 %v2964, %v2832
      %v2967 = vmax.f32 %v2965, %v2833
      %v2968 = vmax.f32 %v2966, %v2834
      %v2969 = vmax.f32 %v2967, %v2835
      %v2970 = vmax.f32 %v2968, %v2836
      %v2971 = vmax.f32 %v2969, %v2837
      %v2972 = vmax.f32 %v2970, %v2838
      %v2973 = vmax.f32 %v2971, %v2839
      %v2974 = vmax.f32 %v2972, %v2840
      %v2975 = vmax.f32 %v2973, %v2841
      %v2976 = vmax.f32 %v2974, %v2842
      %v2977 = vmax.f32 %v2975, %v2843
      %v2978 = vmax.f32 %v2976, %v2844
      %v2979 = vmax.f32 %v2977, %v2845
      %v2980 = vmax.f32 %v2978, %v2846
      %v2981 = vmax.f32 %v2979, %v2847
      %v2982 = vmax.f32 %v2980, %v2848
      %v2983 = vmax.f32 %v2981, %v2849
      %v2984 = vmax.f32 %v2982, %v2850
      %v2985 = vmax.f32 %v2983, %v2851
      %v2986 = vmax.f32 %v2984, %v2852
      %v2987 = vmax.f32 %v2985, %v2853
      %v2988 = vmax.f32 %v2986, %v2854
      %v2989 = vmax.f32 %v2987, %v2855
      %v2990 = vmax.f32 %v2988, %v2856
      %v2991 = vmax.f32 %v2989, %v2857
      %v2992 = vmax.f32 %v2990, %v2858
      %v2993 = vmax.f32 %v2991, %v2859
      %v2994 = vmax.f32 %v2992, %v2860
      %v2995 = vmax.f32 %v2993, %v2861
      %v2996 = vmax.f32 %v2994, %v2862
      %v2997 = vmax.f32 %v2995, %v2863
      %v2998 = vmax.f32 %v2996, %v2864
      %v2999 = vmax.f32 %v2997, %v2865
      %v3000 = vmax.f32 %v2998, %v2866
      %v3001 = vmax.f32 %v2999, %v2867
      %v3002 = vmax.f32 %v3000, %v2868
      %v3003 = vmax.f32 %v3001, %v2869
      %v3004 = vmax.f32 %v3002, %v2870
      %v3005 = vmax.f32 %v3003, %v2871
      %v3006 = vmax.f32 %v3004, %v2872
      %v3007 = vmax.f32 %v3005, %v2873
      %v3008 = vmax.f32 %v3006, %v2874
      %v3009 = vmax.f32 %v3007, %v2875
      %v3010 = vmax.f32 %v3008, %v2876
      %v3011 = vmax.f32 %v3009, %v2877
      %v3012 = vmax.f32 %v3010, %v2878
      %v3013 = vmax.f32 %v3011, %v2879
      %v3014 = vmax.f32 %v3012, %v2880
      %v3015 = vmax.f32 %v3013, %v2881
      %v3016 = vmax.f32 %v3014, %v2882
      %v3017 = vmax.f32 %v3015, %v2883
      %v3018 = vmax.f32 %v3016, %v2884
      %v3019 = vmax.f32 %v3017, %v2885
      %v3020 = vmax.f32 %v3018, %v2886
      %v3021 = vmax.f32 %v3019, %v2887
      %v3022 = vmax.f32 %v3020, %v2888
      %v3023 = vmax.f32 %v3021, %v2889
      %v3024 = vmax.f32 %v3022, %v2890
      %v3025 = vmax.f32 %v3023, %v2891
      %v3026 = vmax.f32 %v3024, %v3025
      %3027 = vmax.xlane.f32.xlu0 %v3026
      %v3028 = vpop.xlane.xlu0 %3027
      %v3029 = vmax.f32 %v2892, %v2894
      %v3030 = vmax.f32 %v2893, %v2895
      %v3031 = vmax.f32 %v3029, %v2896
      %v3032 = vmax.f32 %v3030, %v2897
      %v3033 = vmax.f32 %v3031, %v2898
      %v3034 = vmax.f32 %v3032, %v2899
      %v3035 = vmax.f32 %v3033, %v2900
      %v3036 = vmax.f32 %v3034, %v2901
      %v3037 = vmax.f32 %v3035, %v2902
      %v3038 = vmax.f32 %v3036, %v2903
      %v3039 = vmax.f32 %v3037, %v2904
      %v3040 = vmax.f32 %v3038, %v2905
      %v3041 = vmax.f32 %v3039, %v2906
      %v3042 = vmax.f32 %v3040, %v2907
      %v3043 = vmax.f32 %v3041, %v2908
      %v3044 = vmax.f32 %v3042, %v2909
      %v3045 = vmax.f32 %v3043, %v2910
      %v3046 = vmax.f32 %v3044, %v2911
      %v3047 = vmax.f32 %v3045, %v2912
      %v3048 = vmax.f32 %v3046, %v2913
      %v3049 = vmax.f32 %v3047, %v2914
      %v3050 = vmax.f32 %v3048, %v2915
      %v3051 = vmax.f32 %v3049, %v2916
      %v3052 = vmax.f32 %v3050, %v2917
      %v3053 = vmax.f32 %v3051, %v2918
      %v3054 = vmax.f32 %v3052, %v2919
      %v3055 = vmax.f32 %v3053, %v2920
      %v3056 = vmax.f32 %v3054, %v2921
      %v3057 = vmax.f32 %v3055, %v2922
      %v3058 = vmax.f32 %v3056, %v2923
      %v3059 = vmax.f32 %v3057, %v2924
      %v3060 = vmax.f32 %v3058, %v2925
      %v3061 = vmax.f32 %v3059, %v2926
      %v3062 = vmax.f32 %v3060, %v2927
      %v3063 = vmax.f32 %v3061, %v2928
      %v3064 = vmax.f32 %v3062, %v2929
      %v3065 = vmax.f32 %v3063, %v2930
      %v3066 = vmax.f32 %v3064, %v2931
      %v3067 = vmax.f32 %v3065, %v2932
      %v3068 = vmax.f32 %v3066, %v2933
      %v3069 = vmax.f32 %v3067, %v2934
      %v3070 = vmax.f32 %v3068, %v2935
      %v3071 = vmax.f32 %v3069, %v2936
      %v3072 = vmax.f32 %v3070, %v2937
      %v3073 = vmax.f32 %v3071, %v2938
      %v3074 = vmax.f32 %v3072, %v2939
      %v3075 = vmax.f32 %v3073, %v2940
      %v3076 = vmax.f32 %v3074, %v2941
      %v3077 = vmax.f32 %v3075, %v2942
      %v3078 = vmax.f32 %v3076, %v2943
      %v3079 = vmax.f32 %v3077, %v2944
      %v3080 = vmax.f32 %v3078, %v2945
      %v3081 = vmax.f32 %v3079, %v2946
      %v3082 = vmax.f32 %v3080, %v2947
      %v3083 = vmax.f32 %v3081, %v2948
      %v3084 = vmax.f32 %v3082, %v2949
      %v3085 = vmax.f32 %v3083, %v2950
      %v3086 = vmax.f32 %v3084, %v2951
      %v3087 = vmax.f32 %v3085, %v2952
      %v3088 = vmax.f32 %v3086, %v2953
      %v3089 = vmax.f32 %v3087, %v2954
      %v3090 = vmax.f32 %v3088, %v2955
      %v3091 = vmax.f32 %v3089, %v2956
      %v3092 = vmax.f32 %v3090, %v2957
      %v3093 = vmax.f32 %v3091, %v2958
      %v3094 = vmax.f32 %v3092, %v2959
      %v3095 = vmax.f32 %v3093, %v3094
      %3096 = vmax.xlane.f32.xlu0 %v3095
      %v3097 = vpop.xlane.xlu0 %3096
      %v3098 = vsub.f32 %v2824, %v3028
      %v3099 = vsub.f32 %v2825, %v3028
      %v3100 = vsub.f32 %v2826, %v3028
      %v3101 = vsub.f32 %v2827, %v3028
      %v3102 = vsub.f32 %v2828, %v3028
      %v3103 = vsub.f32 %v2829, %v3028
      %v3104 = vsub.f32 %v2830, %v3028
      %v3105 = vsub.f32 %v2831, %v3028
      %v3106 = vsub.f32 %v2832, %v3028
      %v3107 = vsub.f32 %v2833, %v3028
      %v3108 = vsub.f32 %v2834, %v3028
      %v3109 = vsub.f32 %v2835, %v3028
      %v3110 = vsub.f32 %v2836, %v3028
      %v3111 = vsub.f32 %v2837, %v3028
      %v3112 = vsub.f32 %v2838, %v3028
      %v3113 = vsub.f32 %v2839, %v3028
      %v3114 = vsub.f32 %v2840, %v3028
      %v3115 = vsub.f32 %v2841, %v3028
      %v3116 = vsub.f32 %v2842, %v3028
      %v3117 = vsub.f32 %v2843, %v3028
      %v3118 = vsub.f32 %v2844, %v3028
      %v3119 = vsub.f32 %v2845, %v3028
      %v3120 = vsub.f32 %v2846, %v3028
      %v3121 = vsub.f32 %v2847, %v3028
      %v3122 = vsub.f32 %v2848, %v3028
      %v3123 = vsub.f32 %v2849, %v3028
      %v3124 = vsub.f32 %v2850, %v3028
      %v3125 = vsub.f32 %v2851, %v3028
      %v3126 = vsub.f32 %v2852, %v3028
      %v3127 = vsub.f32 %v2853, %v3028
      %v3128 = vsub.f32 %v2854, %v3028
      %v3129 = vsub.f32 %v2855, %v3028
      %v3130 = vsub.f32 %v2856, %v3028
      %v3131 = vsub.f32 %v2857, %v3028
      %v3132 = vsub.f32 %v2858, %v3028
      %v3133 = vsub.f32 %v2859, %v3028
      %v3134 = vsub.f32 %v2860, %v3028
      %v3135 = vsub.f32 %v2861, %v3028
      %v3136 = vsub.f32 %v2862, %v3028
      %v3137 = vsub.f32 %v2863, %v3028
      %v3138 = vsub.f32 %v2864, %v3028
      %v3139 = vsub.f32 %v2865, %v3028
      %v3140 = vsub.f32 %v2866, %v3028
      %v3141 = vsub.f32 %v2867, %v3028
      %v3142 = vsub.f32 %v2868, %v3028
      %v3143 = vsub.f32 %v2869, %v3028
      %v3144 = vsub.f32 %v2870, %v3028
      %v3145 = vsub.f32 %v2871, %v3028
      %v3146 = vsub.f32 %v2872, %v3028
      %v3147 = vsub.f32 %v2873, %v3028
      %v3148 = vsub.f32 %v2874, %v3028
      %v3149 = vsub.f32 %v2875, %v3028
      %v3150 = vsub.f32 %v2876, %v3028
      %v3151 = vsub.f32 %v2877, %v3028
      %v3152 = vsub.f32 %v2878, %v3028
      %v3153 = vsub.f32 %v2879, %v3028
      %v3154 = vsub.f32 %v2880, %v3028
      %v3155 = vsub.f32 %v2881, %v3028
      %v3156 = vsub.f32 %v2882, %v3028
      %v3157 = vsub.f32 %v2883, %v3028
      %v3158 = vsub.f32 %v2884, %v3028
      %v3159 = vsub.f32 %v2885, %v3028
      %v3160 = vsub.f32 %v2886, %v3028
      %v3161 = vsub.f32 %v2887, %v3028
      %v3162 = vsub.f32 %v2888, %v3028
      %v3163 = vsub.f32 %v2889, %v3028
      %v3164 = vsub.f32 %v2890, %v3028
      %v3165 = vsub.f32 %v2891, %v3028
      %v3166 = vsub.f32 %v2892, %v3097
      %v3167 = vsub.f32 %v2893, %v3097
      %v3168 = vsub.f32 %v2894, %v3097
      %v3169 = vsub.f32 %v2895, %v3097
      %v3170 = vsub.f32 %v2896, %v3097
      %v3171 = vsub.f32 %v2897, %v3097
      %v3172 = vsub.f32 %v2898, %v3097
      %v3173 = vsub.f32 %v2899, %v3097
      %v3174 = vsub.f32 %v2900, %v3097
      %v3175 = vsub.f32 %v2901, %v3097
      %v3176 = vsub.f32 %v2902, %v3097
      %v3177 = vsub.f32 %v2903, %v3097
      %v3178 = vsub.f32 %v2904, %v3097
      %v3179 = vsub.f32 %v2905, %v3097
      %v3180 = vsub.f32 %v2906, %v3097
      %v3181 = vsub.f32 %v2907, %v3097
      %v3182 = vsub.f32 %v2908, %v3097
      %v3183 = vsub.f32 %v2909, %v3097
      %v3184 = vsub.f32 %v2910, %v3097
      %v3185 = vsub.f32 %v2911, %v3097
      %v3186 = vsub.f32 %v2912, %v3097
      %v3187 = vsub.f32 %v2913, %v3097
      %v3188 = vsub.f32 %v2914, %v3097
      %v3189 = vsub.f32 %v2915, %v3097
      %v3190 = vsub.f32 %v2916, %v3097
      %v3191 = vsub.f32 %v2917, %v3097
      %v3192 = vsub.f32 %v2918, %v3097
      %v3193 = vsub.f32 %v2919, %v3097
      %v3194 = vsub.f32 %v2920, %v3097
      %v3195 = vsub.f32 %v2921, %v3097
      %v3196 = vsub.f32 %v2922, %v3097
      %v3197 = vsub.f32 %v2923, %v3097
      %v3198 = vsub.f32 %v2924, %v3097
      %v3199 = vsub.f32 %v2925, %v3097
      %v3200 = vsub.f32 %v2926, %v3097
      %v3201 = vsub.f32 %v2927, %v3097
      %v3202 = vsub.f32 %v2928, %v3097
      %v3203 = vsub.f32 %v2929, %v3097
      %v3204 = vsub.f32 %v2930, %v3097
      %v3205 = vsub.f32 %v2931, %v3097
      %v3206 = vsub.f32 %v2932, %v3097
      %v3207 = vsub.f32 %v2933, %v3097
      %v3208 = vsub.f32 %v2934, %v3097
      %v3209 = vsub.f32 %v2935, %v3097
      %v3210 = vsub.f32 %v2936, %v3097
      %v3211 = vsub.f32 %v2937, %v3097
      %v3212 = vsub.f32 %v2938, %v3097
      %v3213 = vsub.f32 %v2939, %v3097
      %v3214 = vsub.f32 %v2940, %v3097
      %v3215 = vsub.f32 %v2941, %v3097
      %v3216 = vsub.f32 %v2942, %v3097
      %v3217 = vsub.f32 %v2943, %v3097
      %v3218 = vsub.f32 %v2944, %v3097
      %v3219 = vsub.f32 %v2945, %v3097
      %v3220 = vsub.f32 %v2946, %v3097
      %v3221 = vsub.f32 %v2947, %v3097
      %v3222 = vsub.f32 %v2948, %v3097
      %v3223 = vsub.f32 %v2949, %v3097
      %v3224 = vsub.f32 %v2950, %v3097
      %v3225 = vsub.f32 %v2951, %v3097
      %v3226 = vsub.f32 %v2952, %v3097
      %v3227 = vsub.f32 %v2953, %v3097
      %v3228 = vsub.f32 %v2954, %v3097
      %v3229 = vsub.f32 %v2955, %v3097
      %v3230 = vsub.f32 %v2956, %v3097
      %v3231 = vsub.f32 %v2957, %v3097
      %v3232 = vsub.f32 %v2958, %v3097
      %v3233 = vsub.f32 %v2959, %v3097
      %v3234 = vmul.f32 %v3098, 1.442695
      %v3235 = vpow.pop %v3234
      %v3236 = vmul.f32 %v3099, 1.442695
      %v3237 = vpow.pop %v3236
      %v3238 = vmul.f32 %v3100, 1.442695
      %v3239 = vpow.pop %v3238
      %v3240 = vmul.f32 %v3101, 1.442695
      %v3241 = vpow.pop %v3240
      %v3242 = vmul.f32 %v3102, 1.442695
      %v3243 = vpow.pop %v3242
      %v3244 = vmul.f32 %v3103, 1.442695
      %v3245 = vpow.pop %v3244
      %v3246 = vmul.f32 %v3104, 1.442695
      %v3247 = vpow.pop %v3246
      %v3248 = vmul.f32 %v3105, 1.442695
      %v3249 = vpow.pop %v3248
      %v3250 = vmul.f32 %v3106, 1.442695
      %v3251 = vpow.pop %v3250
      %v3252 = vmul.f32 %v3107, 1.442695
      %v3253 = vpow.pop %v3252
      %v3254 = vmul.f32 %v3108, 1.442695
      %v3255 = vpow.pop %v3254
      %v3256 = vmul.f32 %v3109, 1.442695
      %v3257 = vpow.pop %v3256
      %v3258 = vmul.f32 %v3110, 1.442695
      %v3259 = vpow.pop %v3258
      %v3260 = vmul.f32 %v3111, 1.442695
      %v3261 = vpow.pop %v3260
      %v3262 = vmul.f32 %v3112, 1.442695
      %v3263 = vpow.pop %v3262
      %v3264 = vmul.f32 %v3113, 1.442695
      %v3265 = vpow.pop %v3264
      %v3266 = vmul.f32 %v3114, 1.442695
      %v3267 = vpow.pop %v3266
      %v3268 = vmul.f32 %v3115, 1.442695
      %v3269 = vpow.pop %v3268
      %v3270 = vmul.f32 %v3116, 1.442695
      %v3271 = vpow.pop %v3270
      %v3272 = vmul.f32 %v3117, 1.442695
      %v3273 = vpow.pop %v3272
      %v3274 = vmul.f32 %v3118, 1.442695
      %v3275 = vpow.pop %v3274
      %v3276 = vmul.f32 %v3119, 1.442695
      %v3277 = vpow.pop %v3276
      %v3278 = vmul.f32 %v3120, 1.442695
      %v3279 = vpow.pop %v3278
      %v3280 = vmul.f32 %v3121, 1.442695
      %v3281 = vpow.pop %v3280
      %v3282 = vmul.f32 %v3122, 1.442695
      %v3283 = vpow.pop %v3282
      %v3284 = vmul.f32 %v3123, 1.442695
      %v3285 = vpow.pop %v3284
      %v3286 = vmul.f32 %v3124, 1.442695
      %v3287 = vpow.pop %v3286
      %v3288 = vmul.f32 %v3125, 1.442695
      %v3289 = vpow.pop %v3288
      %v3290 = vmul.f32 %v3126, 1.442695
      %v3291 = vpow.pop %v3290
      %v3292 = vmul.f32 %v3127, 1.442695
      %v3293 = vpow.pop %v3292
      %v3294 = vmul.f32 %v3128, 1.442695
      %v3295 = vpow.pop %v3294
      %v3296 = vmul.f32 %v3129, 1.442695
      %v3297 = vpow.pop %v3296
      %v3298 = vmul.f32 %v3130, 1.442695
      %v3299 = vpow.pop %v3298
      %v3300 = vmul.f32 %v3131, 1.442695
      %v3301 = vpow.pop %v3300
      %v3302 = vmul.f32 %v3132, 1.442695
      %v3303 = vpow.pop %v3302
      %v3304 = vmul.f32 %v3133, 1.442695
      %v3305 = vpow.pop %v3304
      %v3306 = vmul.f32 %v3134, 1.442695
      %v3307 = vpow.pop %v3306
      %v3308 = vmul.f32 %v3135, 1.442695
      %v3309 = vpow.pop %v3308
      %v3310 = vmul.f32 %v3136, 1.442695
      %v3311 = vpow.pop %v3310
      %v3312 = vmul.f32 %v3137, 1.442695
      %v3313 = vpow.pop %v3312
      %v3314 = vmul.f32 %v3138, 1.442695
      %v3315 = vpow.pop %v3314
      %v3316 = vmul.f32 %v3139, 1.442695
      %v3317 = vpow.pop %v3316
      %v3318 = vmul.f32 %v3140, 1.442695
      %v3319 = vpow.pop %v3318
      %v3320 = vmul.f32 %v3141, 1.442695
      %v3321 = vpow.pop %v3320
      %v3322 = vmul.f32 %v3142, 1.442695
      %v3323 = vpow.pop %v3322
      %v3324 = vmul.f32 %v3143, 1.442695
      %v3325 = vpow.pop %v3324
      %v3326 = vmul.f32 %v3144, 1.442695
      %v3327 = vpow.pop %v3326
      %v3328 = vmul.f32 %v3145, 1.442695
      %v3329 = vpow.pop %v3328
      %v3330 = vmul.f32 %v3146, 1.442695
      %v3331 = vpow.pop %v3330
      %v3332 = vmul.f32 %v3147, 1.442695
      %v3333 = vpow.pop %v3332
      %v3334 = vmul.f32 %v3148, 1.442695
      %v3335 = vpow.pop %v3334
      %v3336 = vmul.f32 %v3149, 1.442695
      %v3337 = vpow.pop %v3336
      %v3338 = vmul.f32 %v3150, 1.442695
      %v3339 = vpow.pop %v3338
      %v3340 = vmul.f32 %v3151, 1.442695
      %v3341 = vpow.pop %v3340
      %v3342 = vmul.f32 %v3152, 1.442695
      %v3343 = vpow.pop %v3342
      %v3344 = vmul.f32 %v3153, 1.442695
      %v3345 = vpow.pop %v3344
      %v3346 = vmul.f32 %v3154, 1.442695
      %v3347 = vpow.pop %v3346
      %v3348 = vmul.f32 %v3155, 1.442695
      %v3349 = vpow.pop %v3348
      %v3350 = vmul.f32 %v3156, 1.442695
      %v3351 = vpow.pop %v3350
      %v3352 = vmul.f32 %v3157, 1.442695
      %v3353 = vpow.pop %v3352
      %v3354 = vmul.f32 %v3158, 1.442695
      %v3355 = vpow.pop %v3354
      %v3356 = vmul.f32 %v3159, 1.442695
      %v3357 = vpow.pop %v3356
      %v3358 = vmul.f32 %v3160, 1.442695
      %v3359 = vpow.pop %v3358
      %v3360 = vmul.f32 %v3161, 1.442695
      %v3361 = vpow.pop %v3360
      %v3362 = vmul.f32 %v3162, 1.442695
      %v3363 = vpow.pop %v3362
      %v3364 = vmul.f32 %v3163, 1.442695
      %v3365 = vpow.pop %v3364
      %v3366 = vmul.f32 %v3164, 1.442695
      %v3367 = vpow.pop %v3366
      %v3368 = vmul.f32 %v3165, 1.442695
      %v3369 = vpow.pop %v3368
      %v3370 = vmul.f32 %v3166, 1.442695
      %v3371 = vpow.pop %v3370
      %v3372 = vmul.f32 %v3167, 1.442695
      %v3373 = vpow.pop %v3372
      %v3374 = vmul.f32 %v3168, 1.442695
      %v3375 = vpow.pop %v3374
      %v3376 = vmul.f32 %v3169, 1.442695
      %v3377 = vpow.pop %v3376
      %v3378 = vmul.f32 %v3170, 1.442695
      %v3379 = vpow.pop %v3378
      %v3380 = vmul.f32 %v3171, 1.442695
      %v3381 = vpow.pop %v3380
      %v3382 = vmul.f32 %v3172, 1.442695
      %v3383 = vpow.pop %v3382
      %v3384 = vmul.f32 %v3173, 1.442695
      %v3385 = vpow.pop %v3384
      %v3386 = vmul.f32 %v3174, 1.442695
      %v3387 = vpow.pop %v3386
      %v3388 = vmul.f32 %v3175, 1.442695
      %v3389 = vpow.pop %v3388
      %v3390 = vmul.f32 %v3176, 1.442695
      %v3391 = vpow.pop %v3390
      %v3392 = vmul.f32 %v3177, 1.442695
      %v3393 = vpow.pop %v3392
      %v3394 = vmul.f32 %v3178, 1.442695
      %v3395 = vpow.pop %v3394
      %v3396 = vmul.f32 %v3179, 1.442695
      %v3397 = vpow.pop %v3396
      %v3398 = vmul.f32 %v3180, 1.442695
      %v3399 = vpow.pop %v3398
      %v3400 = vmul.f32 %v3181, 1.442695
      %v3401 = vpow.pop %v3400
      %v3402 = vmul.f32 %v3182, 1.442695
      %v3403 = vpow.pop %v3402
      %v3404 = vmul.f32 %v3183, 1.442695
      %v3405 = vpow.pop %v3404
      %v3406 = vmul.f32 %v3184, 1.442695
      %v3407 = vpow.pop %v3406
      %v3408 = vmul.f32 %v3185, 1.442695
      %v3409 = vpow.pop %v3408
      %v3410 = vmul.f32 %v3186, 1.442695
      %v3411 = vpow.pop %v3410
      %v3412 = vmul.f32 %v3187, 1.442695
      %v3413 = vpow.pop %v3412
      %v3414 = vmul.f32 %v3188, 1.442695
      %v3415 = vpow.pop %v3414
      %v3416 = vmul.f32 %v3189, 1.442695
      %v3417 = vpow.pop %v3416
      %v3418 = vmul.f32 %v3190, 1.442695
      %v3419 = vpow.pop %v3418
      %v3420 = vmul.f32 %v3191, 1.442695
      %v3421 = vpow.pop %v3420
      %v3422 = vmul.f32 %v3192, 1.442695
      %v3423 = vpow.pop %v3422
      %v3424 = vmul.f32 %v3193, 1.442695
      %v3425 = vpow.pop %v3424
      %v3426 = vmul.f32 %v3194, 1.442695
      %v3427 = vpow.pop %v3426
      %v3428 = vmul.f32 %v3195, 1.442695
      %v3429 = vpow.pop %v3428
      %v3430 = vmul.f32 %v3196, 1.442695
      %v3431 = vpow.pop %v3430
      %v3432 = vmul.f32 %v3197, 1.442695
      %v3433 = vpow.pop %v3432
      %v3434 = vmul.f32 %v3198, 1.442695
      %v3435 = vpow.pop %v3434
      %v3436 = vmul.f32 %v3199, 1.442695
      %v3437 = vpow.pop %v3436
      %v3438 = vmul.f32 %v3200, 1.442695
      %v3439 = vpow.pop %v3438
      %v3440 = vmul.f32 %v3201, 1.442695
      %v3441 = vpow.pop %v3440
      %v3442 = vmul.f32 %v3202, 1.442695
      %v3443 = vpow.pop %v3442
      %v3444 = vmul.f32 %v3203, 1.442695
      %v3445 = vpow.pop %v3444
      %v3446 = vmul.f32 %v3204, 1.442695
      %v3447 = vpow.pop %v3446
      %v3448 = vmul.f32 %v3205, 1.442695
      %v3449 = vpow.pop %v3448
      %v3450 = vmul.f32 %v3206, 1.442695
      %v3451 = vpow.pop %v3450
      %v3452 = vmul.f32 %v3207, 1.442695
      %v3453 = vpow.pop %v3452
      %v3454 = vmul.f32 %v3208, 1.442695
      %v3455 = vpow.pop %v3454
      %v3456 = vmul.f32 %v3209, 1.442695
      %v3457 = vpow.pop %v3456
      %v3458 = vmul.f32 %v3210, 1.442695
      %v3459 = vpow.pop %v3458
      %v3460 = vmul.f32 %v3211, 1.442695
      %v3461 = vpow.pop %v3460
      %v3462 = vmul.f32 %v3212, 1.442695
      %v3463 = vpow.pop %v3462
      %v3464 = vmul.f32 %v3213, 1.442695
      %v3465 = vpow.pop %v3464
      %v3466 = vmul.f32 %v3214, 1.442695
      %v3467 = vpow.pop %v3466
      %v3468 = vmul.f32 %v3215, 1.442695
      %v3469 = vpow.pop %v3468
      %v3470 = vmul.f32 %v3216, 1.442695
      %v3471 = vpow.pop %v3470
      %v3472 = vmul.f32 %v3217, 1.442695
      %v3473 = vpow.pop %v3472
      %v3474 = vmul.f32 %v3218, 1.442695
      %v3475 = vpow.pop %v3474
      %v3476 = vmul.f32 %v3219, 1.442695
      %v3477 = vpow.pop %v3476
      %v3478 = vmul.f32 %v3220, 1.442695
      %v3479 = vpow.pop %v3478
      %v3480 = vmul.f32 %v3221, 1.442695
      %v3481 = vpow.pop %v3480
      %v3482 = vmul.f32 %v3222, 1.442695
      %v3483 = vpow.pop %v3482
      %v3484 = vmul.f32 %v3223, 1.442695
      %v3485 = vpow.pop %v3484
      %v3486 = vmul.f32 %v3224, 1.442695
      %v3487 = vpow.pop %v3486
      %v3488 = vmul.f32 %v3225, 1.442695
      %v3489 = vpow.pop %v3488
      %v3490 = vmul.f32 %v3226, 1.442695
      %v3491 = vpow.pop %v3490
      %v3492 = vmul.f32 %v3227, 1.442695
      %v3493 = vpow.pop %v3492
      %v3494 = vmul.f32 %v3228, 1.442695
      %v3495 = vpow.pop %v3494
      %v3496 = vmul.f32 %v3229, 1.442695
      %v3497 = vpow.pop %v3496
      %v3498 = vmul.f32 %v3230, 1.442695
      %v3499 = vpow.pop %v3498
      %v3500 = vmul.f32 %v3231, 1.442695
      %v3501 = vpow.pop %v3500
      %v3502 = vmul.f32 %v3232, 1.442695
      %v3503 = vpow.pop %v3502
      %v3504 = vmul.f32 %v3233, 1.442695
      %v3505 = vpow.pop %v3504
      %v3506 = vadd.f32 %v3235, %v3237
      %v3507 = vadd.f32 %v3506, %v3239
      %v3508 = vadd.f32 %v3507, %v3241
      %v3509 = vadd.f32 %v3508, %v3243
      %v3510 = vadd.f32 %v3509, %v3245
      %v3511 = vadd.f32 %v3510, %v3247
      %v3512 = vadd.f32 %v3511, %v3249
      %v3513 = vadd.f32 %v3512, %v3251
      %v3514 = vadd.f32 %v3513, %v3253
      %v3515 = vadd.f32 %v3514, %v3255
      %v3516 = vadd.f32 %v3515, %v3257
      %v3517 = vadd.f32 %v3516, %v3259
      %v3518 = vadd.f32 %v3517, %v3261
      %v3519 = vadd.f32 %v3518, %v3263
      %v3520 = vadd.f32 %v3519, %v3265
      %v3521 = vadd.f32 %v3520, %v3267
      %v3522 = vadd.f32 %v3521, %v3269
      %v3523 = vadd.f32 %v3522, %v3271
      %v3524 = vadd.f32 %v3523, %v3273
      %v3525 = vadd.f32 %v3524, %v3275
      %v3526 = vadd.f32 %v3525, %v3277
      %v3527 = vadd.f32 %v3526, %v3279
      %v3528 = vadd.f32 %v3527, %v3281
      %v3529 = vadd.f32 %v3528, %v3283
      %v3530 = vadd.f32 %v3529, %v3285
      %v3531 = vadd.f32 %v3530, %v3287
      %v3532 = vadd.f32 %v3531, %v3289
      %v3533 = vadd.f32 %v3532, %v3291
      %v3534 = vadd.f32 %v3533, %v3293
      %v3535 = vadd.f32 %v3534, %v3295
      %v3536 = vadd.f32 %v3535, %v3297
      %v3537 = vadd.f32 %v3536, %v3299
      %v3538 = vadd.f32 %v3537, %v3301
      %v3539 = vadd.f32 %v3538, %v3303
      %v3540 = vadd.f32 %v3539, %v3305
      %v3541 = vadd.f32 %v3540, %v3307
      %v3542 = vadd.f32 %v3541, %v3309
      %v3543 = vadd.f32 %v3542, %v3311
      %v3544 = vadd.f32 %v3543, %v3313
      %v3545 = vadd.f32 %v3544, %v3315
      %v3546 = vadd.f32 %v3545, %v3317
      %v3547 = vadd.f32 %v3546, %v3319
      %v3548 = vadd.f32 %v3547, %v3321
      %v3549 = vadd.f32 %v3548, %v3323
      %v3550 = vadd.f32 %v3549, %v3325
      %v3551 = vadd.f32 %v3550, %v3327
      %v3552 = vadd.f32 %v3551, %v3329
      %v3553 = vadd.f32 %v3552, %v3331
      %v3554 = vadd.f32 %v3553, %v3333
      %v3555 = vadd.f32 %v3554, %v3335
      %v3556 = vadd.f32 %v3555, %v3337
      %v3557 = vadd.f32 %v3556, %v3339
      %v3558 = vadd.f32 %v3557, %v3341
      %v3559 = vadd.f32 %v3558, %v3343
      %v3560 = vadd.f32 %v3559, %v3345
      %v3561 = vadd.f32 %v3560, %v3347
      %v3562 = vadd.f32 %v3561, %v3349
      %v3563 = vadd.f32 %v3562, %v3351
      %v3564 = vadd.f32 %v3563, %v3353
      %v3565 = vadd.f32 %v3564, %v3355
      %v3566 = vadd.f32 %v3565, %v3357
      %v3567 = vadd.f32 %v3566, %v3359
      %v3568 = vadd.f32 %v3567, %v3361
      %v3569 = vadd.f32 %v3568, %v3363
      %v3570 = vadd.f32 %v3569, %v3365
      %v3571 = vadd.f32 %v3570, %v3367
      %v3572 = vadd.f32 %v3571, %v3369
      %3573 = vadd.xlane.f32.xlu0 %v3572
      %v3574 = vpop.xlane.xlu0 %3573
      %v3575 = vadd.f32 %v3371, %v3373
      %v3576 = vadd.f32 %v3575, %v3375
      %v3577 = vadd.f32 %v3576, %v3377
      %v3578 = vadd.f32 %v3577, %v3379
      %v3579 = vadd.f32 %v3578, %v3381
      %v3580 = vadd.f32 %v3579, %v3383
      %v3581 = vadd.f32 %v3580, %v3385
      %v3582 = vadd.f32 %v3581, %v3387
      %v3583 = vadd.f32 %v3582, %v3389
      %v3584 = vadd.f32 %v3583, %v3391
      %v3585 = vadd.f32 %v3584, %v3393
      %v3586 = vadd.f32 %v3585, %v3395
      %v3587 = vadd.f32 %v3586, %v3397
      %v3588 = vadd.f32 %v3587, %v3399
      %v3589 = vadd.f32 %v3588, %v3401
      %v3590 = vadd.f32 %v3589, %v3403
      %v3591 = vadd.f32 %v3590, %v3405
      %v3592 = vadd.f32 %v3591, %v3407
      %v3593 = vadd.f32 %v3592, %v3409
      %v3594 = vadd.f32 %v3593, %v3411
      %v3595 = vadd.f32 %v3594, %v3413
      %v3596 = vadd.f32 %v3595, %v3415
      %v3597 = vadd.f32 %v3596, %v3417
      %v3598 = vadd.f32 %v3597, %v3419
      %v3599 = vadd.f32 %v3598, %v3421
      %v3600 = vadd.f32 %v3599, %v3423
      %v3601 = vadd.f32 %v3600, %v3425
      %v3602 = vadd.f32 %v3601, %v3427
      %v3603 = vadd.f32 %v3602, %v3429
      %v3604 = vadd.f32 %v3603, %v3431
      %v3605 = vadd.f32 %v3604, %v3433
      %v3606 = vadd.f32 %v3605, %v3435
      %v3607 = vadd.f32 %v3606, %v3437
      %v3608 = vadd.f32 %v3607, %v3439
      %v3609 = vadd.f32 %v3608, %v3441
      %v3610 = vadd.f32 %v3609, %v3443
      %v3611 = vadd.f32 %v3610, %v3445
      %v3612 = vadd.f32 %v3611, %v3447
      %v3613 = vadd.f32 %v3612, %v3449
      %v3614 = vadd.f32 %v3613, %v3451
      %v3615 = vadd.f32 %v3614, %v3453
      %v3616 = vadd.f32 %v3615, %v3455
      %v3617 = vadd.f32 %v3616, %v3457
      %v3618 = vadd.f32 %v3617, %v3459
      %v3619 = vadd.f32 %v3618, %v3461
      %v3620 = vadd.f32 %v3619, %v3463
      %v3621 = vadd.f32 %v3620, %v3465
      %v3622 = vadd.f32 %v3621, %v3467
      %v3623 = vadd.f32 %v3622, %v3469
      %v3624 = vadd.f32 %v3623, %v3471
      %v3625 = vadd.f32 %v3624, %v3473
      %v3626 = vadd.f32 %v3625, %v3475
      %v3627 = vadd.f32 %v3626, %v3477
      %v3628 = vadd.f32 %v3627, %v3479
      %v3629 = vadd.f32 %v3628, %v3481
      %v3630 = vadd.f32 %v3629, %v3483
      %v3631 = vadd.f32 %v3630, %v3485
      %v3632 = vadd.f32 %v3631, %v3487
      %v3633 = vadd.f32 %v3632, %v3489
      %v3634 = vadd.f32 %v3633, %v3491
      %v3635 = vadd.f32 %v3634, %v3493
      %v3636 = vadd.f32 %v3635, %v3495
      %v3637 = vadd.f32 %v3636, %v3497
      %v3638 = vadd.f32 %v3637, %v3499
      %v3639 = vadd.f32 %v3638, %v3501
      %v3640 = vadd.f32 %v3639, %v3503
      %v3641 = vadd.f32 %v3640, %v3505
      %3642 = vadd.xlane.f32.xlu0 %v3641
      %v3643 = vpop.xlane.xlu0 %3642
      %v3644 = vlog2.pop %v3574
      %v3645 = vmul.f32 %v3644, 0.6931472
      %v3646 = vlog2.pop %v3643
      %v3647 = vmul.f32 %v3646, 0.6931472
      %v3648 = vsub.f32 %v3098, %v3645
      %v3649 = vsub.f32 %v3099, %v3645
      %v3650 = vsub.f32 %v3100, %v3645
      %v3651 = vsub.f32 %v3101, %v3645
      %v3652 = vsub.f32 %v3102, %v3645
      %v3653 = vsub.f32 %v3103, %v3645
      %v3654 = vsub.f32 %v3104, %v3645
      %v3655 = vsub.f32 %v3105, %v3645
      %v3656 = vsub.f32 %v3106, %v3645
      %v3657 = vsub.f32 %v3107, %v3645
      %v3658 = vsub.f32 %v3108, %v3645
      %v3659 = vsub.f32 %v3109, %v3645
      %v3660 = vsub.f32 %v3110, %v3645
      %v3661 = vsub.f32 %v3111, %v3645
      %v3662 = vsub.f32 %v3112, %v3645
      %v3663 = vsub.f32 %v3113, %v3645
      %v3664 = vsub.f32 %v3114, %v3645
      %v3665 = vsub.f32 %v3115, %v3645
      %v3666 = vsub.f32 %v3116, %v3645
      %v3667 = vsub.f32 %v3117, %v3645
      %v3668 = vsub.f32 %v3118, %v3645
      %v3669 = vsub.f32 %v3119, %v3645
      %v3670 = vsub.f32 %v3120, %v3645
      %v3671 = vsub.f32 %v3121, %v3645
      %v3672 = vsub.f32 %v3122, %v3645
      %v3673 = vsub.f32 %v3123, %v3645
      %v3674 = vsub.f32 %v3124, %v3645
      %v3675 = vsub.f32 %v3125, %v3645
      %v3676 = vsub.f32 %v3126, %v3645
      %v3677 = vsub.f32 %v3127, %v3645
      %v3678 = vsub.f32 %v3128, %v3645
      %v3679 = vsub.f32 %v3129, %v3645
      %v3680 = vsub.f32 %v3130, %v3645
      %v3681 = vsub.f32 %v3131, %v3645
      %v3682 = vsub.f32 %v3132, %v3645
      %v3683 = vsub.f32 %v3133, %v3645
      %v3684 = vsub.f32 %v3134, %v3645
      %v3685 = vsub.f32 %v3135, %v3645
      %v3686 = vsub.f32 %v3136, %v3645
      %v3687 = vsub.f32 %v3137, %v3645
      %v3688 = vsub.f32 %v3138, %v3645
      %v3689 = vsub.f32 %v3139, %v3645
      %v3690 = vsub.f32 %v3140, %v3645
      %v3691 = vsub.f32 %v3141, %v3645
      %v3692 = vsub.f32 %v3142, %v3645
      %v3693 = vsub.f32 %v3143, %v3645
      %v3694 = vsub.f32 %v3144, %v3645
      %v3695 = vsub.f32 %v3145, %v3645
      %v3696 = vsub.f32 %v3146, %v3645
      %v3697 = vsub.f32 %v3147, %v3645
      %v3698 = vsub.f32 %v3148, %v3645
      %v3699 = vsub.f32 %v3149, %v3645
      %v3700 = vsub.f32 %v3150, %v3645
      %v3701 = vsub.f32 %v3151, %v3645
      %v3702 = vsub.f32 %v3152, %v3645
      %v3703 = vsub.f32 %v3153, %v3645
      %v3704 = vsub.f32 %v3154, %v3645
      %v3705 = vsub.f32 %v3155, %v3645
      %v3706 = vsub.f32 %v3156, %v3645
      %v3707 = vsub.f32 %v3157, %v3645
      %v3708 = vsub.f32 %v3158, %v3645
      %v3709 = vsub.f32 %v3159, %v3645
      %v3710 = vsub.f32 %v3160, %v3645
      %v3711 = vsub.f32 %v3161, %v3645
      %v3712 = vsub.f32 %v3162, %v3645
      %v3713 = vsub.f32 %v3163, %v3645
      %v3714 = vsub.f32 %v3164, %v3645
      %v3715 = vsub.f32 %v3165, %v3645
      %v3716 = vsub.f32 %v3166, %v3647
      %v3717 = vsub.f32 %v3167, %v3647
      %v3718 = vsub.f32 %v3168, %v3647
      %v3719 = vsub.f32 %v3169, %v3647
      %v3720 = vsub.f32 %v3170, %v3647
      %v3721 = vsub.f32 %v3171, %v3647
      %v3722 = vsub.f32 %v3172, %v3647
      %v3723 = vsub.f32 %v3173, %v3647
      %v3724 = vsub.f32 %v3174, %v3647
      %v3725 = vsub.f32 %v3175, %v3647
      %v3726 = vsub.f32 %v3176, %v3647
      %v3727 = vsub.f32 %v3177, %v3647
      %v3728 = vsub.f32 %v3178, %v3647
      %v3729 = vsub.f32 %v3179, %v3647
      %v3730 = vsub.f32 %v3180, %v3647
      %v3731 = vsub.f32 %v3181, %v3647
      %v3732 = vsub.f32 %v3182, %v3647
      %v3733 = vsub.f32 %v3183, %v3647
      %v3734 = vsub.f32 %v3184, %v3647
      %v3735 = vsub.f32 %v3185, %v3647
      %v3736 = vsub.f32 %v3186, %v3647
      %v3737 = vsub.f32 %v3187, %v3647
      %v3738 = vsub.f32 %v3188, %v3647
      %v3739 = vsub.f32 %v3189, %v3647
      %v3740 = vsub.f32 %v3190, %v3647
      %v3741 = vsub.f32 %v3191, %v3647
      %v3742 = vsub.f32 %v3192, %v3647
      %v3743 = vsub.f32 %v3193, %v3647
      %v3744 = vsub.f32 %v3194, %v3647
      %v3745 = vsub.f32 %v3195, %v3647
      %v3746 = vsub.f32 %v3196, %v3647
      %v3747 = vsub.f32 %v3197, %v3647
      %v3748 = vsub.f32 %v3198, %v3647
      %v3749 = vsub.f32 %v3199, %v3647
      %v3750 = vsub.f32 %v3200, %v3647
      %v3751 = vsub.f32 %v3201, %v3647
      %v3752 = vsub.f32 %v3202, %v3647
      %v3753 = vsub.f32 %v3203, %v3647
      %v3754 = vsub.f32 %v3204, %v3647
      %v3755 = vsub.f32 %v3205, %v3647
      %v3756 = vsub.f32 %v3206, %v3647
      %v3757 = vsub.f32 %v3207, %v3647
      %v3758 = vsub.f32 %v3208, %v3647
      %v3759 = vsub.f32 %v3209, %v3647
      %v3760 = vsub.f32 %v3210, %v3647
      %v3761 = vsub.f32 %v3211, %v3647
      %v3762 = vsub.f32 %v3212, %v3647
      %v3763 = vsub.f32 %v3213, %v3647
      %v3764 = vsub.f32 %v3214, %v3647
      %v3765 = vsub.f32 %v3215, %v3647
      %v3766 = vsub.f32 %v3216, %v3647
      %v3767 = vsub.f32 %v3217, %v3647
      %v3768 = vsub.f32 %v3218, %v3647
      %v3769 = vsub.f32 %v3219, %v3647
      %v3770 = vsub.f32 %v3220, %v3647
      %v3771 = vsub.f32 %v3221, %v3647
      %v3772 = vsub.f32 %v3222, %v3647
      %v3773 = vsub.f32 %v3223, %v3647
      %v3774 = vsub.f32 %v3224, %v3647
      %v3775 = vsub.f32 %v3225, %v3647
      %v3776 = vsub.f32 %v3226, %v3647
      %v3777 = vsub.f32 %v3227, %v3647
      %v3778 = vsub.f32 %v3228, %v3647
      %v3779 = vsub.f32 %v3229, %v3647
      %v3780 = vsub.f32 %v3230, %v3647
      %v3781 = vsub.f32 %v3231, %v3647
      %v3782 = vsub.f32 %v3232, %v3647
      %v3783 = vsub.f32 %v3233, %v3647
      %3784 = vst [vmem:[#allocation8] sm:$0xff] %v3648
      %3785 = vst [vmem:[#allocation8 + $0x8] sm:$0xff] %v3649
      %3786 = vst [vmem:[#allocation8 + $0x10] sm:$0xff] %v3650
      %3787 = vst [vmem:[#allocation8 + $0x18] sm:$0xff] %v3651
      %3788 = vst [vmem:[#allocation8 + $0x20] sm:$0xff] %v3652
      %3789 = vst [vmem:[#allocation8 + $0x28] sm:$0xff] %v3653
      %3790 = vst [vmem:[#allocation8 + $0x30] sm:$0xff] %v3654
      %3791 = vst [vmem:[#allocation8 + $0x38] sm:$0xff] %v3655
      %3792 = vst [vmem:[#allocation8 + $0x40] sm:$0xff] %v3656
      %3793 = vst [vmem:[#allocation8 + $0x48] sm:$0xff] %v3657
      %3794 = vst [vmem:[#allocation8 + $0x50] sm:$0xff] %v3658
      %3795 = vst [vmem:[#allocation8 + $0x58] sm:$0xff] %v3659
      %3796 = vst [vmem:[#allocation8 + $0x60] sm:$0xff] %v3660
      %3797 = vst [vmem:[#allocation8 + $0x68] sm:$0xff] %v3661
      %3798 = vst [vmem:[#allocation8 + $0x70] sm:$0xff] %v3662
      %3799 = vst [vmem:[#allocation8 + $0x78] sm:$0xff] %v3663
      %3800 = vst [vmem:[#allocation8 + $0x80] sm:$0xff] %v3664
      %3801 = vst [vmem:[#allocation8 + $0x88] sm:$0xff] %v3665
      %3802 = vst [vmem:[#allocation8 + $0x90] sm:$0xff] %v3666
      %3803 = vst [vmem:[#allocation8 + $0x98] sm:$0xff] %v3667
      %3804 = vst [vmem:[#allocation8 + $0xa0] sm:$0xff] %v3668
      %3805 = vst [vmem:[#allocation8 + $0xa8] sm:$0xff] %v3669
      %3806 = vst [vmem:[#allocation8 + $0xb0] sm:$0xff] %v3670
      %3807 = vst [vmem:[#allocation8 + $0xb8] sm:$0xff] %v3671
      %3808 = vst [vmem:[#allocation8 + $0xc0] sm:$0xff] %v3672
      %3809 = vst [vmem:[#allocation8 + $0xc8] sm:$0xff] %v3673
      %3810 = vst [vmem:[#allocation8 + $0xd0] sm:$0xff] %v3674
      %3811 = vst [vmem:[#allocation8 + $0xd8] sm:$0xff] %v3675
      %3812 = vst [vmem:[#allocation8 + $0xe0] sm:$0xff] %v3676
      %3813 = vst [vmem:[#allocation8 + $0xe8] sm:$0xff] %v3677
      %3814 = vst [vmem:[#allocation8 + $0xf0] sm:$0xff] %v3678
      %3815 = vst [vmem:[#allocation8 + $0xf8] sm:$0xff] %v3679
      %3816 = vst [vmem:[#allocation8 + $0x100] sm:$0xff] %v3680
      %3817 = vst [vmem:[#allocation8 + $0x108] sm:$0xff] %v3681
      %3818 = vst [vmem:[#allocation8 + $0x110] sm:$0xff] %v3682
      %3819 = vst [vmem:[#allocation8 + $0x118] sm:$0xff] %v3683
      %3820 = vst [vmem:[#allocation8 + $0x120] sm:$0xff] %v3684
      %3821 = vst [vmem:[#allocation8 + $0x128] sm:$0xff] %v3685
      %3822 = vst [vmem:[#allocation8 + $0x130] sm:$0xff] %v3686
      %3823 = vst [vmem:[#allocation8 + $0x138] sm:$0xff] %v3687
      %3824 = vst [vmem:[#allocation8 + $0x140] sm:$0xff] %v3688
      %3825 = vst [vmem:[#allocation8 + $0x148] sm:$0xff] %v3689
      %3826 = vst [vmem:[#allocation8 + $0x150] sm:$0xff] %v3690
      %3827 = vst [vmem:[#allocation8 + $0x158] sm:$0xff] %v3691
      %3828 = vst [vmem:[#allocation8 + $0x160] sm:$0xff] %v3692
      %3829 = vst [vmem:[#allocation8 + $0x168] sm:$0xff] %v3693
      %3830 = vst [vmem:[#allocation8 + $0x170] sm:$0xff] %v3694
      %3831 = vst [vmem:[#allocation8 + $0x178] sm:$0xff] %v3695
      %3832 = vst [vmem:[#allocation8 + $0x180] sm:$0xff] %v3696
      %3833 = vst [vmem:[#allocation8 + $0x188] sm:$0xff] %v3697
      %3834 = vst [vmem:[#allocation8 + $0x190] sm:$0xff] %v3698
      %3835 = vst [vmem:[#allocation8 + $0x198] sm:$0xff] %v3699
      %3836 = vst [vmem:[#allocation8 + $0x1a0] sm:$0xff] %v3700
      %3837 = vst [vmem:[#allocation8 + $0x1a8] sm:$0xff] %v3701
      %3838 = vst [vmem:[#allocation8 + $0x1b0] sm:$0xff] %v3702
      %3839 = vst [vmem:[#allocation8 + $0x1b8] sm:$0xff] %v3703
      %3840 = vst [vmem:[#allocation8 + $0x1c0] sm:$0xff] %v3704
      %3841 = vst [vmem:[#allocation8 + $0x1c8] sm:$0xff] %v3705
      %3842 = vst [vmem:[#allocation8 + $0x1d0] sm:$0xff] %v3706
      %3843 = vst [vmem:[#allocation8 + $0x1d8] sm:$0xff] %v3707
      %3844 = vst [vmem:[#allocation8 + $0x1e0] sm:$0xff] %v3708
      %3845 = vst [vmem:[#allocation8 + $0x1e8] sm:$0xff] %v3709
      %3846 = vst [vmem:[#allocation8 + $0x1f0] sm:$0xff] %v3710
      %3847 = vst [vmem:[#allocation8 + $0x1f8] sm:$0xff] %v3711
      %3848 = vst [vmem:[#allocation8 + $0x200] sm:$0xff] %v3712
      %3849 = vst [vmem:[#allocation8 + $0x208] sm:$0xff] %v3713
      %3850 = vst [vmem:[#allocation8 + $0x210] sm:$0xff] %v3714
      %3851 = vst [vmem:[#allocation8 + $0x218] sm:$0xff] %v3715
      %3852 = vst [vmem:[#allocation8 + $0x220] sm:$0xff] %v3716
      %3853 = vst [vmem:[#allocation8 + $0x228] sm:$0xff] %v3717
      %3854 = vst [vmem:[#allocation8 + $0x230] sm:$0xff] %v3718
      %3855 = vst [vmem:[#allocation8 + $0x238] sm:$0xff] %v3719
      %3856 = vst [vmem:[#allocation8 + $0x240] sm:$0xff] %v3720
      %3857 = vst [vmem:[#allocation8 + $0x248] sm:$0xff] %v3721
      %3858 = vst [vmem:[#allocation8 + $0x250] sm:$0xff] %v3722
      %3859 = vst [vmem:[#allocation8 + $0x258] sm:$0xff] %v3723
      %3860 = vst [vmem:[#allocation8 + $0x260] sm:$0xff] %v3724
      %3861 = vst [vmem:[#allocation8 + $0x268] sm:$0xff] %v3725
      %3862 = vst [vmem:[#allocation8 + $0x270] sm:$0xff] %v3726
      %3863 = vst [vmem:[#allocation8 + $0x278] sm:$0xff] %v3727
      %3864 = vst [vmem:[#allocation8 + $0x280] sm:$0xff] %v3728
      %3865 = vst [vmem:[#allocation8 + $0x288] sm:$0xff] %v3729
      %3866 = vst [vmem:[#allocation8 + $0x290] sm:$0xff] %v3730
      %3867 = vst [vmem:[#allocation8 + $0x298] sm:$0xff] %v3731
      %3868 = vst [vmem:[#allocation8 + $0x2a0] sm:$0xff] %v3732
      %3869 = vst [vmem:[#allocation8 + $0x2a8] sm:$0xff] %v3733
      %3870 = vst [vmem:[#allocation8 + $0x2b0] sm:$0xff] %v3734
      %3871 = vst [vmem:[#allocation8 + $0x2b8] sm:$0xff] %v3735
      %3872 = vst [vmem:[#allocation8 + $0x2c0] sm:$0xff] %v3736
      %3873 = vst [vmem:[#allocation8 + $0x2c8] sm:$0xff] %v3737
      %3874 = vst [vmem:[#allocation8 + $0x2d0] sm:$0xff] %v3738
      %3875 = vst [vmem:[#allocation8 + $0x2d8] sm:$0xff] %v3739
      %3876 = vst [vmem:[#allocation8 + $0x2e0] sm:$0xff] %v3740
      %3877 = vst [vmem:[#allocation8 + $0x2e8] sm:$0xff] %v3741
      %3878 = vst [vmem:[#allocation8 + $0x2f0] sm:$0xff] %v3742
      %3879 = vst [vmem:[#allocation8 + $0x2f8] sm:$0xff] %v3743
      %3880 = vst [vmem:[#allocation8 + $0x300] sm:$0xff] %v3744
      %3881 = vst [vmem:[#allocation8 + $0x308] sm:$0xff] %v3745
      %3882 = vst [vmem:[#allocation8 + $0x310] sm:$0xff] %v3746
      %3883 = vst [vmem:[#allocation8 + $0x318] sm:$0xff] %v3747
      %3884 = vst [vmem:[#allocation8 + $0x320] sm:$0xff] %v3748
      %3885 = vst [vmem:[#allocation8 + $0x328] sm:$0xff] %v3749
      %3886 = vst [vmem:[#allocation8 + $0x330] sm:$0xff] %v3750
      %3887 = vst [vmem:[#allocation8 + $0x338] sm:$0xff] %v3751
      %3888 = vst [vmem:[#allocation8 + $0x340] sm:$0xff] %v3752
      %3889 = vst [vmem:[#allocation8 + $0x348] sm:$0xff] %v3753
      %3890 = vst [vmem:[#allocation8 + $0x350] sm:$0xff] %v3754
      %3891 = vst [vmem:[#allocation8 + $0x358] sm:$0xff] %v3755
      %3892 = vst [vmem:[#allocation8 + $0x360] sm:$0xff] %v3756
      %3893 = vst [vmem:[#allocation8 + $0x368] sm:$0xff] %v3757
      %3894 = vst [vmem:[#allocation8 + $0x370] sm:$0xff] %v3758
      %3895 = vst [vmem:[#allocation8 + $0x378] sm:$0xff] %v3759
      %3896 = vst [vmem:[#allocation8 + $0x380] sm:$0xff] %v3760
      %3897 = vst [vmem:[#allocation8 + $0x388] sm:$0xff] %v3761
      %3898 = vst [vmem:[#allocation8 + $0x390] sm:$0xff] %v3762
      %3899 = vst [vmem:[#allocation8 + $0x398] sm:$0xff] %v3763
      %3900 = vst [vmem:[#allocation8 + $0x3a0] sm:$0xff] %v3764
      %3901 = vst [vmem:[#allocation8 + $0x3a8] sm:$0xff] %v3765
      %3902 = vst [vmem:[#allocation8 + $0x3b0] sm:$0xff] %v3766
      %3903 = vst [vmem:[#allocation8 + $0x3b8] sm:$0xff] %v3767
      %3904 = vst [vmem:[#allocation8 + $0x3c0] sm:$0xff] %v3768
      %3905 = vst [vmem:[#allocation8 + $0x3c8] sm:$0xff] %v3769
      %3906 = vst [vmem:[#allocation8 + $0x3d0] sm:$0xff] %v3770
      %3907 = vst [vmem:[#allocation8 + $0x3d8] sm:$0xff] %v3771
      %3908 = vst [vmem:[#allocation8 + $0x3e0] sm:$0xff] %v3772
      %3909 = vst [vmem:[#allocation8 + $0x3e8] sm:$0xff] %v3773
      %3910 = vst [vmem:[#allocation8 + $0x3f0] sm:$0xff] %v3774
      %3911 = vst [vmem:[#allocation8 + $0x3f8] sm:$0xff] %v3775
      %3912 = vst [vmem:[#allocation8 + $0x400] sm:$0xff] %v3776
      %3913 = vst [vmem:[#allocation8 + $0x408] sm:$0xff] %v3777
      %3914 = vst [vmem:[#allocation8 + $0x410] sm:$0xff] %v3778
      %3915 = vst [vmem:[#allocation8 + $0x418] sm:$0xff] %v3779
      %3916 = vst [vmem:[#allocation8 + $0x420] sm:$0xff] %v3780
      %3917 = vst [vmem:[#allocation8 + $0x428] sm:$0xff] %v3781
      %3918 = vst [vmem:[#allocation8 + $0x430] sm:$0xff] %v3782
      %3919 = vst [vmem:[#allocation8 + $0x438] sm:$0xff] %v3783
    $region33: #{tpu_custom_call.1} parent=1 // pred_fallthru
      _
    // Predicated region
    $region34: #{tpu_custom_call.1} parent=1 // pred_check
      _
    $region35: #{tpu_custom_call.1} parent=1 // pred_check_branch
      %3921 = sbr.rel (0) target = $region37
    $region36: #{tpu_custom_call.1} parent=1 // pred_region
      %3923 = vsyncadd [#allocation4], 0
      %s3924 = sshll.u32 [#allocation8], 4
      %s3925 = int_to_ptr.vmem [resolvable:$true] %s3924
      %s3926 = sshll.u32 %s3, 4
      %s3927 = int_to_ptr.hbm [resolvable:$true] %s3926
      %3932 = dma.vmem_to_hbm [thread:$0]  %s3925, 17408, %s3927, [#allocation4], 8704, 8704, 544
    $region37: #{tpu_custom_call.1} parent=1 // pred_fallthru
      _
    // Predicated region
    $region38: #{tpu_custom_call.1} parent=1 // pred_check
      _
    $region39: #{tpu_custom_call.1} parent=1 // pred_check_branch
      %3934 = sbr.rel (0) target = $region41
    $region40: #{tpu_custom_call.1} parent=1 // pred_region
      %3936 = dma.done [#allocation4], 17408
    $region41: #{tpu_custom_call.1} parent=1 // pred_fallthru
      _
    %3937 = vsyncpa [#allocation3], 1
    %3938 = vsyncpa [#allocation6], 1
    %3939 = vsyncpa [#allocation4], 1

</llo_original>
